<compile_context>
chip_gen: v6e
topology: v6e:2x2x1
jax: 0.10.0
libtpu: 0.0.40
codegen_flags: <defaults>
</compile_context>

<pallas_src>
from functools import partial

import jax
import jax.numpy as jnp
from jax.experimental import pallas as pl
from jax.experimental.pallas import tpu as pltpu


# ----------------------------------------------------------------------------
# Exact GELU (erf form, polynomial erf -> guaranteed Mosaic lowering).
# ----------------------------------------------------------------------------
_ERF_P = 0.3275911
_ERF_A1 = 0.254829592
_ERF_A2 = -0.284496736
_ERF_A3 = 1.421413741
_ERF_A4 = -1.453152027
_ERF_A5 = 1.061405429
_SQRT1_2 = 0.7071067811865476


def _erf(x):
    sgn = jnp.where(x >= 0.0, 1.0, -1.0)
    a = jnp.abs(x)
    t = 1.0 / (1.0 + _ERF_P * a)
    poly = t * (_ERF_A1 + t * (_ERF_A2 + t * (_ERF_A3 + t * (_ERF_A4 + t * _ERF_A5))))
    return sgn * (1.0 - poly * jnp.exp(-a * a))


def _gelu(x):
    # exact GELU: 0.5 * x * (1 + erf(x / sqrt(2)))
    return 0.5 * x * (1.0 + _erf(x * _SQRT1_2))


# ----------------------------------------------------------------------------
# Tiled matmul kernel (1x1 conv): out = [gelu](x @ w), bf16 in, f32 accumulate.
# ----------------------------------------------------------------------------
def _matmul_kernel(x_ref, w_ref, o_ref, *, apply_gelu):
    acc = jnp.dot(x_ref[...], w_ref[...], preferred_element_type=jnp.float32)
    if apply_gelu:
        acc = _gelu(acc)
    o_ref[...] = acc


def linear(x, w, *, apply_gelu=False, tile_m=256):
    """x: (M, K), w: (K, N) -> (M, N) f32.  Tiled over M, grid is 'parallel'."""
    M, K = x.shape
    N = w.shape[1]
    tm = tile_m if M >= tile_m else M          # full block if M is small
    grid_m = pl.cdiv(M, tm)                    # partial last block is masked
    kern = partial(_matmul_kernel, apply_gelu=apply_gelu)
    return pl.pallas_call(
        kern,
        out_shape=jax.ShapeDtypeStruct((M, N), jnp.float32),
        grid=(grid_m,),
        in_specs=[pl.BlockSpec((tm, K), lambda i: (i, 0)),
                  pl.BlockSpec((K, N), lambda i: (0, 0))],
        out_specs=pl.BlockSpec((tm, N), lambda i: (i, 0)),
        compiler_params=pltpu.CompilerParams(
            dimension_semantics=("parallel",)),
    )(x, w)


# ----------------------------------------------------------------------------
# Depthwise 3x3 conv + GELU (channels-last, input pre-padded by 1 pixel).
# ----------------------------------------------------------------------------
def _dwconv3_gelu_kernel(h_ref, w_ref, o_ref, *, H, W):
    acc = h_ref[0, 0:H, 0:W, :] * w_ref[0:1, :]
    for kh in range(3):
        for kw in range(3):
            if kh == 0 and kw == 0:
                continue
            t = kh * 3 + kw
            acc = acc + h_ref[0, kh:kh + H, kw:kw + W, :] * w_ref[t:t + 1, :]
    o_ref[0] = _gelu(acc)


def dwconv3_gelu(h_pad, w_dw):
    """h_pad: (B, H+2, W+2, Ce) f32, w_dw: (9, Ce) -> (B, H, W, Ce) f32."""
    B, Hp, Wp, Ce = h_pad.shape
    H, W = Hp - 2, Wp - 2
    # TODO(synk): for large H*W, add a second grid axis over H row-strips
    # (pre-padded strips) so VMEM per block stays bounded at production sizes.
    kern = partial(_dwconv3_gelu_kernel, H=H, W=W)
    return pl.pallas_call(
        kern,
        out_shape=jax.ShapeDtypeStruct((B, H, W, Ce), jnp.float32),
        grid=(B,),
        in_specs=[pl.BlockSpec((1, Hp, Wp, Ce), lambda b: (b, 0, 0, 0)),
                  pl.BlockSpec((9, Ce), lambda b: (0, 0))],
        out_specs=pl.BlockSpec((1, H, W, Ce), lambda b: (b, 0, 0, 0)),
        compiler_params=pltpu.CompilerParams(
            dimension_semantics=("parallel",)),
    )(h_pad, w_dw)


# ----------------------------------------------------------------------------
# Parameter init (deterministic, synthetic; matmul-friendly layouts).
#   w1   : (C, Ce)   == Conv2d(dim, dim*e, 1).weight[ce, c, 0, 0] transposed
#   w_dw : (9, Ce)   == Conv2d(.., 3, groups=Ce).weight[c, 0, kh, kw] at kh*3+kw
#   w2   : (Ce, C)   == Conv2d(dim*e, dim, 1).weight transposed
# ----------------------------------------------------------------------------
def init_params(key, dim=32, expand=2):
    Ce = dim * expand
    k1, k2, k3 = jax.random.split(key, 3)
    w1 = jax.random.normal(k1, (dim, Ce), jnp.float32) * (dim ** -0.5)
    w_dw = jax.random.normal(k2, (9, Ce), jnp.float32) * (1.0 / 3.0)
    w2 = jax.random.normal(k3, (Ce, dim), jnp.float32) * (Ce ** -0.5)
    return {'w1': w1, 'w_dw': w_dw, 'w2': w2}


# ----------------------------------------------------------------------------
# Full FeedForward forward pass.
# ----------------------------------------------------------------------------
def feed_forward(x, params):
    """x: (B, H, W, C) channels-last.  Returns (B, H, W, C)."""
    B, H, W, C = x.shape
    w1, w_dw, w2 = params['w1'], params['w_dw'], params['w2']
    Ce = w1.shape[1]

    # Zero-pad the input once (equivalent to padding conv1's GELU output,
    # since conv1 is bias-free and GELU(0) == 0).
    xp = jnp.pad(x, ((0, 0), (1, 1), (1, 1), (0, 0)))
    Hp, Wp = H + 2, W + 2

    # 1x1 conv + GELU over all padded pixels: one tiled bf16 MXU matmul.
    h = linear(xp.reshape(B * Hp * Wp, C).astype(jnp.bfloat16),
               w1.astype(jnp.bfloat16), apply_gelu=True)
    h = h.reshape(B, Hp, Wp, Ce)

    # Depthwise 3x3 conv + GELU (f32 VPU path; one image per grid step).
    g = dwconv3_gelu(h, w_dw)

    # 1x1 conv back to dim: tiled bf16 MXU matmul.
    out = linear(g.reshape(B * H * W, Ce).astype(jnp.bfloat16),
                 w2.astype(jnp.bfloat16), apply_gelu=False)
    return out.reshape(B, H, W, C)


if __name__ == "__main__":
    key = jax.random.PRNGKey(0)
    pkey, xkey = jax.random.split(key)

    dim, expand = 32, 2
    B, H, W = 2, 16, 16

    params = init_params(pkey, dim=dim, expand=expand)
    x = jax.random.normal(xkey, (B, H, W, dim), jnp.float32)

    fwd = jax.jit(feed_forward)
    out = jax.block_until_ready(fwd(x, params))

    assert out.shape == (B, H, W, dim)
    assert bool(jnp.all(jnp.isfinite(out)))
    print("KERNEL_OK")
</pallas_src>

<mosaic_0001>
module attributes {stable_mosaic.version = 11 : i64} {
  func.func @_matmul_kernel(%arg0: i32, %arg1: memref<256x32xbf16, #tpu.memory_space<vmem>>, %arg2: memref<32x64xbf16, #tpu.memory_space<vmem>>, %arg3: memref<256x64xf32, #tpu.memory_space<vmem>>) attributes {dimension_semantics = [#tpu.dimension_semantics<parallel>], iteration_bounds = array<i64: 3>, scalar_prefetch = 0 : i64, scratch_operands = 0 : i64, tpu.core_type = #tpu.core_type<tc>, window_params = [{transform_indices = @transform_0, window_bounds = array<i64: 256, 32>}, {pipeline_mode = #tpu.pipeline_mode<synchronous>, transform_indices = @transform_1, window_bounds = array<i64: 32, 64>}, {transform_indices = @transform_2, window_bounds = array<i64: 256, 64>}]} {
    %c0 = arith.constant 0 : index
    %c0_0 = arith.constant 0 : index
    %0 = vector.load %arg1[%c0, %c0_0] : memref<256x32xbf16, #tpu.memory_space<vmem>>, vector<256x32xbf16>
    %c0_1 = arith.constant 0 : index
    %c0_2 = arith.constant 0 : index
    %1 = vector.load %arg2[%c0_1, %c0_2] : memref<32x64xbf16, #tpu.memory_space<vmem>>, vector<32x64xbf16>
    %cst = arith.constant dense<0.000000e+00> : vector<256x64xf32>
    %2 = tpu.matmul %0, %1, %cst {dimension_numbers = #tpu.dot_dimension_numbers<[1], [0], [0], [1], [0, 0, 1, 1], [], []>} : vector<256x32xbf16>, vector<32x64xbf16>, vector<256x64xf32> -> vector<256x64xf32>
    %cst_3 = arith.constant 5.000000e-01 : f32
    %3 = vector.broadcast %cst_3 : f32 to vector<256x64xf32>
    %4 = arith.mulf %3, %2 : vector<256x64xf32>
    %cst_4 = arith.constant 0.707106769 : f32
    %5 = vector.broadcast %cst_4 : f32 to vector<256x64xf32>
    %6 = arith.mulf %2, %5 : vector<256x64xf32>
    %cst_5 = arith.constant 0.000000e+00 : f32
    %7 = vector.broadcast %cst_5 : f32 to vector<256x64xf32>
    %8 = arith.cmpf oge, %6, %7 : vector<256x64xf32>
    %cst_6 = arith.constant 1.000000e+00 : f32
    %cst_7 = arith.constant -1.000000e+00 : f32
    %9 = vector.broadcast %cst_6 : f32 to vector<256x64xf32>
    %10 = vector.broadcast %cst_7 : f32 to vector<256x64xf32>
    %11 = arith.select %8, %9, %10 : vector<256x64xi1>, vector<256x64xf32>
    %12 = math.absf %6 : vector<256x64xf32>
    %cst_8 = arith.constant 0.327591091 : f32
    %13 = vector.broadcast %cst_8 : f32 to vector<256x64xf32>
    %14 = arith.mulf %13, %12 : vector<256x64xf32>
    %cst_9 = arith.constant 1.000000e+00 : f32
    %15 = vector.broadcast %cst_9 : f32 to vector<256x64xf32>
    %16 = arith.addf %15, %14 : vector<256x64xf32>
    %cst_10 = arith.constant 1.000000e+00 : f32
    %17 = vector.broadcast %cst_10 : f32 to vector<256x64xf32>
    %18 = arith.divf %17, %16 : vector<256x64xf32>
    %cst_11 = arith.constant 1.06140542 : f32
    %19 = vector.broadcast %cst_11 : f32 to vector<256x64xf32>
    %20 = arith.mulf %18, %19 : vector<256x64xf32>
    %cst_12 = arith.constant -1.45315206 : f32
    %21 = vector.broadcast %cst_12 : f32 to vector<256x64xf32>
    %22 = arith.addf %21, %20 : vector<256x64xf32>
    %23 = arith.mulf %18, %22 : vector<256x64xf32>
    %cst_13 = arith.constant 1.42141378 : f32
    %24 = vector.broadcast %cst_13 : f32 to vector<256x64xf32>
    %25 = arith.addf %24, %23 : vector<256x64xf32>
    %26 = arith.mulf %18, %25 : vector<256x64xf32>
    %cst_14 = arith.constant -0.284496725 : f32
    %27 = vector.broadcast %cst_14 : f32 to vector<256x64xf32>
    %28 = arith.addf %27, %26 : vector<256x64xf32>
    %29 = arith.mulf %18, %28 : vector<256x64xf32>
    %cst_15 = arith.constant 0.254829586 : f32
    %30 = vector.broadcast %cst_15 : f32 to vector<256x64xf32>
    %31 = arith.addf %30, %29 : vector<256x64xf32>
    %32 = arith.mulf %18, %31 : vector<256x64xf32>
    %cst_16 = arith.constant 0.000000e+00 : f32
    %33 = vector.broadcast %cst_16 : f32 to vector<256x64xf32>
    %34 = arith.subf %33, %12 : vector<256x64xf32>
    %35 = arith.mulf %34, %12 : vector<256x64xf32>
    %36 = math.exp %35 : vector<256x64xf32>
    %37 = arith.mulf %32, %36 : vector<256x64xf32>
    %cst_17 = arith.constant 1.000000e+00 : f32
    %38 = vector.broadcast %cst_17 : f32 to vector<256x64xf32>
    %39 = arith.subf %38, %37 : vector<256x64xf32>
    %40 = arith.mulf %11, %39 : vector<256x64xf32>
    %cst_18 = arith.constant 1.000000e+00 : f32
    %41 = vector.broadcast %cst_18 : f32 to vector<256x64xf32>
    %42 = arith.addf %41, %40 : vector<256x64xf32>
    %43 = arith.mulf %4, %42 : vector<256x64xf32>
    %c0_19 = arith.constant 0 : index
    %c0_20 = arith.constant 0 : index
    %44 = vector.load %arg3[%c0_19, %c0_20] : memref<256x64xf32, #tpu.memory_space<vmem>>, vector<256x64xf32>
    tpu.vector_store %arg3[%c0_19, %c0_20], %43 {strides = array<i32>} : memref<256x64xf32, #tpu.memory_space<vmem>>, vector<256x64xf32>,
    return
  }
  func.func @transform_0(%arg0: i32) -> (i32, i32) {
    %c0_i32 = arith.constant 0 : i32
    %c0_i32_0 = arith.constant 0 : i32
    return %arg0, %c0_i32 : i32, i32
  }
  func.func @transform_1(%arg0: i32) -> (i32, i32) {
    %c0_i32 = arith.constant 0 : i32
    %c0_i32_0 = arith.constant 0 : i32
    %c0_i32_1 = arith.constant 0 : i32
    return %c0_i32, %c0_i32_0 : i32, i32
  }
  func.func @transform_2(%arg0: i32) -> (i32, i32) {
    %c0_i32 = arith.constant 0 : i32
    %c0_i32_0 = arith.constant 0 : i32
    return %arg0, %c0_i32 : i32, i32
  }
}

module attributes {stable_mosaic.version = 11 : i64} {
  func.func @_dwconv3_gelu_kernel(%arg0: i32, %arg1: memref<1x18x18x64xf32, #tpu.memory_space<vmem>>, %arg2: memref<9x64xf32, #tpu.memory_space<vmem>>, %arg3: memref<1x16x16x64xf32, #tpu.memory_space<vmem>>) attributes {dimension_semantics = [#tpu.dimension_semantics<parallel>], iteration_bounds = array<i64: 2>, scalar_prefetch = 0 : i64, scratch_operands = 0 : i64, tpu.core_type = #tpu.core_type<tc>, window_params = [{transform_indices = @transform_0, window_bounds = array<i64: 1, 18, 18, 64>}, {pipeline_mode = #tpu.pipeline_mode<synchronous>, transform_indices = @transform_1, window_bounds = array<i64: 9, 64>}, {transform_indices = @transform_2, window_bounds = array<i64: 1, 16, 16, 64>}]} {
    %c0 = arith.constant 0 : index
    %c0_0 = arith.constant 0 : index
    %c0_1 = arith.constant 0 : index
    %c0_2 = arith.constant 0 : index
    %0 = vector.load %arg1[%c0, %c0_0, %c0_1, %c0_2] : memref<1x18x18x64xf32, #tpu.memory_space<vmem>>, vector<1x16x16x64xf32>
    %1 = vector.shape_cast %0 : vector<1x16x16x64xf32> to vector<16x16x64xf32>
    %c0_3 = arith.constant 0 : index
    %c0_4 = arith.constant 0 : index
    %2 = vector.load %arg2[%c0_3, %c0_4] : memref<9x64xf32, #tpu.memory_space<vmem>>, vector<1x64xf32>
    %3 = vector.shape_cast %2 : vector<1x64xf32> to vector<1x1x64xf32>
    %4 = vector.broadcast %3 : vector<1x1x64xf32> to vector<16x16x64xf32>
    %5 = arith.mulf %1, %4 : vector<16x16x64xf32>
    %c0_5 = arith.constant 0 : index
    %c0_6 = arith.constant 0 : index
    %c1 = arith.constant 1 : index
    %c0_7 = arith.constant 0 : index
    %6 = vector.load %arg1[%c0_5, %c0_6, %c1, %c0_7] : memref<1x18x18x64xf32, #tpu.memory_space<vmem>>, vector<1x16x16x64xf32>
    %7 = vector.shape_cast %6 : vector<1x16x16x64xf32> to vector<16x16x64xf32>
    %c1_8 = arith.constant 1 : index
    %c0_9 = arith.constant 0 : index
    %8 = vector.load %arg2[%c1_8, %c0_9] : memref<9x64xf32, #tpu.memory_space<vmem>>, vector<1x64xf32>
    %9 = vector.shape_cast %8 : vector<1x64xf32> to vector<1x1x64xf32>
    %10 = vector.broadcast %9 : vector<1x1x64xf32> to vector<16x16x64xf32>
    %11 = arith.mulf %7, %10 : vector<16x16x64xf32>
    %12 = arith.addf %5, %11 : vector<16x16x64xf32>
    %c0_10 = arith.constant 0 : index
    %c0_11 = arith.constant 0 : index
    %c2 = arith.constant 2 : index
    %c0_12 = arith.constant 0 : index
    %13 = vector.load %arg1[%c0_10, %c0_11, %c2, %c0_12] : memref<1x18x18x64xf32, #tpu.memory_space<vmem>>, vector<1x16x16x64xf32>
    %14 = vector.shape_cast %13 : vector<1x16x16x64xf32> to vector<16x16x64xf32>
    %c2_13 = arith.constant 2 : index
    %c0_14 = arith.constant 0 : index
    %15 = vector.load %arg2[%c2_13, %c0_14] : memref<9x64xf32, #tpu.memory_space<vmem>>, vector<1x64xf32>
    %16 = vector.shape_cast %15 : vector<1x64xf32> to vector<1x1x64xf32>
    %17 = vector.broadcast %16 : vector<1x1x64xf32> to vector<16x16x64xf32>
    %18 = arith.mulf %14, %17 : vector<16x16x64xf32>
    %19 = arith.addf %12, %18 : vector<16x16x64xf32>
    %c0_15 = arith.constant 0 : index
    %c1_16 = arith.constant 1 : index
    %c0_17 = arith.constant 0 : index
    %c0_18 = arith.constant 0 : index
    %20 = vector.load %arg1[%c0_15, %c1_16, %c0_17, %c0_18] : memref<1x18x18x64xf32, #tpu.memory_space<vmem>>, vector<1x16x16x64xf32>
    %21 = vector.shape_cast %20 : vector<1x16x16x64xf32> to vector<16x16x64xf32>
    %c3 = arith.constant 3 : index
    %c0_19 = arith.constant 0 : index
    %22 = vector.load %arg2[%c3, %c0_19] : memref<9x64xf32, #tpu.memory_space<vmem>>, vector<1x64xf32>
    %23 = vector.shape_cast %22 : vector<1x64xf32> to vector<1x1x64xf32>
    %24 = vector.broadcast %23 : vector<1x1x64xf32> to vector<16x16x64xf32>
    %25 = arith.mulf %21, %24 : vector<16x16x64xf32>
    %26 = arith.addf %19, %25 : vector<16x16x64xf32>
    %c0_20 = arith.constant 0 : index
    %c1_21 = arith.constant 1 : index
    %c1_22 = arith.constant 1 : index
    %c0_23 = arith.constant 0 : index
    %27 = vector.load %arg1[%c0_20, %c1_21, %c1_22, %c0_23] : memref<1x18x18x64xf32, #tpu.memory_space<vmem>>, vector<1x16x16x64xf32>
    %28 = vector.shape_cast %27 : vector<1x16x16x64xf32> to vector<16x16x64xf32>
    %c4 = arith.constant 4 : index
    %c0_24 = arith.constant 0 : index
    %29 = vector.load %arg2[%c4, %c0_24] : memref<9x64xf32, #tpu.memory_space<vmem>>, vector<1x64xf32>
    %30 = vector.shape_cast %29 : vector<1x64xf32> to vector<1x1x64xf32>
    %31 = vector.broadcast %30 : vector<1x1x64xf32> to vector<16x16x64xf32>
    %32 = arith.mulf %28, %31 : vector<16x16x64xf32>
    %33 = arith.addf %26, %32 : vector<16x16x64xf32>
    %c0_25 = arith.constant 0 : index
    %c1_26 = arith.constant 1 : index
    %c2_27 = arith.constant 2 : index
    %c0_28 = arith.constant 0 : index
    %34 = vector.load %arg1[%c0_25, %c1_26, %c2_27, %c0_28] : memref<1x18x18x64xf32, #tpu.memory_space<vmem>>, vector<1x16x16x64xf32>
    %35 = vector.shape_cast %34 : vector<1x16x16x64xf32> to vector<16x16x64xf32>
    %c5 = arith.constant 5 : index
    %c0_29 = arith.constant 0 : index
    %36 = vector.load %arg2[%c5, %c0_29] : memref<9x64xf32, #tpu.memory_space<vmem>>, vector<1x64xf32>
    %37 = vector.shape_cast %36 : vector<1x64xf32> to vector<1x1x64xf32>
    %38 = vector.broadcast %37 : vector<1x1x64xf32> to vector<16x16x64xf32>
    %39 = arith.mulf %35, %38 : vector<16x16x64xf32>
    %40 = arith.addf %33, %39 : vector<16x16x64xf32>
    %c0_30 = arith.constant 0 : index
    %c2_31 = arith.constant 2 : index
    %c0_32 = arith.constant 0 : index
    %c0_33 = arith.constant 0 : index
    %41 = vector.load %arg1[%c0_30, %c2_31, %c0_32, %c0_33] : memref<1x18x18x64xf32, #tpu.memory_space<vmem>>, vector<1x16x16x64xf32>
    %42 = vector.shape_cast %41 : vector<1x16x16x64xf32> to vector<16x16x64xf32>
    %c6 = arith.constant 6 : index
    %c0_34 = arith.constant 0 : index
    %43 = vector.load %arg2[%c6, %c0_34] : memref<9x64xf32, #tpu.memory_space<vmem>>, vector<1x64xf32>
    %44 = vector.shape_cast %43 : vector<1x64xf32> to vector<1x1x64xf32>
    %45 = vector.broadcast %44 : vector<1x1x64xf32> to vector<16x16x64xf32>
    %46 = arith.mulf %42, %45 : vector<16x16x64xf32>
    %47 = arith.addf %40, %46 : vector<16x16x64xf32>
    %c0_35 = arith.constant 0 : index
    %c2_36 = arith.constant 2 : index
    %c1_37 = arith.constant 1 : index
    %c0_38 = arith.constant 0 : index
    %48 = vector.load %arg1[%c0_35, %c2_36, %c1_37, %c0_38] : memref<1x18x18x64xf32, #tpu.memory_space<vmem>>, vector<1x16x16x64xf32>
    %49 = vector.shape_cast %48 : vector<1x16x16x64xf32> to vector<16x16x64xf32>
    %c7 = arith.constant 7 : index
    %c0_39 = arith.constant 0 : index
    %50 = vector.load %arg2[%c7, %c0_39] : memref<9x64xf32, #tpu.memory_space<vmem>>, vector<1x64xf32>
    %51 = vector.shape_cast %50 : vector<1x64xf32> to vector<1x1x64xf32>
    %52 = vector.broadcast %51 : vector<1x1x64xf32> to vector<16x16x64xf32>
    %53 = arith.mulf %49, %52 : vector<16x16x64xf32>
    %54 = arith.addf %47, %53 : vector<16x16x64xf32>
    %c0_40 = arith.constant 0 : index
    %c2_41 = arith.constant 2 : index
    %c2_42 = arith.constant 2 : index
    %c0_43 = arith.constant 0 : index
    %55 = vector.load %arg1[%c0_40, %c2_41, %c2_42, %c0_43] : memref<1x18x18x64xf32, #tpu.memory_space<vmem>>, vector<1x16x16x64xf32>
    %56 = vector.shape_cast %55 : vector<1x16x16x64xf32> to vector<16x16x64xf32>
    %c8 = arith.constant 8 : index
    %c0_44 = arith.constant 0 : index
    %57 = vector.load %arg2[%c8, %c0_44] : memref<9x64xf32, #tpu.memory_space<vmem>>, vector<1x64xf32>
    %58 = vector.shape_cast %57 : vector<1x64xf32> to vector<1x1x64xf32>
    %59 = vector.broadcast %58 : vector<1x1x64xf32> to vector<16x16x64xf32>
    %60 = arith.mulf %56, %59 : vector<16x16x64xf32>
    %61 = arith.addf %54, %60 : vector<16x16x64xf32>
    %cst = arith.constant 5.000000e-01 : f32
    %62 = vector.broadcast %cst : f32 to vector<16x16x64xf32>
    %63 = arith.mulf %62, %61 : vector<16x16x64xf32>
    %cst_45 = arith.constant 0.707106769 : f32
    %64 = vector.broadcast %cst_45 : f32 to vector<16x16x64xf32>
    %65 = arith.mulf %61, %64 : vector<16x16x64xf32>
    %cst_46 = arith.constant 0.000000e+00 : f32
    %66 = vector.broadcast %cst_46 : f32 to vector<16x16x64xf32>
    %67 = arith.cmpf oge, %65, %66 : vector<16x16x64xf32>
    %cst_47 = arith.constant 1.000000e+00 : f32
    %cst_48 = arith.constant -1.000000e+00 : f32
    %68 = vector.broadcast %cst_47 : f32 to vector<16x16x64xf32>
    %69 = vector.broadcast %cst_48 : f32 to vector<16x16x64xf32>
    %70 = arith.select %67, %68, %69 : vector<16x16x64xi1>, vector<16x16x64xf32>
    %71 = math.absf %65 : vector<16x16x64xf32>
    %cst_49 = arith.constant 0.327591091 : f32
    %72 = vector.broadcast %cst_49 : f32 to vector<16x16x64xf32>
    %73 = arith.mulf %72, %71 : vector<16x16x64xf32>
    %cst_50 = arith.constant 1.000000e+00 : f32
    %74 = vector.broadcast %cst_50 : f32 to vector<16x16x64xf32>
    %75 = arith.addf %74, %73 : vector<16x16x64xf32>
    %cst_51 = arith.constant 1.000000e+00 : f32
    %76 = vector.broadcast %cst_51 : f32 to vector<16x16x64xf32>
    %77 = arith.divf %76, %75 : vector<16x16x64xf32>
    %cst_52 = arith.constant 1.06140542 : f32
    %78 = vector.broadcast %cst_52 : f32 to vector<16x16x64xf32>
    %79 = arith.mulf %77, %78 : vector<16x16x64xf32>
    %cst_53 = arith.constant -1.45315206 : f32
    %80 = vector.broadcast %cst_53 : f32 to vector<16x16x64xf32>
    %81 = arith.addf %80, %79 : vector<16x16x64xf32>
    %82 = arith.mulf %77, %81 : vector<16x16x64xf32>
    %cst_54 = arith.constant 1.42141378 : f32
    %83 = vector.broadcast %cst_54 : f32 to vector<16x16x64xf32>
    %84 = arith.addf %83, %82 : vector<16x16x64xf32>
    %85 = arith.mulf %77, %84 : vector<16x16x64xf32>
    %cst_55 = arith.constant -0.284496725 : f32
    %86 = vector.broadcast %cst_55 : f32 to vector<16x16x64xf32>
    %87 = arith.addf %86, %85 : vector<16x16x64xf32>
    %88 = arith.mulf %77, %87 : vector<16x16x64xf32>
    %cst_56 = arith.constant 0.254829586 : f32
    %89 = vector.broadcast %cst_56 : f32 to vector<16x16x64xf32>
    %90 = arith.addf %89, %88 : vector<16x16x64xf32>
    %91 = arith.mulf %77, %90 : vector<16x16x64xf32>
    %cst_57 = arith.constant 0.000000e+00 : f32
    %92 = vector.broadcast %cst_57 : f32 to vector<16x16x64xf32>
    %93 = arith.subf %92, %71 : vector<16x16x64xf32>
    %94 = arith.mulf %93, %71 : vector<16x16x64xf32>
    %95 = math.exp %94 : vector<16x16x64xf32>
    %96 = arith.mulf %91, %95 : vector<16x16x64xf32>
    %cst_58 = arith.constant 1.000000e+00 : f32
    %97 = vector.broadcast %cst_58 : f32 to vector<16x16x64xf32>
    %98 = arith.subf %97, %96 : vector<16x16x64xf32>
    %99 = arith.mulf %70, %98 : vector<16x16x64xf32>
    %cst_59 = arith.constant 1.000000e+00 : f32
    %100 = vector.broadcast %cst_59 : f32 to vector<16x16x64xf32>
    %101 = arith.addf %100, %99 : vector<16x16x64xf32>
    %102 = arith.mulf %63, %101 : vector<16x16x64xf32>
    %c0_60 = arith.constant 0 : index
    %c0_61 = arith.constant 0 : index
    %c0_62 = arith.constant 0 : index
    %c0_63 = arith.constant 0 : index
    %103 = vector.load %arg3[%c0_60, %c0_61, %c0_62, %c0_63] : memref<1x16x16x64xf32, #tpu.memory_space<vmem>>, vector<1x16x16x64xf32>
    %104 = vector.shape_cast %103 : vector<1x16x16x64xf32> to vector<16x16x64xf32>
    %105 = vector.shape_cast %102 : vector<16x16x64xf32> to vector<1x16x16x64xf32>
    tpu.vector_store %arg3[%c0_60, %c0_61, %c0_62, %c0_63], %105 {strides = array<i32>} : memref<1x16x16x64xf32, #tpu.memory_space<vmem>>, vector<1x16x16x64xf32>,
    return
  }
  func.func @transform_0(%arg0: i32) -> (i32, i32, i32, i32) {
    %c0_i32 = arith.constant 0 : i32
    %c0_i32_0 = arith.constant 0 : i32
    %c0_i32_1 = arith.constant 0 : i32
    %c0_i32_2 = arith.constant 0 : i32
    return %arg0, %c0_i32, %c0_i32_0, %c0_i32_1 : i32, i32, i32, i32
  }
  func.func @transform_1(%arg0: i32) -> (i32, i32) {
    %c0_i32 = arith.constant 0 : i32
    %c0_i32_0 = arith.constant 0 : i32
    %c0_i32_1 = arith.constant 0 : i32
    return %c0_i32, %c0_i32_0 : i32, i32
  }
  func.func @transform_2(%arg0: i32) -> (i32, i32, i32, i32) {
    %c0_i32 = arith.constant 0 : i32
    %c0_i32_0 = arith.constant 0 : i32
    %c0_i32_1 = arith.constant 0 : i32
    %c0_i32_2 = arith.constant 0 : i32
    return %arg0, %c0_i32, %c0_i32_0, %c0_i32_1 : i32, i32, i32, i32
  }
}

module attributes {stable_mosaic.version = 11 : i64} {
  func.func @_matmul_kernel(%arg0: i32, %arg1: memref<256x64xbf16, #tpu.memory_space<vmem>>, %arg2: memref<64x32xbf16, #tpu.memory_space<vmem>>, %arg3: memref<256x32xf32, #tpu.memory_space<vmem>>) attributes {dimension_semantics = [#tpu.dimension_semantics<parallel>], iteration_bounds = array<i64: 2>, scalar_prefetch = 0 : i64, scratch_operands = 0 : i64, tpu.core_type = #tpu.core_type<tc>, window_params = [{transform_indices = @transform_0, window_bounds = array<i64: 256, 64>}, {pipeline_mode = #tpu.pipeline_mode<synchronous>, transform_indices = @transform_1, window_bounds = array<i64: 64, 32>}, {transform_indices = @transform_2, window_bounds = array<i64: 256, 32>}]} {
    %c0 = arith.constant 0 : index
    %c0_0 = arith.constant 0 : index
    %0 = vector.load %arg1[%c0, %c0_0] : memref<256x64xbf16, #tpu.memory_space<vmem>>, vector<256x64xbf16>
    %c0_1 = arith.constant 0 : index
    %c0_2 = arith.constant 0 : index
    %1 = vector.load %arg2[%c0_1, %c0_2] : memref<64x32xbf16, #tpu.memory_space<vmem>>, vector<64x32xbf16>
    %cst = arith.constant dense<0.000000e+00> : vector<256x32xf32>
    %2 = tpu.matmul %0, %1, %cst {dimension_numbers = #tpu.dot_dimension_numbers<[1], [0], [0], [1], [0, 0, 1, 1], [], []>} : vector<256x64xbf16>, vector<64x32xbf16>, vector<256x32xf32> -> vector<256x32xf32>
    %c0_3 = arith.constant 0 : index
    %c0_4 = arith.constant 0 : index
    %3 = vector.load %arg3[%c0_3, %c0_4] : memref<256x32xf32, #tpu.memory_space<vmem>>, vector<256x32xf32>
    tpu.vector_store %arg3[%c0_3, %c0_4], %2 {strides = array<i32>} : memref<256x32xf32, #tpu.memory_space<vmem>>, vector<256x32xf32>,
    return
  }
  func.func @transform_0(%arg0: i32) -> (i32, i32) {
    %c0_i32 = arith.constant 0 : i32
    %c0_i32_0 = arith.constant 0 : i32
    return %arg0, %c0_i32 : i32, i32
  }
  func.func @transform_1(%arg0: i32) -> (i32, i32) {
    %c0_i32 = arith.constant 0 : i32
    %c0_i32_0 = arith.constant 0 : i32
    %c0_i32_1 = arith.constant 0 : i32
    return %c0_i32, %c0_i32_0 : i32, i32
  }
  func.func @transform_2(%arg0: i32) -> (i32, i32) {
    %c0_i32 = arith.constant 0 : i32
    %c0_i32_0 = arith.constant 0 : i32
    return %arg0, %c0_i32 : i32, i32
  }
}

</mosaic_0001>

<llo_original>
// kernel: feed_forward.3
$region0: #{feed_forward.3}
  #allocation0 [shape = 'u32[]', space=smem, size = 0x4, offset = 0x4, fixed_abs, tag = 'smem constant byte address 0x4 - core index']
  #allocation1 [shape = 'u32[144,128]{1,0:T(1,128)}', space=vmem, size = 0x12000, scoped, tag = 'internal scratch']
  %s0 = inlined_call_operand.vmem [shape: bf16[648,32], index: 0, kind: input, shape index: {}]
  %s1 = inlined_call_operand.vmem [shape: bf16[32,64], index: 1, kind: input, shape index: {}]
  %s2 = inlined_call_operand.vmem [shape: f32[648,64], index: 2, kind: output, shape index: {}]
  %s3 = sld [smem:[#allocation0]]
  $region89: #{feed_forward.3} parent=0
    _
  %s5 = ssub.s32 1, %s3
  %s6 = scalar_select 0, %s5, %s3
  $region1: #{feed_forward.3} parent=0
    #allocation2 [shape = 'u8[262144]{0}', space=vmem, size = 0x40000, scoped, tag = 'output window, operand 0']
    loop: start=0, step=1, limit=5
    $region2: #{feed_forward.3} parent=1 // loop_pre_header
      _
    $region3: #{feed_forward.3} parent=1 // loop_header
      %s8 = sphi 0, %s12
      %p9 = scmp.ge.s32.totalorder %s8, 5
      %s18 = sphi 0, %s20
      %s21 = sphi 0, %s18
      %s22 = sphi 0, %s21
      %s38 = sphi 0, %s22
      %s42 = sphi 0, %s42
      %s44 = sphi 0, %s42
      %s45 = sphi 0, %s44
      %s59 = sphi 0, %s45
      %s65 = sphi 0, %s67
      %s68 = sphi 0, %s65
      %s69 = sphi 0, %s68
      %s85 = sphi 0, %s69
    $region4: #{feed_forward.3} parent=1 // loop_header_branch
      %11 = sbr.rel (%p9) target = $region8
    $region5: #{feed_forward.3} parent=1 // loop_body
      %s13 = ssub.s32 %s8, 1
      %s14 = ssub.s32 %s8, 2
      %s15 = sadd.s32 %s8, 1
      %s16 = ssub.s32 %s8, %s15
      %p17 = scmp.eq.s32.totalorder %s16, 0
      %s19 = sadd.s32 %s18, 1
      %s20 = scalar_select %p17, %s18, %s19
      %p23 = pneg %p17
      %p24 = scmp.eq.s32.totalorder %s8, 2
      %p25 = por %p23, %p24
      %p26 = scmp.ne.s32.totalorder %s18, %s21
      %p27 = scmp.eq.s32.totalorder %s8, 0
      %p28 = por %p26, %p27
      %p29 = scmp.ne.s32.totalorder %s18, %s21
      %p30 = scmp.eq.s32.totalorder %s13, 2
      %p31 = por %p29, %p30
      %p32 = scmp.ne.s32.totalorder %s21, %s22
      %p33 = scmp.eq.s32.totalorder %s13, 0
      %p34 = por %p32, %p33
      %p35 = scmp.ne.s32.totalorder %s21, %s22
      %p36 = scmp.eq.s32.totalorder %s14, 2
      %p37 = por %p35, %p36
      %p39 = scmp.ne.s32.totalorder %s22, %s38
      %p40 = scmp.eq.s32.totalorder %s14, 0
      %p41 = por %p39, %p40
      %s43 = sadd.s32 %s42, 1
      %p46 = scmp.eq.s32.totalorder %s8, 2
      %p47 = scmp.ne.s32.totalorder %s42, %s44
      %p48 = scmp.eq.s32.totalorder %s8, 0
      %p49 = por %p47, %p48
      %p50 = scmp.ne.s32.totalorder %s42, %s44
      %p51 = scmp.eq.s32.totalorder %s13, 2
      %p52 = por %p50, %p51
      %p53 = scmp.ne.s32.totalorder %s44, %s45
      %p54 = scmp.eq.s32.totalorder %s13, 0
      %p55 = por %p53, %p54
      %p56 = scmp.ne.s32.totalorder %s44, %s45
      %p57 = scmp.eq.s32.totalorder %s14, 2
      %p58 = por %p56, %p57
      %p60 = scmp.ne.s32.totalorder %s45, %s59
      %p61 = scmp.eq.s32.totalorder %s14, 0
      %p62 = por %p60, %p61
      %s63 = ssub.s32 %s8, %s15
      %p64 = scmp.eq.s32.totalorder %s63, 0
      %s66 = sadd.s32 %s65, 1
      %s67 = scalar_select %p64, %s65, %s66
      %p70 = pneg %p64
      %p71 = scmp.eq.s32.totalorder %s8, 2
      %p72 = por %p70, %p71
      %p73 = scmp.ne.s32.totalorder %s65, %s68
      %p74 = scmp.eq.s32.totalorder %s8, 0
      %p75 = por %p73, %p74
      %p76 = scmp.ne.s32.totalorder %s65, %s68
      %p77 = scmp.eq.s32.totalorder %s13, 2
      %p78 = por %p76, %p77
      %p79 = scmp.ne.s32.totalorder %s68, %s69
      %p80 = scmp.eq.s32.totalorder %s13, 0
      %p81 = por %p79, %p80
      %p82 = scmp.ne.s32.totalorder %s68, %s69
      %p83 = scmp.eq.s32.totalorder %s14, 2
      %p84 = por %p82, %p83
      %p86 = scmp.ne.s32.totalorder %s69, %s85
      %p87 = scmp.eq.s32.totalorder %s14, 0
      %p88 = por %p86, %p87
      %p89 = scmp.le.s32.totalorder 1, %s8
      %p90 = scmp.lt.s32.totalorder %s8, 4
      %p91 = pnand %p89, %p90
      %p92 = pneg %p91
      // Predicated region
      $region9: #{feed_forward.3} parent=5 // pred_check
        _
      $region10: #{feed_forward.3} parent=5 // pred_check_branch
        %94 = sbr.rel (%p91) target = $region12
      $region11: #{feed_forward.3} parent=5 // pred_region
        %s95 = ssub.s32 %s8, 1
        // Predicated region
        $region13: #{feed_forward.3} parent=11 // pred_check
          %p96 = pneg %p55
        $region14: #{feed_forward.3} parent=11 // pred_check_branch
          %98 = sbr.rel (%p96) target = $region16
        $region15: #{feed_forward.3} parent=11 // pred_region
          _
        $region16: #{feed_forward.3} parent=11 // pred_fallthru
          _
      $region12: #{feed_forward.3} parent=5 // pred_fallthru
        _
      %p99 = scmp.lt.s32.totalorder %s8, 3
      // Predicated region
      $region17: #{feed_forward.3} parent=5 // pred_check
        %p100 = pneg %p99
      $region18: #{feed_forward.3} parent=5 // pred_check_branch
        %102 = sbr.rel (%p100) target = $region20
      $region19: #{feed_forward.3} parent=5 // pred_region
        // Predicated region
        $region21: #{feed_forward.3} parent=19 // pred_check
          %p103 = pneg %p28
        $region22: #{feed_forward.3} parent=19 // pred_check_branch
          %105 = sbr.rel (%p103) target = $region24
        $region23: #{feed_forward.3} parent=19 // pred_region
          %s106 = smul.u32 32, %s8
          %s107 = ssub.s32 81, %s106
          %p108 = scmp.lt.s32.totalorder %s107, 32
          %s109 = scalar_select %p108, %s107, 32
          %s110 = smul.u32 64, %s109
          %p111 = scmp.lt.s32.totalorder %s106, 80
          %s112 = scalar_select %p111, %s106, 80
          %s113 = smul.addr %s112, 4
          %s114 = scalar_lea.vmem %s0, %s113
          %s115 = smul.u32 32, %s8
          %s116 = ssub.s32 81, %s115
          %p117 = scmp.lt.s32.totalorder %s116, 32
          %s118 = scalar_select %p117, %s116, 32
          %s119 = smul.u32 64, %s118
        $region24: #{feed_forward.3} parent=19 // pred_fallthru
          _
      $region20: #{feed_forward.3} parent=5 // pred_fallthru
        _
      %p120 = scmp.le.s32.totalorder 1, %s8
      %p121 = scmp.lt.s32.totalorder %s8, 4
      %p122 = pnand %p120, %p121
      %p123 = pneg %p122
      // Predicated region
      $region25: #{feed_forward.3} parent=5 // pred_check
        _
      $region26: #{feed_forward.3} parent=5 // pred_check_branch
        %125 = sbr.rel (%p122) target = $region28
      $region27: #{feed_forward.3} parent=5 // pred_region
        %s126 = ssub.s32 %s8, 1
        %s127 = smul.u32 32, %s13
        %s128 = ssub.s32 81, %s127
        %p129 = scmp.lt.s32.totalorder %s128, 32
        %s130 = scalar_select %p129, %s128, 32
        %s131 = smul.u32 64, %s130
        %p132 = scmp.lt.s32.totalorder %s127, 80
        %s133 = scalar_select %p132, %s127, 80
        %s134 = smul.addr %s133, 4
        %s135 = scalar_lea.vmem %s0, %s134
        %p136 = pneg %p34
        %p137 = pneg %p31
        %p138 = pneg %p55
        %p139 = pneg %p52
        %p140 = pneg %p81
        %p141 = pneg %p78
        %s142 = sand.u32 %s68, 1
        %s143 = sand.u32 %s68, 1
        %s144 = smul.addr %s143, 256
        %s145 = scalar_lea.vmem [#allocation2], %s144
        %s146 = smul.u32 32, %s13
        %s147 = ssub.s32 81, %s146
        %p148 = scmp.lt.s32.totalorder %s147, 32
        %s149 = scalar_select %p148, %s147, 32
        %s150 = smul.u32 64, %s149
        %p151 = scmp.lt.s32.totalorder %s146, 80
        %s152 = scalar_select %p151, %s146, 80
        %s153 = smul.addr %s152, 4
        %s154 = scalar_lea.vmem %s0, %s153
        %s155 = smul.u32 32, %s13
        %s156 = ssub.s32 81, %s155
        %p157 = scmp.lt.s32.totalorder %s156, 32
        %s158 = scalar_select %p157, %s156, 32
        %s159 = smul.u32 64, %s158
        %s160 = smul.u32 32, %s13
        %s161 = ssub.s32 81, %s160
        %p162 = scmp.lt.s32.totalorder %s161, 32
        %s163 = scalar_select %p162, %s161, 32
        %s164 = smul.u32 128, %s163
        %v166 = vld [vmem:[%s154] sm:$0xf]
        %v167 = vld [vmem:[%s154 + $0x4] sm:$0xf]
        %v168 = vld [vmem:[%s154 + $0x8] sm:$0xf]
        %v169 = vld [vmem:[%s154 + $0xc] sm:$0xf]
        %v170 = vld [vmem:[%s154 + $0x10] sm:$0xf]
        %v171 = vld [vmem:[%s154 + $0x14] sm:$0xf]
        %v172 = vld [vmem:[%s154 + $0x18] sm:$0xf]
        %v173 = vld [vmem:[%s154 + $0x1c] sm:$0xf]
        %v174 = vld [vmem:[%s154 + $0x20] sm:$0xf]
        %v175 = vld [vmem:[%s154 + $0x24] sm:$0xf]
        %v176 = vld [vmem:[%s154 + $0x28] sm:$0xf]
        %v177 = vld [vmem:[%s154 + $0x2c] sm:$0xf]
        %v178 = vld [vmem:[%s154 + $0x30] sm:$0xf]
        %v179 = vld [vmem:[%s154 + $0x34] sm:$0xf]
        %v180 = vld [vmem:[%s154 + $0x38] sm:$0xf]
        %v181 = vld [vmem:[%s154 + $0x3c] sm:$0xf]
        %v182 = vld [vmem:[%s154 + $0x40] sm:$0xf]
        %v183 = vld [vmem:[%s154 + $0x44] sm:$0xf]
        %v184 = vld [vmem:[%s154 + $0x48] sm:$0xf]
        %v185 = vld [vmem:[%s154 + $0x4c] sm:$0xf]
        %v186 = vld [vmem:[%s154 + $0x50] sm:$0xf]
        %v187 = vld [vmem:[%s154 + $0x54] sm:$0xf]
        %v188 = vld [vmem:[%s154 + $0x58] sm:$0xf]
        %v189 = vld [vmem:[%s154 + $0x5c] sm:$0xf]
        %v190 = vld [vmem:[%s154 + $0x60] sm:$0xf]
        %v191 = vld [vmem:[%s154 + $0x64] sm:$0xf]
        %v192 = vld [vmem:[%s154 + $0x68] sm:$0xf]
        %v193 = vld [vmem:[%s154 + $0x6c] sm:$0xf]
        %v194 = vld [vmem:[%s154 + $0x70] sm:$0xf]
        %v195 = vld [vmem:[%s154 + $0x74] sm:$0xf]
        %v196 = vld [vmem:[%s154 + $0x78] sm:$0xf]
        %v197 = vld [vmem:[%s154 + $0x7c] sm:$0xf]
        %v198 = vld [vmem:[%s1] sm:$0xf]
        %v199 = vld [vmem:[%s1 + $0x4] sm:$0xf]
        %v200 = vld [vmem:[%s1 + $0x8] sm:$0xf]
        %v201 = vld [vmem:[%s1 + $0xc] sm:$0xf]
        %v234 = vunpack.c.l.b16 %v166
        %v235 = vunpack.c.l.b16 %v167
        %v236 = vunpack.c.l.b16 %v168
        %v237 = vunpack.c.l.b16 %v169
        %v238 = vunpack.c.l.b16 %v170
        %v239 = vunpack.c.l.b16 %v171
        %v240 = vunpack.c.l.b16 %v172
        %v241 = vunpack.c.l.b16 %v173
        %v242 = vunpack.c.l.b16 %v174
        %v243 = vunpack.c.l.b16 %v175
        %v244 = vunpack.c.l.b16 %v176
        %v245 = vunpack.c.l.b16 %v177
        %v246 = vunpack.c.l.b16 %v178
        %v247 = vunpack.c.l.b16 %v179
        %v248 = vunpack.c.l.b16 %v180
        %v249 = vunpack.c.l.b16 %v181
        %v250 = vunpack.c.l.b16 %v182
        %v251 = vunpack.c.l.b16 %v183
        %v252 = vunpack.c.l.b16 %v184
        %v253 = vunpack.c.l.b16 %v185
        %v254 = vunpack.c.l.b16 %v186
        %v255 = vunpack.c.l.b16 %v187
        %v256 = vunpack.c.l.b16 %v188
        %v257 = vunpack.c.l.b16 %v189
        %v258 = vunpack.c.l.b16 %v190
        %v259 = vunpack.c.l.b16 %v191
        %v260 = vunpack.c.l.b16 %v192
        %v261 = vunpack.c.l.b16 %v193
        %v262 = vunpack.c.l.b16 %v194
        %v263 = vunpack.c.l.b16 %v195
        %v264 = vunpack.c.l.b16 %v196
        %v265 = vunpack.c.l.b16 %v197
        %v266 = vpack.c.b16 %v235, %v234
        %v267 = vpack.c.b16 %v237, %v236
        %v268 = vpack.c.b16 %v239, %v238
        %v269 = vpack.c.b16 %v241, %v240
        %v270 = vpack.c.b16 %v243, %v242
        %v271 = vpack.c.b16 %v245, %v244
        %v272 = vpack.c.b16 %v247, %v246
        %v273 = vpack.c.b16 %v249, %v248
        %v274 = vpack.c.b16 %v251, %v250
        %v275 = vpack.c.b16 %v253, %v252
        %v276 = vpack.c.b16 %v255, %v254
        %v277 = vpack.c.b16 %v257, %v256
        %v278 = vpack.c.b16 %v259, %v258
        %v279 = vpack.c.b16 %v261, %v260
        %v280 = vpack.c.b16 %v263, %v262
        %v281 = vpack.c.b16 %v265, %v264
        %v286 = vunpack.c.l.b16 %v198
        %v287 = vunpack.c.l.b16 %v199
        %v288 = vunpack.c.l.b16 %v200
        %v289 = vunpack.c.l.b16 %v201
        %v290 = vpack.c.b16 %v287, %v286
        %v291 = vpack.c.b16 %v289, %v288
        %vm294 = vcmask 261120
        %v296 = vsel %vm294, %v266, 0
        %v299 = vsel %vm294, %v267, 0
        %v302 = vsel %vm294, %v268, 0
        %v305 = vsel %vm294, %v269, 0
        %v308 = vsel %vm294, %v270, 0
        %v311 = vsel %vm294, %v271, 0
        %v314 = vsel %vm294, %v272, 0
        %v317 = vsel %vm294, %v273, 0
        %v320 = vsel %vm294, %v274, 0
        %v323 = vsel %vm294, %v275, 0
        %v326 = vsel %vm294, %v276, 0
        %v329 = vsel %vm294, %v277, 0
        %v332 = vsel %vm294, %v278, 0
        %v335 = vsel %vm294, %v279, 0
        %v338 = vsel %vm294, %v280, 0
        %v341 = vsel %vm294, %v281, 0
        %343 = vmatprep.subr.bf16.mxu0 0
        %344 = vmatpush1.bf16.msra.mxu0 0
        %345 = vmatprep.subr.bf16.mxu0 0
        %346 = vmatpush1.bf16.msra.mxu0 0
        %347 = vmatprep.subr.bf16.mxu0 0
        %348 = vmatpush1.bf16.msra.mxu0 0
        %349 = vmatprep.subr.bf16.mxu0 0
        %350 = vmatpush1.bf16.msra.mxu0 0
        %351 = vmatprep.subr.bf16.mxu0 0
        %352 = vmatpush1.bf16.msra.mxu0 0
        %353 = vmatprep.subr.bf16.mxu0 0
        %354 = vmatpush1.bf16.msra.mxu0 0
        %355 = vmatprep.subr.bf16.mxu0 0
        %356 = vmatpush1.bf16.msra.mxu0 %v291
        %357 = vmatprep.subr.bf16.mxu0 0
        %358 = vmatpush1.bf16.msra.mxu0 %v290
        %359 = vmatprep.subr.bf16.mxu0 0
        %360 = vmatpush2.bf16.msra.mxu0 0
        %361 = vmatprep.subr.bf16.mxu0 0
        %362 = vmatpush2.bf16.msra.mxu0 0
        %363 = vmatprep.subr.bf16.mxu0 0
        %364 = vmatpush2.bf16.msra.mxu0 0
        %365 = vmatprep.subr.bf16.mxu0 0
        %366 = vmatpush2.bf16.msra.mxu0 0
        %367 = vmatprep.subr.bf16.mxu0 0
        %368 = vmatpush2.bf16.msra.mxu0 0
        %369 = vmatprep.subr.bf16.mxu0 0
        %370 = vmatpush2.bf16.msra.mxu0 0
        %371 = vmatprep.subr.bf16.mxu0 0
        %372 = vmatpush2.bf16.msra.mxu0 0
        %373 = vmatprep.subr.bf16.mxu0 0
        %374 = vmatpush2.bf16.msra.mxu0 0
        %375 = vmatprep.mubr.bf16.mxu0 0
        %376 = vmatmul.mubr.bf16.gmra.mxu0 %v296
        %v377 = vpop.f32.mrf.mxu0
        %v378 = vadd.f32 0.0, %v377
        %v379 = vpop.f32.mrf.mxu0
        %v380 = vpop.f32.mrf.mxu0
        %v381 = vadd.f32 0.0, %v380
        %v382 = vpop.f32.mrf.mxu0
        %383 = vmatprep.mubr.bf16.mxu0 0
        %384 = vmatmul.mubr.bf16.gmra.mxu0 %v299
        %v385 = vpop.f32.mrf.mxu0
        %v386 = vadd.f32 0.0, %v385
        %v387 = vpop.f32.mrf.mxu0
        %v388 = vpop.f32.mrf.mxu0
        %v389 = vadd.f32 0.0, %v388
        %v390 = vpop.f32.mrf.mxu0
        %391 = vmatprep.mubr.bf16.mxu0 0
        %392 = vmatmul.mubr.bf16.gmra.mxu0 %v302
        %v393 = vpop.f32.mrf.mxu0
        %v394 = vadd.f32 0.0, %v393
        %v395 = vpop.f32.mrf.mxu0
        %v396 = vpop.f32.mrf.mxu0
        %v397 = vadd.f32 0.0, %v396
        %v398 = vpop.f32.mrf.mxu0
        %399 = vmatprep.mubr.bf16.mxu0 0
        %400 = vmatmul.mubr.bf16.gmra.mxu0 %v305
        %v401 = vpop.f32.mrf.mxu0
        %v402 = vadd.f32 0.0, %v401
        %v403 = vpop.f32.mrf.mxu0
        %v404 = vpop.f32.mrf.mxu0
        %v405 = vadd.f32 0.0, %v404
        %v406 = vpop.f32.mrf.mxu0
        %407 = vmatprep.mubr.bf16.mxu0 0
        %408 = vmatmul.mubr.bf16.gmra.mxu0 %v308
        %v409 = vpop.f32.mrf.mxu0
        %v410 = vadd.f32 0.0, %v409
        %v411 = vpop.f32.mrf.mxu0
        %v412 = vpop.f32.mrf.mxu0
        %v413 = vadd.f32 0.0, %v412
        %v414 = vpop.f32.mrf.mxu0
        %415 = vmatprep.mubr.bf16.mxu0 0
        %416 = vmatmul.mubr.bf16.gmra.mxu0 %v311
        %v417 = vpop.f32.mrf.mxu0
        %v418 = vadd.f32 0.0, %v417
        %v419 = vpop.f32.mrf.mxu0
        %v420 = vpop.f32.mrf.mxu0
        %v421 = vadd.f32 0.0, %v420
        %v422 = vpop.f32.mrf.mxu0
        %423 = vmatprep.mubr.bf16.mxu0 0
        %424 = vmatmul.mubr.bf16.gmra.mxu0 %v314
        %v425 = vpop.f32.mrf.mxu0
        %v426 = vadd.f32 0.0, %v425
        %v427 = vpop.f32.mrf.mxu0
        %v428 = vpop.f32.mrf.mxu0
        %v429 = vadd.f32 0.0, %v428
        %v430 = vpop.f32.mrf.mxu0
        %431 = vmatprep.mubr.bf16.mxu0 0
        %432 = vmatmul.mubr.bf16.gmra.mxu0 %v317
        %v433 = vpop.f32.mrf.mxu0
        %v434 = vadd.f32 0.0, %v433
        %v435 = vpop.f32.mrf.mxu0
        %v436 = vpop.f32.mrf.mxu0
        %v437 = vadd.f32 0.0, %v436
        %v438 = vpop.f32.mrf.mxu0
        %439 = vmatprep.mubr.bf16.mxu0 0
        %440 = vmatmul.mubr.bf16.gmra.mxu0 %v320
        %v441 = vpop.f32.mrf.mxu0
        %v442 = vadd.f32 0.0, %v441
        %v443 = vpop.f32.mrf.mxu0
        %v444 = vpop.f32.mrf.mxu0
        %v445 = vadd.f32 0.0, %v444
        %v446 = vpop.f32.mrf.mxu0
        %447 = vmatprep.mubr.bf16.mxu0 0
        %448 = vmatmul.mubr.bf16.gmra.mxu0 %v323
        %v449 = vpop.f32.mrf.mxu0
        %v450 = vadd.f32 0.0, %v449
        %v451 = vpop.f32.mrf.mxu0
        %v452 = vpop.f32.mrf.mxu0
        %v453 = vadd.f32 0.0, %v452
        %v454 = vpop.f32.mrf.mxu0
        %455 = vmatprep.mubr.bf16.mxu0 0
        %456 = vmatmul.mubr.bf16.gmra.mxu0 %v326
        %v457 = vpop.f32.mrf.mxu0
        %v458 = vadd.f32 0.0, %v457
        %v459 = vpop.f32.mrf.mxu0
        %v460 = vpop.f32.mrf.mxu0
        %v461 = vadd.f32 0.0, %v460
        %v462 = vpop.f32.mrf.mxu0
        %463 = vmatprep.mubr.bf16.mxu0 0
        %464 = vmatmul.mubr.bf16.gmra.mxu0 %v329
        %v465 = vpop.f32.mrf.mxu0
        %v466 = vadd.f32 0.0, %v465
        %v467 = vpop.f32.mrf.mxu0
        %v468 = vpop.f32.mrf.mxu0
        %v469 = vadd.f32 0.0, %v468
        %v470 = vpop.f32.mrf.mxu0
        %471 = vmatprep.mubr.bf16.mxu0 0
        %472 = vmatmul.mubr.bf16.gmra.mxu0 %v332
        %v473 = vpop.f32.mrf.mxu0
        %v474 = vadd.f32 0.0, %v473
        %v475 = vpop.f32.mrf.mxu0
        %v476 = vpop.f32.mrf.mxu0
        %v477 = vadd.f32 0.0, %v476
        %v478 = vpop.f32.mrf.mxu0
        %479 = vmatprep.mubr.bf16.mxu0 0
        %480 = vmatmul.mubr.bf16.gmra.mxu0 %v335
        %v481 = vpop.f32.mrf.mxu0
        %v482 = vadd.f32 0.0, %v481
        %v483 = vpop.f32.mrf.mxu0
        %v484 = vpop.f32.mrf.mxu0
        %v485 = vadd.f32 0.0, %v484
        %v486 = vpop.f32.mrf.mxu0
        %487 = vmatprep.mubr.bf16.mxu0 0
        %488 = vmatmul.mubr.bf16.gmra.mxu0 %v338
        %v489 = vpop.f32.mrf.mxu0
        %v490 = vadd.f32 0.0, %v489
        %v491 = vpop.f32.mrf.mxu0
        %v492 = vpop.f32.mrf.mxu0
        %v493 = vadd.f32 0.0, %v492
        %v494 = vpop.f32.mrf.mxu0
        %495 = vmatprep.mubr.bf16.mxu0 0
        %496 = vmatmul.mubr.bf16.gmra.mxu0 %v341
        %v497 = vpop.f32.mrf.mxu0
        %v498 = vadd.f32 0.0, %v497
        %v499 = vpop.f32.mrf.mxu0
        %v500 = vpop.f32.mrf.mxu0
        %v501 = vadd.f32 0.0, %v500
        %v502 = vpop.f32.mrf.mxu0
        %503 = vdwg.mxu0
        %v504 = vmul.f32 %v378, 0.5
        %v505 = vmul.f32 %v381, 0.5
        %v506 = vmul.f32 %v386, 0.5
        %v507 = vmul.f32 %v389, 0.5
        %v508 = vmul.f32 %v394, 0.5
        %v509 = vmul.f32 %v397, 0.5
        %v510 = vmul.f32 %v402, 0.5
        %v511 = vmul.f32 %v405, 0.5
        %v512 = vmul.f32 %v410, 0.5
        %v513 = vmul.f32 %v413, 0.5
        %v514 = vmul.f32 %v418, 0.5
        %v515 = vmul.f32 %v421, 0.5
        %v516 = vmul.f32 %v426, 0.5
        %v517 = vmul.f32 %v429, 0.5
        %v518 = vmul.f32 %v434, 0.5
        %v519 = vmul.f32 %v437, 0.5
        %v520 = vmul.f32 %v442, 0.5
        %v521 = vmul.f32 %v445, 0.5
        %v522 = vmul.f32 %v450, 0.5
        %v523 = vmul.f32 %v453, 0.5
        %v524 = vmul.f32 %v458, 0.5
        %v525 = vmul.f32 %v461, 0.5
        %v526 = vmul.f32 %v466, 0.5
        %v527 = vmul.f32 %v469, 0.5
        %v528 = vmul.f32 %v474, 0.5
        %v529 = vmul.f32 %v477, 0.5
        %v530 = vmul.f32 %v482, 0.5
        %v531 = vmul.f32 %v485, 0.5
        %v532 = vmul.f32 %v490, 0.5
        %v533 = vmul.f32 %v493, 0.5
        %v534 = vmul.f32 %v498, 0.5
        %v535 = vmul.f32 %v501, 0.5
        %v536 = vmul.f32 %v378, 0.70710677
        %v537 = vmul.f32 %v381, 0.70710677
        %v538 = vmul.f32 %v386, 0.70710677
        %v539 = vmul.f32 %v389, 0.70710677
        %v540 = vmul.f32 %v394, 0.70710677
        %v541 = vmul.f32 %v397, 0.70710677
        %v542 = vmul.f32 %v402, 0.70710677
        %v543 = vmul.f32 %v405, 0.70710677
        %v544 = vmul.f32 %v410, 0.70710677
        %v545 = vmul.f32 %v413, 0.70710677
        %v546 = vmul.f32 %v418, 0.70710677
        %v547 = vmul.f32 %v421, 0.70710677
        %v548 = vmul.f32 %v426, 0.70710677
        %v549 = vmul.f32 %v429, 0.70710677
        %v550 = vmul.f32 %v434, 0.70710677
        %v551 = vmul.f32 %v437, 0.70710677
        %v552 = vmul.f32 %v442, 0.70710677
        %v553 = vmul.f32 %v445, 0.70710677
        %v554 = vmul.f32 %v450, 0.70710677
        %v555 = vmul.f32 %v453, 0.70710677
        %v556 = vmul.f32 %v458, 0.70710677
        %v557 = vmul.f32 %v461, 0.70710677
        %v558 = vmul.f32 %v466, 0.70710677
        %v559 = vmul.f32 %v469, 0.70710677
        %v560 = vmul.f32 %v474, 0.70710677
        %v561 = vmul.f32 %v477, 0.70710677
        %v562 = vmul.f32 %v482, 0.70710677
        %v563 = vmul.f32 %v485, 0.70710677
        %v564 = vmul.f32 %v490, 0.70710677
        %v565 = vmul.f32 %v493, 0.70710677
        %v566 = vmul.f32 %v498, 0.70710677
        %v567 = vmul.f32 %v501, 0.70710677
        %vm568 = vcmp.ge.f32.partialorder %v536, 0.0
        %vm569 = vcmp.ge.f32.partialorder %v537, 0.0
        %vm570 = vcmp.ge.f32.partialorder %v538, 0.0
        %vm571 = vcmp.ge.f32.partialorder %v539, 0.0
        %vm572 = vcmp.ge.f32.partialorder %v540, 0.0
        %vm573 = vcmp.ge.f32.partialorder %v541, 0.0
        %vm574 = vcmp.ge.f32.partialorder %v542, 0.0
        %vm575 = vcmp.ge.f32.partialorder %v543, 0.0
        %vm576 = vcmp.ge.f32.partialorder %v544, 0.0
        %vm577 = vcmp.ge.f32.partialorder %v545, 0.0
        %vm578 = vcmp.ge.f32.partialorder %v546, 0.0
        %vm579 = vcmp.ge.f32.partialorder %v547, 0.0
        %vm580 = vcmp.ge.f32.partialorder %v548, 0.0
        %vm581 = vcmp.ge.f32.partialorder %v549, 0.0
        %vm582 = vcmp.ge.f32.partialorder %v550, 0.0
        %vm583 = vcmp.ge.f32.partialorder %v551, 0.0
        %vm584 = vcmp.ge.f32.partialorder %v552, 0.0
        %vm585 = vcmp.ge.f32.partialorder %v553, 0.0
        %vm586 = vcmp.ge.f32.partialorder %v554, 0.0
        %vm587 = vcmp.ge.f32.partialorder %v555, 0.0
        %vm588 = vcmp.ge.f32.partialorder %v556, 0.0
        %vm589 = vcmp.ge.f32.partialorder %v557, 0.0
        %vm590 = vcmp.ge.f32.partialorder %v558, 0.0
        %vm591 = vcmp.ge.f32.partialorder %v559, 0.0
        %vm592 = vcmp.ge.f32.partialorder %v560, 0.0
        %vm593 = vcmp.ge.f32.partialorder %v561, 0.0
        %vm594 = vcmp.ge.f32.partialorder %v562, 0.0
        %vm595 = vcmp.ge.f32.partialorder %v563, 0.0
        %vm596 = vcmp.ge.f32.partialorder %v564, 0.0
        %vm597 = vcmp.ge.f32.partialorder %v565, 0.0
        %vm598 = vcmp.ge.f32.partialorder %v566, 0.0
        %vm599 = vcmp.ge.f32.partialorder %v567, 0.0
        %v600 = vsel %vm568, 1.0, -1.0
        %v601 = vsel %vm569, 1.0, -1.0
        %v602 = vsel %vm570, 1.0, -1.0
        %v603 = vsel %vm571, 1.0, -1.0
        %v604 = vsel %vm572, 1.0, -1.0
        %v605 = vsel %vm573, 1.0, -1.0
        %v606 = vsel %vm574, 1.0, -1.0
        %v607 = vsel %vm575, 1.0, -1.0
        %v608 = vsel %vm576, 1.0, -1.0
        %v609 = vsel %vm577, 1.0, -1.0
        %v610 = vsel %vm578, 1.0, -1.0
        %v611 = vsel %vm579, 1.0, -1.0
        %v612 = vsel %vm580, 1.0, -1.0
        %v613 = vsel %vm581, 1.0, -1.0
        %v614 = vsel %vm582, 1.0, -1.0
        %v615 = vsel %vm583, 1.0, -1.0
        %v616 = vsel %vm584, 1.0, -1.0
        %v617 = vsel %vm585, 1.0, -1.0
        %v618 = vsel %vm586, 1.0, -1.0
        %v619 = vsel %vm587, 1.0, -1.0
        %v620 = vsel %vm588, 1.0, -1.0
        %v621 = vsel %vm589, 1.0, -1.0
        %v622 = vsel %vm590, 1.0, -1.0
        %v623 = vsel %vm591, 1.0, -1.0
        %v624 = vsel %vm592, 1.0, -1.0
        %v625 = vsel %vm593, 1.0, -1.0
        %v626 = vsel %vm594, 1.0, -1.0
        %v627 = vsel %vm595, 1.0, -1.0
        %v628 = vsel %vm596, 1.0, -1.0
        %v629 = vsel %vm597, 1.0, -1.0
        %v630 = vsel %vm598, 1.0, -1.0
        %v631 = vsel %vm599, 1.0, -1.0
        %v632 = vand.u32 2147483647, %v536
        %v633 = vand.u32 2147483647, %v537
        %v634 = vand.u32 2147483647, %v538
        %v635 = vand.u32 2147483647, %v539
        %v636 = vand.u32 2147483647, %v540
        %v637 = vand.u32 2147483647, %v541
        %v638 = vand.u32 2147483647, %v542
        %v639 = vand.u32 2147483647, %v543
        %v640 = vand.u32 2147483647, %v544
        %v641 = vand.u32 2147483647, %v545
        %v642 = vand.u32 2147483647, %v546
        %v643 = vand.u32 2147483647, %v547
        %v644 = vand.u32 2147483647, %v548
        %v645 = vand.u32 2147483647, %v549
        %v646 = vand.u32 2147483647, %v550
        %v647 = vand.u32 2147483647, %v551
        %v648 = vand.u32 2147483647, %v552
        %v649 = vand.u32 2147483647, %v553
        %v650 = vand.u32 2147483647, %v554
        %v651 = vand.u32 2147483647, %v555
        %v652 = vand.u32 2147483647, %v556
        %v653 = vand.u32 2147483647, %v557
        %v654 = vand.u32 2147483647, %v558
        %v655 = vand.u32 2147483647, %v559
        %v656 = vand.u32 2147483647, %v560
        %v657 = vand.u32 2147483647, %v561
        %v658 = vand.u32 2147483647, %v562
        %v659 = vand.u32 2147483647, %v563
        %v660 = vand.u32 2147483647, %v564
        %v661 = vand.u32 2147483647, %v565
        %v662 = vand.u32 2147483647, %v566
        %v663 = vand.u32 2147483647, %v567
        %v664 = vmul.f32 %v632, 0.3275911
        %v665 = vmul.f32 %v633, 0.3275911
        %v666 = vmul.f32 %v634, 0.3275911
        %v667 = vmul.f32 %v635, 0.3275911
        %v668 = vmul.f32 %v636, 0.3275911
        %v669 = vmul.f32 %v637, 0.3275911
        %v670 = vmul.f32 %v638, 0.3275911
        %v671 = vmul.f32 %v639, 0.3275911
        %v672 = vmul.f32 %v640, 0.3275911
        %v673 = vmul.f32 %v641, 0.3275911
        %v674 = vmul.f32 %v642, 0.3275911
        %v675 = vmul.f32 %v643, 0.3275911
        %v676 = vmul.f32 %v644, 0.3275911
        %v677 = vmul.f32 %v645, 0.3275911
        %v678 = vmul.f32 %v646, 0.3275911
        %v679 = vmul.f32 %v647, 0.3275911
        %v680 = vmul.f32 %v648, 0.3275911
        %v681 = vmul.f32 %v649, 0.3275911
        %v682 = vmul.f32 %v650, 0.3275911
        %v683 = vmul.f32 %v651, 0.3275911
        %v684 = vmul.f32 %v652, 0.3275911
        %v685 = vmul.f32 %v653, 0.3275911
        %v686 = vmul.f32 %v654, 0.3275911
        %v687 = vmul.f32 %v655, 0.3275911
        %v688 = vmul.f32 %v656, 0.3275911
        %v689 = vmul.f32 %v657, 0.3275911
        %v690 = vmul.f32 %v658, 0.3275911
        %v691 = vmul.f32 %v659, 0.3275911
        %v692 = vmul.f32 %v660, 0.3275911
        %v693 = vmul.f32 %v661, 0.3275911
        %v694 = vmul.f32 %v662, 0.3275911
        %v695 = vmul.f32 %v663, 0.3275911
        %v696 = vadd.f32 %v664, 1.0
        %v697 = vadd.f32 %v665, 1.0
        %v698 = vadd.f32 %v666, 1.0
        %v699 = vadd.f32 %v667, 1.0
        %v700 = vadd.f32 %v668, 1.0
        %v701 = vadd.f32 %v669, 1.0
        %v702 = vadd.f32 %v670, 1.0
        %v703 = vadd.f32 %v671, 1.0
        %v704 = vadd.f32 %v672, 1.0
        %v705 = vadd.f32 %v673, 1.0
        %v706 = vadd.f32 %v674, 1.0
        %v707 = vadd.f32 %v675, 1.0
        %v708 = vadd.f32 %v676, 1.0
        %v709 = vadd.f32 %v677, 1.0
        %v710 = vadd.f32 %v678, 1.0
        %v711 = vadd.f32 %v679, 1.0
        %v712 = vadd.f32 %v680, 1.0
        %v713 = vadd.f32 %v681, 1.0
        %v714 = vadd.f32 %v682, 1.0
        %v715 = vadd.f32 %v683, 1.0
        %v716 = vadd.f32 %v684, 1.0
        %v717 = vadd.f32 %v685, 1.0
        %v718 = vadd.f32 %v686, 1.0
        %v719 = vadd.f32 %v687, 1.0
        %v720 = vadd.f32 %v688, 1.0
        %v721 = vadd.f32 %v689, 1.0
        %v722 = vadd.f32 %v690, 1.0
        %v723 = vadd.f32 %v691, 1.0
        %v724 = vadd.f32 %v692, 1.0
        %v725 = vadd.f32 %v693, 1.0
        %v726 = vadd.f32 %v694, 1.0
        %v727 = vadd.f32 %v695, 1.0
        %v728 = vrcp.pop %v696
        %v729 = vmul.f32 1.0, %v728
        %v730 = vrcp.pop %v697
        %v731 = vmul.f32 1.0, %v730
        %v732 = vrcp.pop %v698
        %v733 = vmul.f32 1.0, %v732
        %v734 = vrcp.pop %v699
        %v735 = vmul.f32 1.0, %v734
        %v736 = vrcp.pop %v700
        %v737 = vmul.f32 1.0, %v736
        %v738 = vrcp.pop %v701
        %v739 = vmul.f32 1.0, %v738
        %v740 = vrcp.pop %v702
        %v741 = vmul.f32 1.0, %v740
        %v742 = vrcp.pop %v703
        %v743 = vmul.f32 1.0, %v742
        %v744 = vrcp.pop %v704
        %v745 = vmul.f32 1.0, %v744
        %v746 = vrcp.pop %v705
        %v747 = vmul.f32 1.0, %v746
        %v748 = vrcp.pop %v706
        %v749 = vmul.f32 1.0, %v748
        %v750 = vrcp.pop %v707
        %v751 = vmul.f32 1.0, %v750
        %v752 = vrcp.pop %v708
        %v753 = vmul.f32 1.0, %v752
        %v754 = vrcp.pop %v709
        %v755 = vmul.f32 1.0, %v754
        %v756 = vrcp.pop %v710
        %v757 = vmul.f32 1.0, %v756
        %v758 = vrcp.pop %v711
        %v759 = vmul.f32 1.0, %v758
        %v760 = vrcp.pop %v712
        %v761 = vmul.f32 1.0, %v760
        %v762 = vrcp.pop %v713
        %v763 = vmul.f32 1.0, %v762
        %v764 = vrcp.pop %v714
        %v765 = vmul.f32 1.0, %v764
        %v766 = vrcp.pop %v715
        %v767 = vmul.f32 1.0, %v766
        %v768 = vrcp.pop %v716
        %v769 = vmul.f32 1.0, %v768
        %v770 = vrcp.pop %v717
        %v771 = vmul.f32 1.0, %v770
        %v772 = vrcp.pop %v718
        %v773 = vmul.f32 1.0, %v772
        %v774 = vrcp.pop %v719
        %v775 = vmul.f32 1.0, %v774
        %v776 = vrcp.pop %v720
        %v777 = vmul.f32 1.0, %v776
        %v778 = vrcp.pop %v721
        %v779 = vmul.f32 1.0, %v778
        %v780 = vrcp.pop %v722
        %v781 = vmul.f32 1.0, %v780
        %v782 = vrcp.pop %v723
        %v783 = vmul.f32 1.0, %v782
        %v784 = vrcp.pop %v724
        %v785 = vmul.f32 1.0, %v784
        %v786 = vrcp.pop %v725
        %v787 = vmul.f32 1.0, %v786
        %v788 = vrcp.pop %v726
        %v789 = vmul.f32 1.0, %v788
        %v790 = vrcp.pop %v727
        %v791 = vmul.f32 1.0, %v790
        %v792 = vmul.f32 %v729, 1.0614054
        %v793 = vmul.f32 %v731, 1.0614054
        %v794 = vmul.f32 %v733, 1.0614054
        %v795 = vmul.f32 %v735, 1.0614054
        %v796 = vmul.f32 %v737, 1.0614054
        %v797 = vmul.f32 %v739, 1.0614054
        %v798 = vmul.f32 %v741, 1.0614054
        %v799 = vmul.f32 %v743, 1.0614054
        %v800 = vmul.f32 %v745, 1.0614054
        %v801 = vmul.f32 %v747, 1.0614054
        %v802 = vmul.f32 %v749, 1.0614054
        %v803 = vmul.f32 %v751, 1.0614054
        %v804 = vmul.f32 %v753, 1.0614054
        %v805 = vmul.f32 %v755, 1.0614054
        %v806 = vmul.f32 %v757, 1.0614054
        %v807 = vmul.f32 %v759, 1.0614054
        %v808 = vmul.f32 %v761, 1.0614054
        %v809 = vmul.f32 %v763, 1.0614054
        %v810 = vmul.f32 %v765, 1.0614054
        %v811 = vmul.f32 %v767, 1.0614054
        %v812 = vmul.f32 %v769, 1.0614054
        %v813 = vmul.f32 %v771, 1.0614054
        %v814 = vmul.f32 %v773, 1.0614054
        %v815 = vmul.f32 %v775, 1.0614054
        %v816 = vmul.f32 %v777, 1.0614054
        %v817 = vmul.f32 %v779, 1.0614054
        %v818 = vmul.f32 %v781, 1.0614054
        %v819 = vmul.f32 %v783, 1.0614054
        %v820 = vmul.f32 %v785, 1.0614054
        %v821 = vmul.f32 %v787, 1.0614054
        %v822 = vmul.f32 %v789, 1.0614054
        %v823 = vmul.f32 %v791, 1.0614054
        %v824 = vadd.f32 %v792, -1.4531521
        %v825 = vadd.f32 %v793, -1.4531521
        %v826 = vadd.f32 %v794, -1.4531521
        %v827 = vadd.f32 %v795, -1.4531521
        %v828 = vadd.f32 %v796, -1.4531521
        %v829 = vadd.f32 %v797, -1.4531521
        %v830 = vadd.f32 %v798, -1.4531521
        %v831 = vadd.f32 %v799, -1.4531521
        %v832 = vadd.f32 %v800, -1.4531521
        %v833 = vadd.f32 %v801, -1.4531521
        %v834 = vadd.f32 %v802, -1.4531521
        %v835 = vadd.f32 %v803, -1.4531521
        %v836 = vadd.f32 %v804, -1.4531521
        %v837 = vadd.f32 %v805, -1.4531521
        %v838 = vadd.f32 %v806, -1.4531521
        %v839 = vadd.f32 %v807, -1.4531521
        %v840 = vadd.f32 %v808, -1.4531521
        %v841 = vadd.f32 %v809, -1.4531521
        %v842 = vadd.f32 %v810, -1.4531521
        %v843 = vadd.f32 %v811, -1.4531521
        %v844 = vadd.f32 %v812, -1.4531521
        %v845 = vadd.f32 %v813, -1.4531521
        %v846 = vadd.f32 %v814, -1.4531521
        %v847 = vadd.f32 %v815, -1.4531521
        %v848 = vadd.f32 %v816, -1.4531521
        %v849 = vadd.f32 %v817, -1.4531521
        %v850 = vadd.f32 %v818, -1.4531521
        %v851 = vadd.f32 %v819, -1.4531521
        %v852 = vadd.f32 %v820, -1.4531521
        %v853 = vadd.f32 %v821, -1.4531521
        %v854 = vadd.f32 %v822, -1.4531521
        %v855 = vadd.f32 %v823, -1.4531521
        %v856 = vmul.f32 %v729, %v824
        %v857 = vmul.f32 %v731, %v825
        %v858 = vmul.f32 %v733, %v826
        %v859 = vmul.f32 %v735, %v827
        %v860 = vmul.f32 %v737, %v828
        %v861 = vmul.f32 %v739, %v829
        %v862 = vmul.f32 %v741, %v830
        %v863 = vmul.f32 %v743, %v831
        %v864 = vmul.f32 %v745, %v832
        %v865 = vmul.f32 %v747, %v833
        %v866 = vmul.f32 %v749, %v834
        %v867 = vmul.f32 %v751, %v835
        %v868 = vmul.f32 %v753, %v836
        %v869 = vmul.f32 %v755, %v837
        %v870 = vmul.f32 %v757, %v838
        %v871 = vmul.f32 %v759, %v839
        %v872 = vmul.f32 %v761, %v840
        %v873 = vmul.f32 %v763, %v841
        %v874 = vmul.f32 %v765, %v842
        %v875 = vmul.f32 %v767, %v843
        %v876 = vmul.f32 %v769, %v844
        %v877 = vmul.f32 %v771, %v845
        %v878 = vmul.f32 %v773, %v846
        %v879 = vmul.f32 %v775, %v847
        %v880 = vmul.f32 %v777, %v848
        %v881 = vmul.f32 %v779, %v849
        %v882 = vmul.f32 %v781, %v850
        %v883 = vmul.f32 %v783, %v851
        %v884 = vmul.f32 %v785, %v852
        %v885 = vmul.f32 %v787, %v853
        %v886 = vmul.f32 %v789, %v854
        %v887 = vmul.f32 %v791, %v855
        %v888 = vadd.f32 %v856, 1.4214138
        %v889 = vadd.f32 %v857, 1.4214138
        %v890 = vadd.f32 %v858, 1.4214138
        %v891 = vadd.f32 %v859, 1.4214138
        %v892 = vadd.f32 %v860, 1.4214138
        %v893 = vadd.f32 %v861, 1.4214138
        %v894 = vadd.f32 %v862, 1.4214138
        %v895 = vadd.f32 %v863, 1.4214138
        %v896 = vadd.f32 %v864, 1.4214138
        %v897 = vadd.f32 %v865, 1.4214138
        %v898 = vadd.f32 %v866, 1.4214138
        %v899 = vadd.f32 %v867, 1.4214138
        %v900 = vadd.f32 %v868, 1.4214138
        %v901 = vadd.f32 %v869, 1.4214138
        %v902 = vadd.f32 %v870, 1.4214138
        %v903 = vadd.f32 %v871, 1.4214138
        %v904 = vadd.f32 %v872, 1.4214138
        %v905 = vadd.f32 %v873, 1.4214138
        %v906 = vadd.f32 %v874, 1.4214138
        %v907 = vadd.f32 %v875, 1.4214138
        %v908 = vadd.f32 %v876, 1.4214138
        %v909 = vadd.f32 %v877, 1.4214138
        %v910 = vadd.f32 %v878, 1.4214138
        %v911 = vadd.f32 %v879, 1.4214138
        %v912 = vadd.f32 %v880, 1.4214138
        %v913 = vadd.f32 %v881, 1.4214138
        %v914 = vadd.f32 %v882, 1.4214138
        %v915 = vadd.f32 %v883, 1.4214138
        %v916 = vadd.f32 %v884, 1.4214138
        %v917 = vadd.f32 %v885, 1.4214138
        %v918 = vadd.f32 %v886, 1.4214138
        %v919 = vadd.f32 %v887, 1.4214138
        %v920 = vmul.f32 %v729, %v888
        %v921 = vmul.f32 %v731, %v889
        %v922 = vmul.f32 %v733, %v890
        %v923 = vmul.f32 %v735, %v891
        %v924 = vmul.f32 %v737, %v892
        %v925 = vmul.f32 %v739, %v893
        %v926 = vmul.f32 %v741, %v894
        %v927 = vmul.f32 %v743, %v895
        %v928 = vmul.f32 %v745, %v896
        %v929 = vmul.f32 %v747, %v897
        %v930 = vmul.f32 %v749, %v898
        %v931 = vmul.f32 %v751, %v899
        %v932 = vmul.f32 %v753, %v900
        %v933 = vmul.f32 %v755, %v901
        %v934 = vmul.f32 %v757, %v902
        %v935 = vmul.f32 %v759, %v903
        %v936 = vmul.f32 %v761, %v904
        %v937 = vmul.f32 %v763, %v905
        %v938 = vmul.f32 %v765, %v906
        %v939 = vmul.f32 %v767, %v907
        %v940 = vmul.f32 %v769, %v908
        %v941 = vmul.f32 %v771, %v909
        %v942 = vmul.f32 %v773, %v910
        %v943 = vmul.f32 %v775, %v911
        %v944 = vmul.f32 %v777, %v912
        %v945 = vmul.f32 %v779, %v913
        %v946 = vmul.f32 %v781, %v914
        %v947 = vmul.f32 %v783, %v915
        %v948 = vmul.f32 %v785, %v916
        %v949 = vmul.f32 %v787, %v917
        %v950 = vmul.f32 %v789, %v918
        %v951 = vmul.f32 %v791, %v919
        %v952 = vadd.f32 %v920, -0.28449672
        %v953 = vadd.f32 %v921, -0.28449672
        %v954 = vadd.f32 %v922, -0.28449672
        %v955 = vadd.f32 %v923, -0.28449672
        %v956 = vadd.f32 %v924, -0.28449672
        %v957 = vadd.f32 %v925, -0.28449672
        %v958 = vadd.f32 %v926, -0.28449672
        %v959 = vadd.f32 %v927, -0.28449672
        %v960 = vadd.f32 %v928, -0.28449672
        %v961 = vadd.f32 %v929, -0.28449672
        %v962 = vadd.f32 %v930, -0.28449672
        %v963 = vadd.f32 %v931, -0.28449672
        %v964 = vadd.f32 %v932, -0.28449672
        %v965 = vadd.f32 %v933, -0.28449672
        %v966 = vadd.f32 %v934, -0.28449672
        %v967 = vadd.f32 %v935, -0.28449672
        %v968 = vadd.f32 %v936, -0.28449672
        %v969 = vadd.f32 %v937, -0.28449672
        %v970 = vadd.f32 %v938, -0.28449672
        %v971 = vadd.f32 %v939, -0.28449672
        %v972 = vadd.f32 %v940, -0.28449672
        %v973 = vadd.f32 %v941, -0.28449672
        %v974 = vadd.f32 %v942, -0.28449672
        %v975 = vadd.f32 %v943, -0.28449672
        %v976 = vadd.f32 %v944, -0.28449672
        %v977 = vadd.f32 %v945, -0.28449672
        %v978 = vadd.f32 %v946, -0.28449672
        %v979 = vadd.f32 %v947, -0.28449672
        %v980 = vadd.f32 %v948, -0.28449672
        %v981 = vadd.f32 %v949, -0.28449672
        %v982 = vadd.f32 %v950, -0.28449672
        %v983 = vadd.f32 %v951, -0.28449672
        %v984 = vmul.f32 %v729, %v952
        %v985 = vmul.f32 %v731, %v953
        %v986 = vmul.f32 %v733, %v954
        %v987 = vmul.f32 %v735, %v955
        %v988 = vmul.f32 %v737, %v956
        %v989 = vmul.f32 %v739, %v957
        %v990 = vmul.f32 %v741, %v958
        %v991 = vmul.f32 %v743, %v959
        %v992 = vmul.f32 %v745, %v960
        %v993 = vmul.f32 %v747, %v961
        %v994 = vmul.f32 %v749, %v962
        %v995 = vmul.f32 %v751, %v963
        %v996 = vmul.f32 %v753, %v964
        %v997 = vmul.f32 %v755, %v965
        %v998 = vmul.f32 %v757, %v966
        %v999 = vmul.f32 %v759, %v967
        %v1000 = vmul.f32 %v761, %v968
        %v1001 = vmul.f32 %v763, %v969
        %v1002 = vmul.f32 %v765, %v970
        %v1003 = vmul.f32 %v767, %v971
        %v1004 = vmul.f32 %v769, %v972
        %v1005 = vmul.f32 %v771, %v973
        %v1006 = vmul.f32 %v773, %v974
        %v1007 = vmul.f32 %v775, %v975
        %v1008 = vmul.f32 %v777, %v976
        %v1009 = vmul.f32 %v779, %v977
        %v1010 = vmul.f32 %v781, %v978
        %v1011 = vmul.f32 %v783, %v979
        %v1012 = vmul.f32 %v785, %v980
        %v1013 = vmul.f32 %v787, %v981
        %v1014 = vmul.f32 %v789, %v982
        %v1015 = vmul.f32 %v791, %v983
        %v1016 = vadd.f32 %v984, 0.2548296
        %v1017 = vadd.f32 %v985, 0.2548296
        %v1018 = vadd.f32 %v986, 0.2548296
        %v1019 = vadd.f32 %v987, 0.2548296
        %v1020 = vadd.f32 %v988, 0.2548296
        %v1021 = vadd.f32 %v989, 0.2548296
        %v1022 = vadd.f32 %v990, 0.2548296
        %v1023 = vadd.f32 %v991, 0.2548296
        %v1024 = vadd.f32 %v992, 0.2548296
        %v1025 = vadd.f32 %v993, 0.2548296
        %v1026 = vadd.f32 %v994, 0.2548296
        %v1027 = vadd.f32 %v995, 0.2548296
        %v1028 = vadd.f32 %v996, 0.2548296
        %v1029 = vadd.f32 %v997, 0.2548296
        %v1030 = vadd.f32 %v998, 0.2548296
        %v1031 = vadd.f32 %v999, 0.2548296
        %v1032 = vadd.f32 %v1000, 0.2548296
        %v1033 = vadd.f32 %v1001, 0.2548296
        %v1034 = vadd.f32 %v1002, 0.2548296
        %v1035 = vadd.f32 %v1003, 0.2548296
        %v1036 = vadd.f32 %v1004, 0.2548296
        %v1037 = vadd.f32 %v1005, 0.2548296
        %v1038 = vadd.f32 %v1006, 0.2548296
        %v1039 = vadd.f32 %v1007, 0.2548296
        %v1040 = vadd.f32 %v1008, 0.2548296
        %v1041 = vadd.f32 %v1009, 0.2548296
        %v1042 = vadd.f32 %v1010, 0.2548296
        %v1043 = vadd.f32 %v1011, 0.2548296
        %v1044 = vadd.f32 %v1012, 0.2548296
        %v1045 = vadd.f32 %v1013, 0.2548296
        %v1046 = vadd.f32 %v1014, 0.2548296
        %v1047 = vadd.f32 %v1015, 0.2548296
        %v1048 = vmul.f32 %v729, %v1016
        %v1049 = vmul.f32 %v731, %v1017
        %v1050 = vmul.f32 %v733, %v1018
        %v1051 = vmul.f32 %v735, %v1019
        %v1052 = vmul.f32 %v737, %v1020
        %v1053 = vmul.f32 %v739, %v1021
        %v1054 = vmul.f32 %v741, %v1022
        %v1055 = vmul.f32 %v743, %v1023
        %v1056 = vmul.f32 %v745, %v1024
        %v1057 = vmul.f32 %v747, %v1025
        %v1058 = vmul.f32 %v749, %v1026
        %v1059 = vmul.f32 %v751, %v1027
        %v1060 = vmul.f32 %v753, %v1028
        %v1061 = vmul.f32 %v755, %v1029
        %v1062 = vmul.f32 %v757, %v1030
        %v1063 = vmul.f32 %v759, %v1031
        %v1064 = vmul.f32 %v761, %v1032
        %v1065 = vmul.f32 %v763, %v1033
        %v1066 = vmul.f32 %v765, %v1034
        %v1067 = vmul.f32 %v767, %v1035
        %v1068 = vmul.f32 %v769, %v1036
        %v1069 = vmul.f32 %v771, %v1037
        %v1070 = vmul.f32 %v773, %v1038
        %v1071 = vmul.f32 %v775, %v1039
        %v1072 = vmul.f32 %v777, %v1040
        %v1073 = vmul.f32 %v779, %v1041
        %v1074 = vmul.f32 %v781, %v1042
        %v1075 = vmul.f32 %v783, %v1043
        %v1076 = vmul.f32 %v785, %v1044
        %v1077 = vmul.f32 %v787, %v1045
        %v1078 = vmul.f32 %v789, %v1046
        %v1079 = vmul.f32 %v791, %v1047
        %v1080 = vsub.f32 0.0, %v632
        %v1081 = vsub.f32 0.0, %v633
        %v1082 = vsub.f32 0.0, %v634
        %v1083 = vsub.f32 0.0, %v635
        %v1084 = vsub.f32 0.0, %v636
        %v1085 = vsub.f32 0.0, %v637
        %v1086 = vsub.f32 0.0, %v638
        %v1087 = vsub.f32 0.0, %v639
        %v1088 = vsub.f32 0.0, %v640
        %v1089 = vsub.f32 0.0, %v641
        %v1090 = vsub.f32 0.0, %v642
        %v1091 = vsub.f32 0.0, %v643
        %v1092 = vsub.f32 0.0, %v644
        %v1093 = vsub.f32 0.0, %v645
        %v1094 = vsub.f32 0.0, %v646
        %v1095 = vsub.f32 0.0, %v647
        %v1096 = vsub.f32 0.0, %v648
        %v1097 = vsub.f32 0.0, %v649
        %v1098 = vsub.f32 0.0, %v650
        %v1099 = vsub.f32 0.0, %v651
        %v1100 = vsub.f32 0.0, %v652
        %v1101 = vsub.f32 0.0, %v653
        %v1102 = vsub.f32 0.0, %v654
        %v1103 = vsub.f32 0.0, %v655
        %v1104 = vsub.f32 0.0, %v656
        %v1105 = vsub.f32 0.0, %v657
        %v1106 = vsub.f32 0.0, %v658
        %v1107 = vsub.f32 0.0, %v659
        %v1108 = vsub.f32 0.0, %v660
        %v1109 = vsub.f32 0.0, %v661
        %v1110 = vsub.f32 0.0, %v662
        %v1111 = vsub.f32 0.0, %v663
        %v1112 = vmul.f32 %v1080, %v632
        %v1113 = vmul.f32 %v1081, %v633
        %v1114 = vmul.f32 %v1082, %v634
        %v1115 = vmul.f32 %v1083, %v635
        %v1116 = vmul.f32 %v1084, %v636
        %v1117 = vmul.f32 %v1085, %v637
        %v1118 = vmul.f32 %v1086, %v638
        %v1119 = vmul.f32 %v1087, %v639
        %v1120 = vmul.f32 %v1088, %v640
        %v1121 = vmul.f32 %v1089, %v641
        %v1122 = vmul.f32 %v1090, %v642
        %v1123 = vmul.f32 %v1091, %v643
        %v1124 = vmul.f32 %v1092, %v644
        %v1125 = vmul.f32 %v1093, %v645
        %v1126 = vmul.f32 %v1094, %v646
        %v1127 = vmul.f32 %v1095, %v647
        %v1128 = vmul.f32 %v1096, %v648
        %v1129 = vmul.f32 %v1097, %v649
        %v1130 = vmul.f32 %v1098, %v650
        %v1131 = vmul.f32 %v1099, %v651
        %v1132 = vmul.f32 %v1100, %v652
        %v1133 = vmul.f32 %v1101, %v653
        %v1134 = vmul.f32 %v1102, %v654
        %v1135 = vmul.f32 %v1103, %v655
        %v1136 = vmul.f32 %v1104, %v656
        %v1137 = vmul.f32 %v1105, %v657
        %v1138 = vmul.f32 %v1106, %v658
        %v1139 = vmul.f32 %v1107, %v659
        %v1140 = vmul.f32 %v1108, %v660
        %v1141 = vmul.f32 %v1109, %v661
        %v1142 = vmul.f32 %v1110, %v662
        %v1143 = vmul.f32 %v1111, %v663
        %v1144 = vmul.f32 %v1112, 1.442695
        %v1145 = vpow.pop %v1144
        %v1146 = vmul.f32 %v1113, 1.442695
        %v1147 = vpow.pop %v1146
        %v1148 = vmul.f32 %v1114, 1.442695
        %v1149 = vpow.pop %v1148
        %v1150 = vmul.f32 %v1115, 1.442695
        %v1151 = vpow.pop %v1150
        %v1152 = vmul.f32 %v1116, 1.442695
        %v1153 = vpow.pop %v1152
        %v1154 = vmul.f32 %v1117, 1.442695
        %v1155 = vpow.pop %v1154
        %v1156 = vmul.f32 %v1118, 1.442695
        %v1157 = vpow.pop %v1156
        %v1158 = vmul.f32 %v1119, 1.442695
        %v1159 = vpow.pop %v1158
        %v1160 = vmul.f32 %v1120, 1.442695
        %v1161 = vpow.pop %v1160
        %v1162 = vmul.f32 %v1121, 1.442695
        %v1163 = vpow.pop %v1162
        %v1164 = vmul.f32 %v1122, 1.442695
        %v1165 = vpow.pop %v1164
        %v1166 = vmul.f32 %v1123, 1.442695
        %v1167 = vpow.pop %v1166
        %v1168 = vmul.f32 %v1124, 1.442695
        %v1169 = vpow.pop %v1168
        %v1170 = vmul.f32 %v1125, 1.442695
        %v1171 = vpow.pop %v1170
        %v1172 = vmul.f32 %v1126, 1.442695
        %v1173 = vpow.pop %v1172
        %v1174 = vmul.f32 %v1127, 1.442695
        %v1175 = vpow.pop %v1174
        %v1176 = vmul.f32 %v1128, 1.442695
        %v1177 = vpow.pop %v1176
        %v1178 = vmul.f32 %v1129, 1.442695
        %v1179 = vpow.pop %v1178
        %v1180 = vmul.f32 %v1130, 1.442695
        %v1181 = vpow.pop %v1180
        %v1182 = vmul.f32 %v1131, 1.442695
        %v1183 = vpow.pop %v1182
        %v1184 = vmul.f32 %v1132, 1.442695
        %v1185 = vpow.pop %v1184
        %v1186 = vmul.f32 %v1133, 1.442695
        %v1187 = vpow.pop %v1186
        %v1188 = vmul.f32 %v1134, 1.442695
        %v1189 = vpow.pop %v1188
        %v1190 = vmul.f32 %v1135, 1.442695
        %v1191 = vpow.pop %v1190
        %v1192 = vmul.f32 %v1136, 1.442695
        %v1193 = vpow.pop %v1192
        %v1194 = vmul.f32 %v1137, 1.442695
        %v1195 = vpow.pop %v1194
        %v1196 = vmul.f32 %v1138, 1.442695
        %v1197 = vpow.pop %v1196
        %v1198 = vmul.f32 %v1139, 1.442695
        %v1199 = vpow.pop %v1198
        %v1200 = vmul.f32 %v1140, 1.442695
        %v1201 = vpow.pop %v1200
        %v1202 = vmul.f32 %v1141, 1.442695
        %v1203 = vpow.pop %v1202
        %v1204 = vmul.f32 %v1142, 1.442695
        %v1205 = vpow.pop %v1204
        %v1206 = vmul.f32 %v1143, 1.442695
        %v1207 = vpow.pop %v1206
        %v1208 = vmul.f32 %v1048, %v1145
        %v1209 = vmul.f32 %v1049, %v1147
        %v1210 = vmul.f32 %v1050, %v1149
        %v1211 = vmul.f32 %v1051, %v1151
        %v1212 = vmul.f32 %v1052, %v1153
        %v1213 = vmul.f32 %v1053, %v1155
        %v1214 = vmul.f32 %v1054, %v1157
        %v1215 = vmul.f32 %v1055, %v1159
        %v1216 = vmul.f32 %v1056, %v1161
        %v1217 = vmul.f32 %v1057, %v1163
        %v1218 = vmul.f32 %v1058, %v1165
        %v1219 = vmul.f32 %v1059, %v1167
        %v1220 = vmul.f32 %v1060, %v1169
        %v1221 = vmul.f32 %v1061, %v1171
        %v1222 = vmul.f32 %v1062, %v1173
        %v1223 = vmul.f32 %v1063, %v1175
        %v1224 = vmul.f32 %v1064, %v1177
        %v1225 = vmul.f32 %v1065, %v1179
        %v1226 = vmul.f32 %v1066, %v1181
        %v1227 = vmul.f32 %v1067, %v1183
        %v1228 = vmul.f32 %v1068, %v1185
        %v1229 = vmul.f32 %v1069, %v1187
        %v1230 = vmul.f32 %v1070, %v1189
        %v1231 = vmul.f32 %v1071, %v1191
        %v1232 = vmul.f32 %v1072, %v1193
        %v1233 = vmul.f32 %v1073, %v1195
        %v1234 = vmul.f32 %v1074, %v1197
        %v1235 = vmul.f32 %v1075, %v1199
        %v1236 = vmul.f32 %v1076, %v1201
        %v1237 = vmul.f32 %v1077, %v1203
        %v1238 = vmul.f32 %v1078, %v1205
        %v1239 = vmul.f32 %v1079, %v1207
        %v1240 = vsub.f32 1.0, %v1208
        %v1241 = vsub.f32 1.0, %v1209
        %v1242 = vsub.f32 1.0, %v1210
        %v1243 = vsub.f32 1.0, %v1211
        %v1244 = vsub.f32 1.0, %v1212
        %v1245 = vsub.f32 1.0, %v1213
        %v1246 = vsub.f32 1.0, %v1214
        %v1247 = vsub.f32 1.0, %v1215
        %v1248 = vsub.f32 1.0, %v1216
        %v1249 = vsub.f32 1.0, %v1217
        %v1250 = vsub.f32 1.0, %v1218
        %v1251 = vsub.f32 1.0, %v1219
        %v1252 = vsub.f32 1.0, %v1220
        %v1253 = vsub.f32 1.0, %v1221
        %v1254 = vsub.f32 1.0, %v1222
        %v1255 = vsub.f32 1.0, %v1223
        %v1256 = vsub.f32 1.0, %v1224
        %v1257 = vsub.f32 1.0, %v1225
        %v1258 = vsub.f32 1.0, %v1226
        %v1259 = vsub.f32 1.0, %v1227
        %v1260 = vsub.f32 1.0, %v1228
        %v1261 = vsub.f32 1.0, %v1229
        %v1262 = vsub.f32 1.0, %v1230
        %v1263 = vsub.f32 1.0, %v1231
        %v1264 = vsub.f32 1.0, %v1232
        %v1265 = vsub.f32 1.0, %v1233
        %v1266 = vsub.f32 1.0, %v1234
        %v1267 = vsub.f32 1.0, %v1235
        %v1268 = vsub.f32 1.0, %v1236
        %v1269 = vsub.f32 1.0, %v1237
        %v1270 = vsub.f32 1.0, %v1238
        %v1271 = vsub.f32 1.0, %v1239
        %v1272 = vmul.f32 %v600, %v1240
        %v1273 = vmul.f32 %v601, %v1241
        %v1274 = vmul.f32 %v602, %v1242
        %v1275 = vmul.f32 %v603, %v1243
        %v1276 = vmul.f32 %v604, %v1244
        %v1277 = vmul.f32 %v605, %v1245
        %v1278 = vmul.f32 %v606, %v1246
        %v1279 = vmul.f32 %v607, %v1247
        %v1280 = vmul.f32 %v608, %v1248
        %v1281 = vmul.f32 %v609, %v1249
        %v1282 = vmul.f32 %v610, %v1250
        %v1283 = vmul.f32 %v611, %v1251
        %v1284 = vmul.f32 %v612, %v1252
        %v1285 = vmul.f32 %v613, %v1253
        %v1286 = vmul.f32 %v614, %v1254
        %v1287 = vmul.f32 %v615, %v1255
        %v1288 = vmul.f32 %v616, %v1256
        %v1289 = vmul.f32 %v617, %v1257
        %v1290 = vmul.f32 %v618, %v1258
        %v1291 = vmul.f32 %v619, %v1259
        %v1292 = vmul.f32 %v620, %v1260
        %v1293 = vmul.f32 %v621, %v1261
        %v1294 = vmul.f32 %v622, %v1262
        %v1295 = vmul.f32 %v623, %v1263
        %v1296 = vmul.f32 %v624, %v1264
        %v1297 = vmul.f32 %v625, %v1265
        %v1298 = vmul.f32 %v626, %v1266
        %v1299 = vmul.f32 %v627, %v1267
        %v1300 = vmul.f32 %v628, %v1268
        %v1301 = vmul.f32 %v629, %v1269
        %v1302 = vmul.f32 %v630, %v1270
        %v1303 = vmul.f32 %v631, %v1271
        %v1304 = vadd.f32 %v1272, 1.0
        %v1305 = vadd.f32 %v1273, 1.0
        %v1306 = vadd.f32 %v1274, 1.0
        %v1307 = vadd.f32 %v1275, 1.0
        %v1308 = vadd.f32 %v1276, 1.0
        %v1309 = vadd.f32 %v1277, 1.0
        %v1310 = vadd.f32 %v1278, 1.0
        %v1311 = vadd.f32 %v1279, 1.0
        %v1312 = vadd.f32 %v1280, 1.0
        %v1313 = vadd.f32 %v1281, 1.0
        %v1314 = vadd.f32 %v1282, 1.0
        %v1315 = vadd.f32 %v1283, 1.0
        %v1316 = vadd.f32 %v1284, 1.0
        %v1317 = vadd.f32 %v1285, 1.0
        %v1318 = vadd.f32 %v1286, 1.0
        %v1319 = vadd.f32 %v1287, 1.0
        %v1320 = vadd.f32 %v1288, 1.0
        %v1321 = vadd.f32 %v1289, 1.0
        %v1322 = vadd.f32 %v1290, 1.0
        %v1323 = vadd.f32 %v1291, 1.0
        %v1324 = vadd.f32 %v1292, 1.0
        %v1325 = vadd.f32 %v1293, 1.0
        %v1326 = vadd.f32 %v1294, 1.0
        %v1327 = vadd.f32 %v1295, 1.0
        %v1328 = vadd.f32 %v1296, 1.0
        %v1329 = vadd.f32 %v1297, 1.0
        %v1330 = vadd.f32 %v1298, 1.0
        %v1331 = vadd.f32 %v1299, 1.0
        %v1332 = vadd.f32 %v1300, 1.0
        %v1333 = vadd.f32 %v1301, 1.0
        %v1334 = vadd.f32 %v1302, 1.0
        %v1335 = vadd.f32 %v1303, 1.0
        %v1336 = vmul.f32 %v504, %v1304
        %v1337 = vmul.f32 %v505, %v1305
        %v1338 = vmul.f32 %v506, %v1306
        %v1339 = vmul.f32 %v507, %v1307
        %v1340 = vmul.f32 %v508, %v1308
        %v1341 = vmul.f32 %v509, %v1309
        %v1342 = vmul.f32 %v510, %v1310
        %v1343 = vmul.f32 %v511, %v1311
        %v1344 = vmul.f32 %v512, %v1312
        %v1345 = vmul.f32 %v513, %v1313
        %v1346 = vmul.f32 %v514, %v1314
        %v1347 = vmul.f32 %v515, %v1315
        %v1348 = vmul.f32 %v516, %v1316
        %v1349 = vmul.f32 %v517, %v1317
        %v1350 = vmul.f32 %v518, %v1318
        %v1351 = vmul.f32 %v519, %v1319
        %v1352 = vmul.f32 %v520, %v1320
        %v1353 = vmul.f32 %v521, %v1321
        %v1354 = vmul.f32 %v522, %v1322
        %v1355 = vmul.f32 %v523, %v1323
        %v1356 = vmul.f32 %v524, %v1324
        %v1357 = vmul.f32 %v525, %v1325
        %v1358 = vmul.f32 %v526, %v1326
        %v1359 = vmul.f32 %v527, %v1327
        %v1360 = vmul.f32 %v528, %v1328
        %v1361 = vmul.f32 %v529, %v1329
        %v1362 = vmul.f32 %v530, %v1330
        %v1363 = vmul.f32 %v531, %v1331
        %v1364 = vmul.f32 %v532, %v1332
        %v1365 = vmul.f32 %v533, %v1333
        %v1366 = vmul.f32 %v534, %v1334
        %v1367 = vmul.f32 %v535, %v1335
        %vm1368 = vcmask 523264
        %1369 = vst.msk [vmem:[%s145] sm:$0xff] %vm1368, %v1336
        %1370 = vst.msk [vmem:[%s145 + $0x8] sm:$0xff] %vm1368, %v1337
        %1371 = vst.msk [vmem:[%s145 + $0x10] sm:$0xff] %vm1368, %v1338
        %1372 = vst.msk [vmem:[%s145 + $0x18] sm:$0xff] %vm1368, %v1339
        %1373 = vst.msk [vmem:[%s145 + $0x20] sm:$0xff] %vm1368, %v1340
        %1374 = vst.msk [vmem:[%s145 + $0x28] sm:$0xff] %vm1368, %v1341
        %1375 = vst.msk [vmem:[%s145 + $0x30] sm:$0xff] %vm1368, %v1342
        %1376 = vst.msk [vmem:[%s145 + $0x38] sm:$0xff] %vm1368, %v1343
        %1377 = vst.msk [vmem:[%s145 + $0x40] sm:$0xff] %vm1368, %v1344
        %1378 = vst.msk [vmem:[%s145 + $0x48] sm:$0xff] %vm1368, %v1345
        %1379 = vst.msk [vmem:[%s145 + $0x50] sm:$0xff] %vm1368, %v1346
        %1380 = vst.msk [vmem:[%s145 + $0x58] sm:$0xff] %vm1368, %v1347
        %1381 = vst.msk [vmem:[%s145 + $0x60] sm:$0xff] %vm1368, %v1348
        %1382 = vst.msk [vmem:[%s145 + $0x68] sm:$0xff] %vm1368, %v1349
        %1383 = vst.msk [vmem:[%s145 + $0x70] sm:$0xff] %vm1368, %v1350
        %1384 = vst.msk [vmem:[%s145 + $0x78] sm:$0xff] %vm1368, %v1351
        %1385 = vst.msk [vmem:[%s145 + $0x80] sm:$0xff] %vm1368, %v1352
        %1386 = vst.msk [vmem:[%s145 + $0x88] sm:$0xff] %vm1368, %v1353
        %1387 = vst.msk [vmem:[%s145 + $0x90] sm:$0xff] %vm1368, %v1354
        %1388 = vst.msk [vmem:[%s145 + $0x98] sm:$0xff] %vm1368, %v1355
        %1389 = vst.msk [vmem:[%s145 + $0xa0] sm:$0xff] %vm1368, %v1356
        %1390 = vst.msk [vmem:[%s145 + $0xa8] sm:$0xff] %vm1368, %v1357
        %1391 = vst.msk [vmem:[%s145 + $0xb0] sm:$0xff] %vm1368, %v1358
        %1392 = vst.msk [vmem:[%s145 + $0xb8] sm:$0xff] %vm1368, %v1359
        %1393 = vst.msk [vmem:[%s145 + $0xc0] sm:$0xff] %vm1368, %v1360
        %1394 = vst.msk [vmem:[%s145 + $0xc8] sm:$0xff] %vm1368, %v1361
        %1395 = vst.msk [vmem:[%s145 + $0xd0] sm:$0xff] %vm1368, %v1362
        %1396 = vst.msk [vmem:[%s145 + $0xd8] sm:$0xff] %vm1368, %v1363
        %1397 = vst.msk [vmem:[%s145 + $0xe0] sm:$0xff] %vm1368, %v1364
        %1398 = vst.msk [vmem:[%s145 + $0xe8] sm:$0xff] %vm1368, %v1365
        %1399 = vst.msk [vmem:[%s145 + $0xf0] sm:$0xff] %vm1368, %v1366
        %1400 = vst.msk [vmem:[%s145 + $0xf8] sm:$0xff] %vm1368, %v1367
        %s1401 = sand.u32 %s68, 1
        %s1402 = sand.u32 %s68, 1
        %s1403 = smul.addr %s1402, 256
        %s1404 = scalar_lea.vmem [#allocation2], %s1403
        // Predicated region
        $region29: #{feed_forward.3} parent=27 // pred_check
          %p1405 = pneg %p78
        $region30: #{feed_forward.3} parent=27 // pred_check_branch
          %1407 = sbr.rel (%p1405) target = $region32
        $region31: #{feed_forward.3} parent=27 // pred_region
          %s1408 = smul.u32 32, %s13
          %s1409 = ssub.s32 81, %s1408
          %p1410 = scmp.lt.s32.totalorder %s1409, 32
          %s1411 = scalar_select %p1410, %s1409, 32
          %s1412 = smul.u32 128, %s1411
          %p1413 = scmp.ne.s32.totalorder 0, %s1412
          %s1414 = smul.addr %s1408, 8
          %s1415 = scalar_lea.vmem %s2, %s1414
          // Predicated region
          $region33: #{feed_forward.3} parent=31 // pred_check
            %p1416 = pneg %p1413
          $region34: #{feed_forward.3} parent=31 // pred_check_branch
            %1418 = sbr.rel (%p1416) target = $region36
          $region35: #{feed_forward.3} parent=31 // pred_region
            // Predicated region
            $region37: #{feed_forward.3} parent=35 // pred_check
              _
            $region38: #{feed_forward.3} parent=35 // pred_check_branch
              %1420 = sbr.rel (0) target = $region40
            $region39: #{feed_forward.3} parent=35 // pred_region
              // Predicated region
              $region59: #{feed_forward.3} parent=39 // pred_check
                _
              $region60: #{feed_forward.3} parent=39 // pred_check_branch
                %1532 = sbr.rel (0) target = $region62
              $region61: #{feed_forward.3} parent=39 // pred_region
                %s1533 = sshrl.u32 %s1411, 5
                // While loop
                $region63: #{feed_forward.3} parent=61 // loop_pre_header
                  _
                $region64: #{feed_forward.3} parent=61 // loop_header
                  %s1535 = sphi 0, %s1537
                  %p1536 = scmp.ge.s32.totalorder %s1535, %s1533
                  %s1540 = sphi 0, %s1609
                  %s1541 = sphi %s1404, %s1612
                  %s1542 = sphi %s1415, %s1613
                $region65: #{feed_forward.3} parent=61 // loop_header_branch
                  %1539 = sbr.rel (%p1536) target = $region69
                $region66: #{feed_forward.3} parent=61 // loop_body
                  %v1543 = vld [vmem:[%s1541] sm:$0xff]
                  %1544 = vst [vmem:[%s1542] sm:$0xff] %v1543
                  %v1545 = vld [vmem:[%s1541 + $0x8] sm:$0xff]
                  %1546 = vst [vmem:[%s1542 + $0x8] sm:$0xff] %v1545
                  %v1547 = vld [vmem:[%s1541 + $0x10] sm:$0xff]
                  %1548 = vst [vmem:[%s1542 + $0x10] sm:$0xff] %v1547
                  %v1549 = vld [vmem:[%s1541 + $0x18] sm:$0xff]
                  %1550 = vst [vmem:[%s1542 + $0x18] sm:$0xff] %v1549
                  %v1551 = vld [vmem:[%s1541 + $0x20] sm:$0xff]
                  %1552 = vst [vmem:[%s1542 + $0x20] sm:$0xff] %v1551
                  %v1553 = vld [vmem:[%s1541 + $0x28] sm:$0xff]
                  %1554 = vst [vmem:[%s1542 + $0x28] sm:$0xff] %v1553
                  %v1555 = vld [vmem:[%s1541 + $0x30] sm:$0xff]
                  %1556 = vst [vmem:[%s1542 + $0x30] sm:$0xff] %v1555
                  %v1557 = vld [vmem:[%s1541 + $0x38] sm:$0xff]
                  %1558 = vst [vmem:[%s1542 + $0x38] sm:$0xff] %v1557
                  %v1559 = vld [vmem:[%s1541 + $0x40] sm:$0xff]
                  %1560 = vst [vmem:[%s1542 + $0x40] sm:$0xff] %v1559
                  %v1561 = vld [vmem:[%s1541 + $0x48] sm:$0xff]
                  %1562 = vst [vmem:[%s1542 + $0x48] sm:$0xff] %v1561
                  %v1563 = vld [vmem:[%s1541 + $0x50] sm:$0xff]
                  %1564 = vst [vmem:[%s1542 + $0x50] sm:$0xff] %v1563
                  %v1565 = vld [vmem:[%s1541 + $0x58] sm:$0xff]
                  %1566 = vst [vmem:[%s1542 + $0x58] sm:$0xff] %v1565
                  %v1567 = vld [vmem:[%s1541 + $0x60] sm:$0xff]
                  %1568 = vst [vmem:[%s1542 + $0x60] sm:$0xff] %v1567
                  %v1569 = vld [vmem:[%s1541 + $0x68] sm:$0xff]
                  %1570 = vst [vmem:[%s1542 + $0x68] sm:$0xff] %v1569
                  %v1571 = vld [vmem:[%s1541 + $0x70] sm:$0xff]
                  %1572 = vst [vmem:[%s1542 + $0x70] sm:$0xff] %v1571
                  %v1573 = vld [vmem:[%s1541 + $0x78] sm:$0xff]
                  %1574 = vst [vmem:[%s1542 + $0x78] sm:$0xff] %v1573
                  %v1575 = vld [vmem:[%s1541 + $0x80] sm:$0xff]
                  %1576 = vst [vmem:[%s1542 + $0x80] sm:$0xff] %v1575
                  %v1577 = vld [vmem:[%s1541 + $0x88] sm:$0xff]
                  %1578 = vst [vmem:[%s1542 + $0x88] sm:$0xff] %v1577
                  %v1579 = vld [vmem:[%s1541 + $0x90] sm:$0xff]
                  %1580 = vst [vmem:[%s1542 + $0x90] sm:$0xff] %v1579
                  %v1581 = vld [vmem:[%s1541 + $0x98] sm:$0xff]
                  %1582 = vst [vmem:[%s1542 + $0x98] sm:$0xff] %v1581
                  %v1583 = vld [vmem:[%s1541 + $0xa0] sm:$0xff]
                  %1584 = vst [vmem:[%s1542 + $0xa0] sm:$0xff] %v1583
                  %v1585 = vld [vmem:[%s1541 + $0xa8] sm:$0xff]
                  %1586 = vst [vmem:[%s1542 + $0xa8] sm:$0xff] %v1585
                  %v1587 = vld [vmem:[%s1541 + $0xb0] sm:$0xff]
                  %1588 = vst [vmem:[%s1542 + $0xb0] sm:$0xff] %v1587
                  %v1589 = vld [vmem:[%s1541 + $0xb8] sm:$0xff]
                  %1590 = vst [vmem:[%s1542 + $0xb8] sm:$0xff] %v1589
                  %v1591 = vld [vmem:[%s1541 + $0xc0] sm:$0xff]
                  %1592 = vst [vmem:[%s1542 + $0xc0] sm:$0xff] %v1591
                  %v1593 = vld [vmem:[%s1541 + $0xc8] sm:$0xff]
                  %1594 = vst [vmem:[%s1542 + $0xc8] sm:$0xff] %v1593
                  %v1595 = vld [vmem:[%s1541 + $0xd0] sm:$0xff]
                  %1596 = vst [vmem:[%s1542 + $0xd0] sm:$0xff] %v1595
                  %v1597 = vld [vmem:[%s1541 + $0xd8] sm:$0xff]
                  %1598 = vst [vmem:[%s1542 + $0xd8] sm:$0xff] %v1597
                  %v1599 = vld [vmem:[%s1541 + $0xe0] sm:$0xff]
                  %1600 = vst [vmem:[%s1542 + $0xe0] sm:$0xff] %v1599
                  %v1601 = vld [vmem:[%s1541 + $0xe8] sm:$0xff]
                  %1602 = vst [vmem:[%s1542 + $0xe8] sm:$0xff] %v1601
                  %v1603 = vld [vmem:[%s1541 + $0xf0] sm:$0xff]
                  %1604 = vst [vmem:[%s1542 + $0xf0] sm:$0xff] %v1603
                  %v1605 = vld [vmem:[%s1541 + $0xf8] sm:$0xff]
                  %1606 = vst [vmem:[%s1542 + $0xf8] sm:$0xff] %v1605
                  %s1607 = sadd.s32 1, %s1540
                  %p1608 = scmp.ge.s32.totalorder %s1607, %s1533
                  %s1609 = scalar_select %p1608, 0, %s1607
                  %s1610 = smul.u32 %s1609, 256
                  %s1611 = smul.u32 %s1609, 256
                  %s1612 = scalar_lea.vmem %s1404, %s1610 [#allocation2]
                  %s1613 = scalar_lea.vmem %s1415, %s1611
                $region67: #{feed_forward.3} parent=61 // loop_footer
                  %s1537 = sadd.s32 %s1535, 1
                $region68: #{feed_forward.3} parent=61 // loop_footer_branch
                  %1534 = sbr.rel target = $region64
                $region69: #{feed_forward.3} parent=61 // loop_exit
                  _
                %s1614 = sshrl.u32 %s1411, 5
                %s1615 = sand.u32 %s1411, 31
                %s1616 = smul.u32 %s1614, 32
                %s1617 = smul.u32 8, %s1616
                %s1618 = scalar_lea.vmem %s1404, %s1617 [#allocation2]
                %s1619 = smul.u32 8, %s1616
                %s1620 = scalar_lea.vmem %s1415, %s1619
                // While loop
                $region70: #{feed_forward.3} parent=61 // loop_pre_header
                  _
                $region71: #{feed_forward.3} parent=61 // loop_header
                  %s1622 = sphi 0, %s1624
                  %p1623 = scmp.ge.s32.totalorder %s1622, %s1615
                  %s1627 = sphi 0, %s1634
                  %s1628 = sphi %s1618, %s1637
                  %s1629 = sphi %s1620, %s1638
                $region72: #{feed_forward.3} parent=61 // loop_header_branch
                  %1626 = sbr.rel (%p1623) target = $region76
                $region73: #{feed_forward.3} parent=61 // loop_body
                  %v1630 = vld [vmem:[%s1628] sm:$0xff]
                  %1631 = vst [vmem:[%s1629] sm:$0xff] %v1630
                  %s1632 = sadd.s32 1, %s1627
                  %p1633 = scmp.ge.s32.totalorder %s1632, %s1615
                  %s1634 = scalar_select %p1633, 0, %s1632
                  %s1635 = smul.u32 %s1634, 8
                  %s1636 = smul.u32 %s1634, 8
                  %s1637 = scalar_lea.vmem %s1618, %s1635 [#allocation2]
                  %s1638 = scalar_lea.vmem %s1620, %s1636
                $region74: #{feed_forward.3} parent=61 // loop_footer
                  %s1624 = sadd.s32 %s1622, 1
                $region75: #{feed_forward.3} parent=61 // loop_footer_branch
                  %1621 = sbr.rel target = $region71
                $region76: #{feed_forward.3} parent=61 // loop_exit
                  _
              $region62: #{feed_forward.3} parent=39 // pred_fallthru
                _
              // Predicated region
              $region77: #{feed_forward.3} parent=39 // pred_check
                _
              $region78: #{feed_forward.3} parent=39 // pred_check_branch
                %1640 = sbr.rel target = $region80
              $region79: #{feed_forward.3} parent=39 // pred_region
                _
              $region80: #{feed_forward.3} parent=39 // pred_fallthru
                _
            $region40: #{feed_forward.3} parent=35 // pred_fallthru
              _
            // Predicated region
            $region41: #{feed_forward.3} parent=35 // pred_check
              _
            $region42: #{feed_forward.3} parent=35 // pred_check_branch
              %1422 = sbr.rel target = $region44
            $region43: #{feed_forward.3} parent=35 // pred_region
              %s1424 = ssub.s32 256, 1
              %s1425 = sshrl.u32 %s1411, 5
              // While loop
              $region45: #{feed_forward.3} parent=43 // loop_pre_header
                _
              $region46: #{feed_forward.3} parent=43 // loop_header
                %s1427 = sphi 0, %s1429
                %p1428 = scmp.ge.s32.totalorder %s1427, %s1425
                %s1432 = sphi 0, %s1501
                %s1433 = sphi %s1404, %s1504
                %s1434 = sphi %s1415, %s1505
              $region47: #{feed_forward.3} parent=43 // loop_header_branch
                %1431 = sbr.rel (%p1428) target = $region51
              $region48: #{feed_forward.3} parent=43 // loop_body
                %v1435 = vld [vmem:[%s1433] sm:%s1424]
                %1436 = vst [vmem:[%s1434] sm:%s1424] %v1435
                %v1437 = vld [vmem:[%s1433 + $0x8] sm:%s1424]
                %1438 = vst [vmem:[%s1434 + $0x8] sm:%s1424] %v1437
                %v1439 = vld [vmem:[%s1433 + $0x10] sm:%s1424]
                %1440 = vst [vmem:[%s1434 + $0x10] sm:%s1424] %v1439
                %v1441 = vld [vmem:[%s1433 + $0x18] sm:%s1424]
                %1442 = vst [vmem:[%s1434 + $0x18] sm:%s1424] %v1441
                %v1443 = vld [vmem:[%s1433 + $0x20] sm:%s1424]
                %1444 = vst [vmem:[%s1434 + $0x20] sm:%s1424] %v1443
                %v1445 = vld [vmem:[%s1433 + $0x28] sm:%s1424]
                %1446 = vst [vmem:[%s1434 + $0x28] sm:%s1424] %v1445
                %v1447 = vld [vmem:[%s1433 + $0x30] sm:%s1424]
                %1448 = vst [vmem:[%s1434 + $0x30] sm:%s1424] %v1447
                %v1449 = vld [vmem:[%s1433 + $0x38] sm:%s1424]
                %1450 = vst [vmem:[%s1434 + $0x38] sm:%s1424] %v1449
                %v1451 = vld [vmem:[%s1433 + $0x40] sm:%s1424]
                %1452 = vst [vmem:[%s1434 + $0x40] sm:%s1424] %v1451
                %v1453 = vld [vmem:[%s1433 + $0x48] sm:%s1424]
                %1454 = vst [vmem:[%s1434 + $0x48] sm:%s1424] %v1453
                %v1455 = vld [vmem:[%s1433 + $0x50] sm:%s1424]
                %1456 = vst [vmem:[%s1434 + $0x50] sm:%s1424] %v1455
                %v1457 = vld [vmem:[%s1433 + $0x58] sm:%s1424]
                %1458 = vst [vmem:[%s1434 + $0x58] sm:%s1424] %v1457
                %v1459 = vld [vmem:[%s1433 + $0x60] sm:%s1424]
                %1460 = vst [vmem:[%s1434 + $0x60] sm:%s1424] %v1459
                %v1461 = vld [vmem:[%s1433 + $0x68] sm:%s1424]
                %1462 = vst [vmem:[%s1434 + $0x68] sm:%s1424] %v1461
                %v1463 = vld [vmem:[%s1433 + $0x70] sm:%s1424]
                %1464 = vst [vmem:[%s1434 + $0x70] sm:%s1424] %v1463
                %v1465 = vld [vmem:[%s1433 + $0x78] sm:%s1424]
                %1466 = vst [vmem:[%s1434 + $0x78] sm:%s1424] %v1465
                %v1467 = vld [vmem:[%s1433 + $0x80] sm:%s1424]
                %1468 = vst [vmem:[%s1434 + $0x80] sm:%s1424] %v1467
                %v1469 = vld [vmem:[%s1433 + $0x88] sm:%s1424]
                %1470 = vst [vmem:[%s1434 + $0x88] sm:%s1424] %v1469
                %v1471 = vld [vmem:[%s1433 + $0x90] sm:%s1424]
                %1472 = vst [vmem:[%s1434 + $0x90] sm:%s1424] %v1471
                %v1473 = vld [vmem:[%s1433 + $0x98] sm:%s1424]
                %1474 = vst [vmem:[%s1434 + $0x98] sm:%s1424] %v1473
                %v1475 = vld [vmem:[%s1433 + $0xa0] sm:%s1424]
                %1476 = vst [vmem:[%s1434 + $0xa0] sm:%s1424] %v1475
                %v1477 = vld [vmem:[%s1433 + $0xa8] sm:%s1424]
                %1478 = vst [vmem:[%s1434 + $0xa8] sm:%s1424] %v1477
                %v1479 = vld [vmem:[%s1433 + $0xb0] sm:%s1424]
                %1480 = vst [vmem:[%s1434 + $0xb0] sm:%s1424] %v1479
                %v1481 = vld [vmem:[%s1433 + $0xb8] sm:%s1424]
                %1482 = vst [vmem:[%s1434 + $0xb8] sm:%s1424] %v1481
                %v1483 = vld [vmem:[%s1433 + $0xc0] sm:%s1424]
                %1484 = vst [vmem:[%s1434 + $0xc0] sm:%s1424] %v1483
                %v1485 = vld [vmem:[%s1433 + $0xc8] sm:%s1424]
                %1486 = vst [vmem:[%s1434 + $0xc8] sm:%s1424] %v1485
                %v1487 = vld [vmem:[%s1433 + $0xd0] sm:%s1424]
                %1488 = vst [vmem:[%s1434 + $0xd0] sm:%s1424] %v1487
                %v1489 = vld [vmem:[%s1433 + $0xd8] sm:%s1424]
                %1490 = vst [vmem:[%s1434 + $0xd8] sm:%s1424] %v1489
                %v1491 = vld [vmem:[%s1433 + $0xe0] sm:%s1424]
                %1492 = vst [vmem:[%s1434 + $0xe0] sm:%s1424] %v1491
                %v1493 = vld [vmem:[%s1433 + $0xe8] sm:%s1424]
                %1494 = vst [vmem:[%s1434 + $0xe8] sm:%s1424] %v1493
                %v1495 = vld [vmem:[%s1433 + $0xf0] sm:%s1424]
                %1496 = vst [vmem:[%s1434 + $0xf0] sm:%s1424] %v1495
                %v1497 = vld [vmem:[%s1433 + $0xf8] sm:%s1424]
                %1498 = vst [vmem:[%s1434 + $0xf8] sm:%s1424] %v1497
                %s1499 = sadd.s32 1, %s1432
                %p1500 = scmp.ge.s32.totalorder %s1499, %s1425
                %s1501 = scalar_select %p1500, 0, %s1499
                %s1502 = smul.u32 %s1501, 256
                %s1503 = smul.u32 %s1501, 256
                %s1504 = scalar_lea.vmem %s1404, %s1502 [#allocation2]
                %s1505 = scalar_lea.vmem %s1415, %s1503
              $region49: #{feed_forward.3} parent=43 // loop_footer
                %s1429 = sadd.s32 %s1427, 1
              $region50: #{feed_forward.3} parent=43 // loop_footer_branch
                %1426 = sbr.rel target = $region46
              $region51: #{feed_forward.3} parent=43 // loop_exit
                _
              %s1506 = sshrl.u32 %s1411, 5
              %s1507 = sand.u32 %s1411, 31
              %s1508 = smul.u32 %s1506, 32
              %s1509 = smul.u32 8, %s1508
              %s1510 = scalar_lea.vmem %s1404, %s1509 [#allocation2]
              %s1511 = smul.u32 8, %s1508
              %s1512 = scalar_lea.vmem %s1415, %s1511
              // While loop
              $region52: #{feed_forward.3} parent=43 // loop_pre_header
                _
              $region53: #{feed_forward.3} parent=43 // loop_header
                %s1514 = sphi 0, %s1516
                %p1515 = scmp.ge.s32.totalorder %s1514, %s1507
                %s1519 = sphi 0, %s1526
                %s1520 = sphi %s1510, %s1529
                %s1521 = sphi %s1512, %s1530
              $region54: #{feed_forward.3} parent=43 // loop_header_branch
                %1518 = sbr.rel (%p1515) target = $region58
              $region55: #{feed_forward.3} parent=43 // loop_body
                %v1522 = vld [vmem:[%s1520] sm:%s1424]
                %1523 = vst [vmem:[%s1521] sm:%s1424] %v1522
                %s1524 = sadd.s32 1, %s1519
                %p1525 = scmp.ge.s32.totalorder %s1524, %s1507
                %s1526 = scalar_select %p1525, 0, %s1524
                %s1527 = smul.u32 %s1526, 8
                %s1528 = smul.u32 %s1526, 8
                %s1529 = scalar_lea.vmem %s1510, %s1527 [#allocation2]
                %s1530 = scalar_lea.vmem %s1512, %s1528
              $region56: #{feed_forward.3} parent=43 // loop_footer
                %s1516 = sadd.s32 %s1514, 1
              $region57: #{feed_forward.3} parent=43 // loop_footer_branch
                %1513 = sbr.rel target = $region53
              $region58: #{feed_forward.3} parent=43 // loop_exit
                _
            $region44: #{feed_forward.3} parent=35 // pred_fallthru
              _
          $region36: #{feed_forward.3} parent=31 // pred_fallthru
            _
          %1641 = vnop
        $region32: #{feed_forward.3} parent=27 // pred_fallthru
          _
      $region28: #{feed_forward.3} parent=5 // pred_fallthru
        _
      %p1642 = scmp.le.s32.totalorder 2, %s8
      // Predicated region
      $region81: #{feed_forward.3} parent=5 // pred_check
        %p1643 = pneg %p1642
      $region82: #{feed_forward.3} parent=5 // pred_check_branch
        %1645 = sbr.rel (%p1643) target = $region84
      $region83: #{feed_forward.3} parent=5 // pred_region
        %s1646 = ssub.s32 %s8, 2
        // Predicated region
        $region85: #{feed_forward.3} parent=83 // pred_check
          %p1647 = pneg %p84
        $region86: #{feed_forward.3} parent=83 // pred_check_branch
          %1649 = sbr.rel (%p1647) target = $region88
        $region87: #{feed_forward.3} parent=83 // pred_region
          %s1650 = sand.u32 %s69, 1
          %s1651 = sand.u32 %s69, 1
          %s1652 = smul.addr %s1651, 256
          %s1653 = scalar_lea.vmem [#allocation2], %s1652
        $region88: #{feed_forward.3} parent=83 // pred_fallthru
          _
      $region84: #{feed_forward.3} parent=5 // pred_fallthru
        _
    $region6: #{feed_forward.3} parent=1 // loop_footer
      %s12 = sadd.s32 1, %s8
    $region7: #{feed_forward.3} parent=1 // loop_footer_branch
      %7 = sbr.rel target = $region3
    $region8: #{feed_forward.3} parent=1 // loop_exit
      _

// kernel: feed_forward.5
$region0: #{feed_forward.5}
  #allocation0 [shape = 'u32[]', space=smem, size = 0x4, offset = 0x4, fixed_abs, tag = 'smem constant byte address 0x4 - core index']
  #allocation1 [shape = 'u32[144,128]{1,0:T(1,128)}', space=vmem, size = 0x12000, scoped, tag = 'internal scratch']
  %s0 = inlined_call_operand.vmem [shape: bf16[512,64], index: 0, kind: input, shape index: {}]
  %s1 = inlined_call_operand.vmem [shape: bf16[64,32], index: 1, kind: input, shape index: {}]
  %s2 = inlined_call_operand.hbm [shape: f32[512,32], index: 2, kind: output, shape index: {}]
  %s3 = sld [smem:[#allocation0]]
  $region41: #{feed_forward.5} parent=0
    _
  %s5 = ssub.s32 1, %s3
  %s6 = scalar_select 0, %s5, %s3
  $region1: #{feed_forward.5} parent=0
    #allocation2 [shape = 'u8[262144]{0}', space=vmem, size = 0x40000, scoped, tag = 'output window, operand 0']
    #allocation3 [shape = 's32[2]{0}', space=sflag, size = 0x8, scoped, tag = 'scoped memory for feed_forward.5']
    %7 = vsyncpa [#allocation3], 0
    %s8 = scalar_lea.sflag [#allocation3], 1
    %9 = vsyncpa %s8, 0
    loop: start=0, step=1, limit=4
    $region2: #{feed_forward.5} parent=1 // loop_pre_header
      _
    $region3: #{feed_forward.5} parent=1 // loop_header
      %s11 = sphi 0, %s15
      %p12 = scmp.ge.s32.totalorder %s11, 4
      %s21 = sphi 0, %s23
      %s24 = sphi 0, %s21
      %s25 = sphi 0, %s24
      %s41 = sphi 0, %s25
      %s45 = sphi 0, %s45
      %s47 = sphi 0, %s45
      %s48 = sphi 0, %s47
      %s62 = sphi 0, %s48
      %s68 = sphi 0, %s70
      %s71 = sphi 0, %s68
      %s72 = sphi 0, %s71
      %s88 = sphi 0, %s72
    $region4: #{feed_forward.5} parent=1 // loop_header_branch
      %14 = sbr.rel (%p12) target = $region8
    $region5: #{feed_forward.5} parent=1 // loop_body
      %s16 = ssub.s32 %s11, 1
      %s17 = ssub.s32 %s11, 2
      %s18 = sadd.s32 %s11, 1
      %s19 = ssub.s32 %s11, %s18
      %p20 = scmp.eq.s32.totalorder %s19, 0
      %s22 = sadd.s32 %s21, 1
      %s23 = scalar_select %p20, %s21, %s22
      %p26 = pneg %p20
      %p27 = scmp.eq.s32.totalorder %s11, 1
      %p28 = por %p26, %p27
      %p29 = scmp.ne.s32.totalorder %s21, %s24
      %p30 = scmp.eq.s32.totalorder %s11, 0
      %p31 = por %p29, %p30
      %p32 = scmp.ne.s32.totalorder %s21, %s24
      %p33 = scmp.eq.s32.totalorder %s16, 1
      %p34 = por %p32, %p33
      %p35 = scmp.ne.s32.totalorder %s24, %s25
      %p36 = scmp.eq.s32.totalorder %s16, 0
      %p37 = por %p35, %p36
      %p38 = scmp.ne.s32.totalorder %s24, %s25
      %p39 = scmp.eq.s32.totalorder %s17, 1
      %p40 = por %p38, %p39
      %p42 = scmp.ne.s32.totalorder %s25, %s41
      %p43 = scmp.eq.s32.totalorder %s17, 0
      %p44 = por %p42, %p43
      %s46 = sadd.s32 %s45, 1
      %p49 = scmp.eq.s32.totalorder %s11, 1
      %p50 = scmp.ne.s32.totalorder %s45, %s47
      %p51 = scmp.eq.s32.totalorder %s11, 0
      %p52 = por %p50, %p51
      %p53 = scmp.ne.s32.totalorder %s45, %s47
      %p54 = scmp.eq.s32.totalorder %s16, 1
      %p55 = por %p53, %p54
      %p56 = scmp.ne.s32.totalorder %s47, %s48
      %p57 = scmp.eq.s32.totalorder %s16, 0
      %p58 = por %p56, %p57
      %p59 = scmp.ne.s32.totalorder %s47, %s48
      %p60 = scmp.eq.s32.totalorder %s17, 1
      %p61 = por %p59, %p60
      %p63 = scmp.ne.s32.totalorder %s48, %s62
      %p64 = scmp.eq.s32.totalorder %s17, 0
      %p65 = por %p63, %p64
      %s66 = ssub.s32 %s11, %s18
      %p67 = scmp.eq.s32.totalorder %s66, 0
      %s69 = sadd.s32 %s68, 1
      %s70 = scalar_select %p67, %s68, %s69
      %p73 = pneg %p67
      %p74 = scmp.eq.s32.totalorder %s11, 1
      %p75 = por %p73, %p74
      %p76 = scmp.ne.s32.totalorder %s68, %s71
      %p77 = scmp.eq.s32.totalorder %s11, 0
      %p78 = por %p76, %p77
      %p79 = scmp.ne.s32.totalorder %s68, %s71
      %p80 = scmp.eq.s32.totalorder %s16, 1
      %p81 = por %p79, %p80
      %p82 = scmp.ne.s32.totalorder %s71, %s72
      %p83 = scmp.eq.s32.totalorder %s16, 0
      %p84 = por %p82, %p83
      %p85 = scmp.ne.s32.totalorder %s71, %s72
      %p86 = scmp.eq.s32.totalorder %s17, 1
      %p87 = por %p85, %p86
      %p89 = scmp.ne.s32.totalorder %s72, %s88
      %p90 = scmp.eq.s32.totalorder %s17, 0
      %p91 = por %p89, %p90
      %p92 = scmp.le.s32.totalorder 1, %s11
      %p93 = scmp.lt.s32.totalorder %s11, 3
      %p94 = pnand %p92, %p93
      %p95 = pneg %p94
      // Predicated region
      $region9: #{feed_forward.5} parent=5 // pred_check
        _
      $region10: #{feed_forward.5} parent=5 // pred_check_branch
        %97 = sbr.rel (%p94) target = $region12
      $region11: #{feed_forward.5} parent=5 // pred_region
        %s98 = ssub.s32 %s11, 1
        // Predicated region
        $region13: #{feed_forward.5} parent=11 // pred_check
          %p99 = pneg %p58
        $region14: #{feed_forward.5} parent=11 // pred_check_branch
          %101 = sbr.rel (%p99) target = $region16
        $region15: #{feed_forward.5} parent=11 // pred_region
          _
        $region16: #{feed_forward.5} parent=11 // pred_fallthru
          _
      $region12: #{feed_forward.5} parent=5 // pred_fallthru
        _
      %p102 = scmp.lt.s32.totalorder %s11, 2
      // Predicated region
      $region17: #{feed_forward.5} parent=5 // pred_check
        %p103 = pneg %p102
      $region18: #{feed_forward.5} parent=5 // pred_check_branch
        %105 = sbr.rel (%p103) target = $region20
      $region19: #{feed_forward.5} parent=5 // pred_region
        // Predicated region
        $region21: #{feed_forward.5} parent=19 // pred_check
          %p106 = pneg %p31
        $region22: #{feed_forward.5} parent=19 // pred_check_branch
          %108 = sbr.rel (%p106) target = $region24
        $region23: #{feed_forward.5} parent=19 // pred_region
          %s109 = smul.u32 32, %s11
          %p110 = scmp.lt.s32.totalorder %s109, 63
          %s111 = scalar_select %p110, %s109, 63
          %s112 = smul.addr %s111, 4
          %s113 = scalar_lea.vmem %s0, %s112
          %s114 = smul.u32 32, %s11
        $region24: #{feed_forward.5} parent=19 // pred_fallthru
          _
      $region20: #{feed_forward.5} parent=5 // pred_fallthru
        _
      %p115 = scmp.le.s32.totalorder 1, %s11
      %p116 = scmp.lt.s32.totalorder %s11, 3
      %p117 = pnand %p115, %p116
      %p118 = pneg %p117
      // Predicated region
      $region25: #{feed_forward.5} parent=5 // pred_check
        _
      $region26: #{feed_forward.5} parent=5 // pred_check_branch
        %120 = sbr.rel (%p117) target = $region28
      $region27: #{feed_forward.5} parent=5 // pred_region
        %s121 = ssub.s32 %s11, 1
        %s122 = smul.u32 32, %s16
        %p123 = scmp.lt.s32.totalorder %s122, 63
        %s124 = scalar_select %p123, %s122, 63
        %s125 = smul.addr %s124, 4
        %s126 = scalar_lea.vmem %s0, %s125
        %p127 = pneg %p37
        %p128 = pneg %p34
        %p129 = pneg %p58
        %p130 = pneg %p55
        %p131 = pneg %p84
        %p132 = pneg %p81
        %s133 = sand.u32 %s71, 1
        %s134 = scalar_lea.sflag [#allocation3], %s133
        %s135 = sand.u32 %s71, 1
        %s136 = smul.addr %s135, 256
        %s137 = scalar_lea.vmem [#allocation2], %s136
        %s138 = smul.u32 32, %s16
        %p139 = scmp.lt.s32.totalorder %s138, 63
        %s140 = scalar_select %p139, %s138, 63
        %s141 = smul.addr %s140, 4
        %s142 = scalar_lea.vmem %s0, %s141
        %s143 = smul.u32 32, %s16
        %s144 = smul.u32 32, %s16
        %v146 = vld [vmem:[%s142] sm:$0xf]
        %v147 = vld [vmem:[%s142 + $0x4] sm:$0xf]
        %v148 = vld [vmem:[%s142 + $0x8] sm:$0xf]
        %v149 = vld [vmem:[%s142 + $0xc] sm:$0xf]
        %v150 = vld [vmem:[%s142 + $0x10] sm:$0xf]
        %v151 = vld [vmem:[%s142 + $0x14] sm:$0xf]
        %v152 = vld [vmem:[%s142 + $0x18] sm:$0xf]
        %v153 = vld [vmem:[%s142 + $0x1c] sm:$0xf]
        %v154 = vld [vmem:[%s142 + $0x20] sm:$0xf]
        %v155 = vld [vmem:[%s142 + $0x24] sm:$0xf]
        %v156 = vld [vmem:[%s142 + $0x28] sm:$0xf]
        %v157 = vld [vmem:[%s142 + $0x2c] sm:$0xf]
        %v158 = vld [vmem:[%s142 + $0x30] sm:$0xf]
        %v159 = vld [vmem:[%s142 + $0x34] sm:$0xf]
        %v160 = vld [vmem:[%s142 + $0x38] sm:$0xf]
        %v161 = vld [vmem:[%s142 + $0x3c] sm:$0xf]
        %v162 = vld [vmem:[%s142 + $0x40] sm:$0xf]
        %v163 = vld [vmem:[%s142 + $0x44] sm:$0xf]
        %v164 = vld [vmem:[%s142 + $0x48] sm:$0xf]
        %v165 = vld [vmem:[%s142 + $0x4c] sm:$0xf]
        %v166 = vld [vmem:[%s142 + $0x50] sm:$0xf]
        %v167 = vld [vmem:[%s142 + $0x54] sm:$0xf]
        %v168 = vld [vmem:[%s142 + $0x58] sm:$0xf]
        %v169 = vld [vmem:[%s142 + $0x5c] sm:$0xf]
        %v170 = vld [vmem:[%s142 + $0x60] sm:$0xf]
        %v171 = vld [vmem:[%s142 + $0x64] sm:$0xf]
        %v172 = vld [vmem:[%s142 + $0x68] sm:$0xf]
        %v173 = vld [vmem:[%s142 + $0x6c] sm:$0xf]
        %v174 = vld [vmem:[%s142 + $0x70] sm:$0xf]
        %v175 = vld [vmem:[%s142 + $0x74] sm:$0xf]
        %v176 = vld [vmem:[%s142 + $0x78] sm:$0xf]
        %v177 = vld [vmem:[%s142 + $0x7c] sm:$0xf]
        %v178 = vld [vmem:[%s1] sm:$0xf]
        %v179 = vld [vmem:[%s1 + $0x4] sm:$0xf]
        %v180 = vld [vmem:[%s1 + $0x8] sm:$0xf]
        %v181 = vld [vmem:[%s1 + $0xc] sm:$0xf]
        %v182 = vld [vmem:[%s1 + $0x10] sm:$0xf]
        %v183 = vld [vmem:[%s1 + $0x14] sm:$0xf]
        %v184 = vld [vmem:[%s1 + $0x18] sm:$0xf]
        %v185 = vld [vmem:[%s1 + $0x1c] sm:$0xf]
        %v218 = vunpack.c.l.b16 %v146
        %v219 = vunpack.c.l.b16 %v147
        %v220 = vunpack.c.l.b16 %v148
        %v221 = vunpack.c.l.b16 %v149
        %v222 = vunpack.c.l.b16 %v150
        %v223 = vunpack.c.l.b16 %v151
        %v224 = vunpack.c.l.b16 %v152
        %v225 = vunpack.c.l.b16 %v153
        %v226 = vunpack.c.l.b16 %v154
        %v227 = vunpack.c.l.b16 %v155
        %v228 = vunpack.c.l.b16 %v156
        %v229 = vunpack.c.l.b16 %v157
        %v230 = vunpack.c.l.b16 %v158
        %v231 = vunpack.c.l.b16 %v159
        %v232 = vunpack.c.l.b16 %v160
        %v233 = vunpack.c.l.b16 %v161
        %v234 = vunpack.c.l.b16 %v162
        %v235 = vunpack.c.l.b16 %v163
        %v236 = vunpack.c.l.b16 %v164
        %v237 = vunpack.c.l.b16 %v165
        %v238 = vunpack.c.l.b16 %v166
        %v239 = vunpack.c.l.b16 %v167
        %v240 = vunpack.c.l.b16 %v168
        %v241 = vunpack.c.l.b16 %v169
        %v242 = vunpack.c.l.b16 %v170
        %v243 = vunpack.c.l.b16 %v171
        %v244 = vunpack.c.l.b16 %v172
        %v245 = vunpack.c.l.b16 %v173
        %v246 = vunpack.c.l.b16 %v174
        %v247 = vunpack.c.l.b16 %v175
        %v248 = vunpack.c.l.b16 %v176
        %v249 = vunpack.c.l.b16 %v177
        %v250 = vpack.c.b16 %v219, %v218
        %v251 = vpack.c.b16 %v221, %v220
        %v252 = vpack.c.b16 %v223, %v222
        %v253 = vpack.c.b16 %v225, %v224
        %v254 = vpack.c.b16 %v227, %v226
        %v255 = vpack.c.b16 %v229, %v228
        %v256 = vpack.c.b16 %v231, %v230
        %v257 = vpack.c.b16 %v233, %v232
        %v258 = vpack.c.b16 %v235, %v234
        %v259 = vpack.c.b16 %v237, %v236
        %v260 = vpack.c.b16 %v239, %v238
        %v261 = vpack.c.b16 %v241, %v240
        %v262 = vpack.c.b16 %v243, %v242
        %v263 = vpack.c.b16 %v245, %v244
        %v264 = vpack.c.b16 %v247, %v246
        %v265 = vpack.c.b16 %v249, %v248
        %v274 = vunpack.c.l.b16 %v178
        %v275 = vunpack.c.l.b16 %v179
        %v276 = vunpack.c.l.b16 %v180
        %v277 = vunpack.c.l.b16 %v181
        %v278 = vunpack.c.l.b16 %v182
        %v279 = vunpack.c.l.b16 %v183
        %v280 = vunpack.c.l.b16 %v184
        %v281 = vunpack.c.l.b16 %v185
        %v282 = vpack.c.b16 %v275, %v274
        %v283 = vpack.c.b16 %v277, %v276
        %v284 = vpack.c.b16 %v279, %v278
        %v285 = vpack.c.b16 %v281, %v280
        %vm290 = vcmask 523264
        %v292 = vsel %vm290, %v250, 0
        %v295 = vsel %vm290, %v251, 0
        %v298 = vsel %vm290, %v252, 0
        %v301 = vsel %vm290, %v253, 0
        %v304 = vsel %vm290, %v254, 0
        %v307 = vsel %vm290, %v255, 0
        %v310 = vsel %vm290, %v256, 0
        %v313 = vsel %vm290, %v257, 0
        %v316 = vsel %vm290, %v258, 0
        %v319 = vsel %vm290, %v259, 0
        %v322 = vsel %vm290, %v260, 0
        %v325 = vsel %vm290, %v261, 0
        %v328 = vsel %vm290, %v262, 0
        %v331 = vsel %vm290, %v263, 0
        %v334 = vsel %vm290, %v264, 0
        %v337 = vsel %vm290, %v265, 0
        %339 = vmatprep.subr.bf16.mxu0 0
        %340 = vmatpush1.bf16.msra.mxu0 0
        %341 = vmatprep.subr.bf16.mxu0 0
        %342 = vmatpush1.bf16.msra.mxu0 0
        %343 = vmatprep.subr.bf16.mxu0 0
        %344 = vmatpush1.bf16.msra.mxu0 0
        %345 = vmatprep.subr.bf16.mxu0 0
        %346 = vmatpush1.bf16.msra.mxu0 0
        %347 = vmatprep.subr.bf16.mxu0 0
        %348 = vmatpush1.bf16.msra.mxu0 %v285
        %349 = vmatprep.subr.bf16.mxu0 0
        %350 = vmatpush1.bf16.msra.mxu0 %v284
        %351 = vmatprep.subr.bf16.mxu0 0
        %352 = vmatpush1.bf16.msra.mxu0 %v283
        %353 = vmatprep.subr.bf16.mxu0 0
        %354 = vmatpush1.bf16.msra.mxu0 %v282
        %355 = vmatprep.subr.bf16.mxu0 0
        %356 = vmatpush2.bf16.msra.mxu0 0
        %357 = vmatprep.subr.bf16.mxu0 0
        %358 = vmatpush2.bf16.msra.mxu0 0
        %359 = vmatprep.subr.bf16.mxu0 0
        %360 = vmatpush2.bf16.msra.mxu0 0
        %361 = vmatprep.subr.bf16.mxu0 0
        %362 = vmatpush2.bf16.msra.mxu0 0
        %363 = vmatprep.subr.bf16.mxu0 0
        %364 = vmatpush2.bf16.msra.mxu0 0
        %365 = vmatprep.subr.bf16.mxu0 0
        %366 = vmatpush2.bf16.msra.mxu0 0
        %367 = vmatprep.subr.bf16.mxu0 0
        %368 = vmatpush2.bf16.msra.mxu0 0
        %369 = vmatprep.subr.bf16.mxu0 0
        %370 = vmatpush2.bf16.msra.mxu0 0
        %371 = vmatprep.mubr.bf16.mxu0 0
        %372 = vmatmul.mubr.bf16.gmra.mxu0 %v292
        %v373 = vpop.f32.mrf.mxu0
        %v374 = vadd.f32 0.0, %v373
        %v375 = vpop.f32.mrf.mxu0
        %v376 = vpop.f32.mrf.mxu0
        %v377 = vadd.f32 0.0, %v376
        %v378 = vpop.f32.mrf.mxu0
        %379 = vmatprep.mubr.bf16.mxu0 0
        %380 = vmatmul.mubr.bf16.gmra.mxu0 %v295
        %v381 = vpop.f32.mrf.mxu0
        %v382 = vadd.f32 0.0, %v381
        %v383 = vpop.f32.mrf.mxu0
        %v384 = vpop.f32.mrf.mxu0
        %v385 = vadd.f32 0.0, %v384
        %v386 = vpop.f32.mrf.mxu0
        %387 = vmatprep.mubr.bf16.mxu0 0
        %388 = vmatmul.mubr.bf16.gmra.mxu0 %v298
        %v389 = vpop.f32.mrf.mxu0
        %v390 = vadd.f32 0.0, %v389
        %v391 = vpop.f32.mrf.mxu0
        %v392 = vpop.f32.mrf.mxu0
        %v393 = vadd.f32 0.0, %v392
        %v394 = vpop.f32.mrf.mxu0
        %395 = vmatprep.mubr.bf16.mxu0 0
        %396 = vmatmul.mubr.bf16.gmra.mxu0 %v301
        %v397 = vpop.f32.mrf.mxu0
        %v398 = vadd.f32 0.0, %v397
        %v399 = vpop.f32.mrf.mxu0
        %v400 = vpop.f32.mrf.mxu0
        %v401 = vadd.f32 0.0, %v400
        %v402 = vpop.f32.mrf.mxu0
        %403 = vmatprep.mubr.bf16.mxu0 0
        %404 = vmatmul.mubr.bf16.gmra.mxu0 %v304
        %v405 = vpop.f32.mrf.mxu0
        %v406 = vadd.f32 0.0, %v405
        %v407 = vpop.f32.mrf.mxu0
        %v408 = vpop.f32.mrf.mxu0
        %v409 = vadd.f32 0.0, %v408
        %v410 = vpop.f32.mrf.mxu0
        %411 = vmatprep.mubr.bf16.mxu0 0
        %412 = vmatmul.mubr.bf16.gmra.mxu0 %v307
        %v413 = vpop.f32.mrf.mxu0
        %v414 = vadd.f32 0.0, %v413
        %v415 = vpop.f32.mrf.mxu0
        %v416 = vpop.f32.mrf.mxu0
        %v417 = vadd.f32 0.0, %v416
        %v418 = vpop.f32.mrf.mxu0
        %419 = vmatprep.mubr.bf16.mxu0 0
        %420 = vmatmul.mubr.bf16.gmra.mxu0 %v310
        %v421 = vpop.f32.mrf.mxu0
        %v422 = vadd.f32 0.0, %v421
        %v423 = vpop.f32.mrf.mxu0
        %v424 = vpop.f32.mrf.mxu0
        %v425 = vadd.f32 0.0, %v424
        %v426 = vpop.f32.mrf.mxu0
        %427 = vmatprep.mubr.bf16.mxu0 0
        %428 = vmatmul.mubr.bf16.gmra.mxu0 %v313
        %v429 = vpop.f32.mrf.mxu0
        %v430 = vadd.f32 0.0, %v429
        %v431 = vpop.f32.mrf.mxu0
        %v432 = vpop.f32.mrf.mxu0
        %v433 = vadd.f32 0.0, %v432
        %v434 = vpop.f32.mrf.mxu0
        %435 = vmatprep.mubr.bf16.mxu0 0
        %436 = vmatmul.mubr.bf16.gmra.mxu0 %v316
        %v437 = vpop.f32.mrf.mxu0
        %v438 = vadd.f32 0.0, %v437
        %v439 = vpop.f32.mrf.mxu0
        %v440 = vpop.f32.mrf.mxu0
        %v441 = vadd.f32 0.0, %v440
        %v442 = vpop.f32.mrf.mxu0
        %443 = vmatprep.mubr.bf16.mxu0 0
        %444 = vmatmul.mubr.bf16.gmra.mxu0 %v319
        %v445 = vpop.f32.mrf.mxu0
        %v446 = vadd.f32 0.0, %v445
        %v447 = vpop.f32.mrf.mxu0
        %v448 = vpop.f32.mrf.mxu0
        %v449 = vadd.f32 0.0, %v448
        %v450 = vpop.f32.mrf.mxu0
        %451 = vmatprep.mubr.bf16.mxu0 0
        %452 = vmatmul.mubr.bf16.gmra.mxu0 %v322
        %v453 = vpop.f32.mrf.mxu0
        %v454 = vadd.f32 0.0, %v453
        %v455 = vpop.f32.mrf.mxu0
        %v456 = vpop.f32.mrf.mxu0
        %v457 = vadd.f32 0.0, %v456
        %v458 = vpop.f32.mrf.mxu0
        %459 = vmatprep.mubr.bf16.mxu0 0
        %460 = vmatmul.mubr.bf16.gmra.mxu0 %v325
        %v461 = vpop.f32.mrf.mxu0
        %v462 = vadd.f32 0.0, %v461
        %v463 = vpop.f32.mrf.mxu0
        %v464 = vpop.f32.mrf.mxu0
        %v465 = vadd.f32 0.0, %v464
        %v466 = vpop.f32.mrf.mxu0
        %467 = vmatprep.mubr.bf16.mxu0 0
        %468 = vmatmul.mubr.bf16.gmra.mxu0 %v328
        %v469 = vpop.f32.mrf.mxu0
        %v470 = vadd.f32 0.0, %v469
        %v471 = vpop.f32.mrf.mxu0
        %v472 = vpop.f32.mrf.mxu0
        %v473 = vadd.f32 0.0, %v472
        %v474 = vpop.f32.mrf.mxu0
        %475 = vmatprep.mubr.bf16.mxu0 0
        %476 = vmatmul.mubr.bf16.gmra.mxu0 %v331
        %v477 = vpop.f32.mrf.mxu0
        %v478 = vadd.f32 0.0, %v477
        %v479 = vpop.f32.mrf.mxu0
        %v480 = vpop.f32.mrf.mxu0
        %v481 = vadd.f32 0.0, %v480
        %v482 = vpop.f32.mrf.mxu0
        %483 = vmatprep.mubr.bf16.mxu0 0
        %484 = vmatmul.mubr.bf16.gmra.mxu0 %v334
        %v485 = vpop.f32.mrf.mxu0
        %v486 = vadd.f32 0.0, %v485
        %v487 = vpop.f32.mrf.mxu0
        %v488 = vpop.f32.mrf.mxu0
        %v489 = vadd.f32 0.0, %v488
        %v490 = vpop.f32.mrf.mxu0
        %491 = vmatprep.mubr.bf16.mxu0 0
        %492 = vmatmul.mubr.bf16.gmra.mxu0 %v337
        %v493 = vpop.f32.mrf.mxu0
        %v494 = vadd.f32 0.0, %v493
        %v495 = vpop.f32.mrf.mxu0
        %v496 = vpop.f32.mrf.mxu0
        %v497 = vadd.f32 0.0, %v496
        %v498 = vpop.f32.mrf.mxu0
        %499 = vdwg.mxu0
        %vm500 = vcmask 261120
        %501 = vst.msk [vmem:[%s137] sm:$0xff] %vm500, %v374
        %502 = vst.msk [vmem:[%s137 + $0x8] sm:$0xff] %vm500, %v377
        %503 = vst.msk [vmem:[%s137 + $0x10] sm:$0xff] %vm500, %v382
        %504 = vst.msk [vmem:[%s137 + $0x18] sm:$0xff] %vm500, %v385
        %505 = vst.msk [vmem:[%s137 + $0x20] sm:$0xff] %vm500, %v390
        %506 = vst.msk [vmem:[%s137 + $0x28] sm:$0xff] %vm500, %v393
        %507 = vst.msk [vmem:[%s137 + $0x30] sm:$0xff] %vm500, %v398
        %508 = vst.msk [vmem:[%s137 + $0x38] sm:$0xff] %vm500, %v401
        %509 = vst.msk [vmem:[%s137 + $0x40] sm:$0xff] %vm500, %v406
        %510 = vst.msk [vmem:[%s137 + $0x48] sm:$0xff] %vm500, %v409
        %511 = vst.msk [vmem:[%s137 + $0x50] sm:$0xff] %vm500, %v414
        %512 = vst.msk [vmem:[%s137 + $0x58] sm:$0xff] %vm500, %v417
        %513 = vst.msk [vmem:[%s137 + $0x60] sm:$0xff] %vm500, %v422
        %514 = vst.msk [vmem:[%s137 + $0x68] sm:$0xff] %vm500, %v425
        %515 = vst.msk [vmem:[%s137 + $0x70] sm:$0xff] %vm500, %v430
        %516 = vst.msk [vmem:[%s137 + $0x78] sm:$0xff] %vm500, %v433
        %517 = vst.msk [vmem:[%s137 + $0x80] sm:$0xff] %vm500, %v438
        %518 = vst.msk [vmem:[%s137 + $0x88] sm:$0xff] %vm500, %v441
        %519 = vst.msk [vmem:[%s137 + $0x90] sm:$0xff] %vm500, %v446
        %520 = vst.msk [vmem:[%s137 + $0x98] sm:$0xff] %vm500, %v449
        %521 = vst.msk [vmem:[%s137 + $0xa0] sm:$0xff] %vm500, %v454
        %522 = vst.msk [vmem:[%s137 + $0xa8] sm:$0xff] %vm500, %v457
        %523 = vst.msk [vmem:[%s137 + $0xb0] sm:$0xff] %vm500, %v462
        %524 = vst.msk [vmem:[%s137 + $0xb8] sm:$0xff] %vm500, %v465
        %525 = vst.msk [vmem:[%s137 + $0xc0] sm:$0xff] %vm500, %v470
        %526 = vst.msk [vmem:[%s137 + $0xc8] sm:$0xff] %vm500, %v473
        %527 = vst.msk [vmem:[%s137 + $0xd0] sm:$0xff] %vm500, %v478
        %528 = vst.msk [vmem:[%s137 + $0xd8] sm:$0xff] %vm500, %v481
        %529 = vst.msk [vmem:[%s137 + $0xe0] sm:$0xff] %vm500, %v486
        %530 = vst.msk [vmem:[%s137 + $0xe8] sm:$0xff] %vm500, %v489
        %531 = vst.msk [vmem:[%s137 + $0xf0] sm:$0xff] %vm500, %v494
        %532 = vst.msk [vmem:[%s137 + $0xf8] sm:$0xff] %vm500, %v497
        %s533 = sand.u32 %s71, 1
        %s534 = scalar_lea.sflag [#allocation3], %s533
        %s535 = sand.u32 %s71, 1
        %s536 = smul.addr %s535, 256
        %s537 = scalar_lea.vmem [#allocation2], %s536
        // Predicated region
        $region29: #{feed_forward.5} parent=27 // pred_check
          %p538 = pneg %p81
        $region30: #{feed_forward.5} parent=27 // pred_check_branch
          %540 = sbr.rel (%p538) target = $region32
        $region31: #{feed_forward.5} parent=27 // pred_region
          %s541 = smul.u32 32, %s16
          %s543 = ssub.s32 4096, 4096
          %544 = vsyncadd %s534, %s543
          %s545 = smul.addr %s541, 128
          %s546 = scalar_lea.hbm %s2, %s545
          %s547 = sshll.u32 %s537, 4
          %s548 = int_to_ptr.vmem [resolvable:$true] %s547
          %553 = dma.vmem_to_hbm [thread:$0]  %s548, 4096, %s546, %s534, 128, 128, 8
        $region32: #{feed_forward.5} parent=27 // pred_fallthru
          _
      $region28: #{feed_forward.5} parent=5 // pred_fallthru
        _
      %p554 = scmp.le.s32.totalorder 2, %s11
      // Predicated region
      $region33: #{feed_forward.5} parent=5 // pred_check
        %p555 = pneg %p554
      $region34: #{feed_forward.5} parent=5 // pred_check_branch
        %557 = sbr.rel (%p555) target = $region36
      $region35: #{feed_forward.5} parent=5 // pred_region
        %s558 = ssub.s32 %s11, 2
        // Predicated region
        $region37: #{feed_forward.5} parent=35 // pred_check
          %p559 = pneg %p87
        $region38: #{feed_forward.5} parent=35 // pred_check_branch
          %561 = sbr.rel (%p559) target = $region40
        $region39: #{feed_forward.5} parent=35 // pred_region
          %s562 = sand.u32 %s72, 1
          %s563 = scalar_lea.sflag [#allocation3], %s562
          %s564 = sand.u32 %s72, 1
          %s565 = smul.addr %s564, 256
          %s566 = scalar_lea.vmem [#allocation2], %s565
          %567 = dma.done %s563, 4096
        $region40: #{feed_forward.5} parent=35 // pred_fallthru
          _
      $region36: #{feed_forward.5} parent=5 // pred_fallthru
        _
    $region6: #{feed_forward.5} parent=1 // loop_footer
      %s15 = sadd.s32 1, %s11
    $region7: #{feed_forward.5} parent=1 // loop_footer_branch
      %10 = sbr.rel target = $region3
    $region8: #{feed_forward.5} parent=1 // loop_exit
      _
    %568 = vsyncpa [#allocation3], 1
    %s569 = scalar_lea.sflag [#allocation3], 1
    %570 = vsyncpa %s569, 1

// kernel: feed_forward.4
$region0: #{feed_forward.4}
  #allocation0 [shape = 'u32[]', space=smem, size = 0x4, offset = 0x4, fixed_abs, tag = 'smem constant byte address 0x4 - core index']
  #allocation1 [shape = 'u32[144,128]{1,0:T(1,128)}', space=vmem, size = 0x12000, scoped, tag = 'internal scratch']
  %s0 = inlined_call_operand.vmem [shape: f32[2,18,18,64], index: 0, kind: input, shape index: {}]
  %s1 = inlined_call_operand.vmem [shape: f32[9,64], index: 1, kind: input, shape index: {}]
  %s2 = inlined_call_operand.vmem [shape: f32[2,16,16,64], index: 2, kind: output, shape index: {}]
  %s3 = sld [smem:[#allocation0]]
  $region41: #{feed_forward.4} parent=0
    _
  %s5 = ssub.s32 1, %s3
  %s6 = scalar_select 0, %s5, %s3
  loop: start=0, step=1, limit=4
  $region2: #{feed_forward.4} parent=0 // loop_pre_header
    _
  $region3: #{feed_forward.4} parent=0 // loop_header
    %s8 = sphi 0, %s12
    %p9 = scmp.ge.s32.totalorder %s8, 4
    %s18 = sphi 0, %s20
    %s21 = sphi 0, %s18
    %s22 = sphi 0, %s21
    %s38 = sphi 0, %s22
    %s42 = sphi 0, %s42
    %s44 = sphi 0, %s42
    %s45 = sphi 0, %s44
    %s59 = sphi 0, %s45
    %s65 = sphi 0, %s67
    %s68 = sphi 0, %s65
    %s69 = sphi 0, %s68
    %s85 = sphi 0, %s69
  $region4: #{feed_forward.4} parent=0 // loop_header_branch
    %11 = sbr.rel (%p9) target = $region8
  $region5: #{feed_forward.4} parent=0 // loop_body
    %s13 = ssub.s32 %s8, 1
    %s14 = ssub.s32 %s8, 2
    %s15 = sadd.s32 %s8, 1
    %s16 = ssub.s32 %s8, %s15
    %p17 = scmp.eq.s32.totalorder %s16, 0
    %s19 = sadd.s32 %s18, 1
    %s20 = scalar_select %p17, %s18, %s19
    %p23 = pneg %p17
    %p24 = scmp.eq.s32.totalorder %s8, 1
    %p25 = por %p23, %p24
    %p26 = scmp.ne.s32.totalorder %s18, %s21
    %p27 = scmp.eq.s32.totalorder %s8, 0
    %p28 = por %p26, %p27
    %p29 = scmp.ne.s32.totalorder %s18, %s21
    %p30 = scmp.eq.s32.totalorder %s13, 1
    %p31 = por %p29, %p30
    %p32 = scmp.ne.s32.totalorder %s21, %s22
    %p33 = scmp.eq.s32.totalorder %s13, 0
    %p34 = por %p32, %p33
    %p35 = scmp.ne.s32.totalorder %s21, %s22
    %p36 = scmp.eq.s32.totalorder %s14, 1
    %p37 = por %p35, %p36
    %p39 = scmp.ne.s32.totalorder %s22, %s38
    %p40 = scmp.eq.s32.totalorder %s14, 0
    %p41 = por %p39, %p40
    %s43 = sadd.s32 %s42, 1
    %p46 = scmp.eq.s32.totalorder %s8, 1
    %p47 = scmp.ne.s32.totalorder %s42, %s44
    %p48 = scmp.eq.s32.totalorder %s8, 0
    %p49 = por %p47, %p48
    %p50 = scmp.ne.s32.totalorder %s42, %s44
    %p51 = scmp.eq.s32.totalorder %s13, 1
    %p52 = por %p50, %p51
    %p53 = scmp.ne.s32.totalorder %s44, %s45
    %p54 = scmp.eq.s32.totalorder %s13, 0
    %p55 = por %p53, %p54
    %p56 = scmp.ne.s32.totalorder %s44, %s45
    %p57 = scmp.eq.s32.totalorder %s14, 1
    %p58 = por %p56, %p57
    %p60 = scmp.ne.s32.totalorder %s45, %s59
    %p61 = scmp.eq.s32.totalorder %s14, 0
    %p62 = por %p60, %p61
    %s63 = ssub.s32 %s8, %s15
    %p64 = scmp.eq.s32.totalorder %s63, 0
    %s66 = sadd.s32 %s65, 1
    %s67 = scalar_select %p64, %s65, %s66
    %p70 = pneg %p64
    %p71 = scmp.eq.s32.totalorder %s8, 1
    %p72 = por %p70, %p71
    %p73 = scmp.ne.s32.totalorder %s65, %s68
    %p74 = scmp.eq.s32.totalorder %s8, 0
    %p75 = por %p73, %p74
    %p76 = scmp.ne.s32.totalorder %s65, %s68
    %p77 = scmp.eq.s32.totalorder %s13, 1
    %p78 = por %p76, %p77
    %p79 = scmp.ne.s32.totalorder %s68, %s69
    %p80 = scmp.eq.s32.totalorder %s13, 0
    %p81 = por %p79, %p80
    %p82 = scmp.ne.s32.totalorder %s68, %s69
    %p83 = scmp.eq.s32.totalorder %s14, 1
    %p84 = por %p82, %p83
    %p86 = scmp.ne.s32.totalorder %s69, %s85
    %p87 = scmp.eq.s32.totalorder %s14, 0
    %p88 = por %p86, %p87
    %p89 = scmp.le.s32.totalorder 1, %s8
    %p90 = scmp.lt.s32.totalorder %s8, 3
    %p91 = pnand %p89, %p90
    %p92 = pneg %p91
    // Predicated region
    $region9: #{feed_forward.4} parent=5 // pred_check
      _
    $region10: #{feed_forward.4} parent=5 // pred_check_branch
      %94 = sbr.rel (%p91) target = $region12
    $region11: #{feed_forward.4} parent=5 // pred_region
      %s95 = ssub.s32 %s8, 1
      // Predicated region
      $region13: #{feed_forward.4} parent=11 // pred_check
        %p96 = pneg %p55
      $region14: #{feed_forward.4} parent=11 // pred_check_branch
        %98 = sbr.rel (%p96) target = $region16
      $region15: #{feed_forward.4} parent=11 // pred_region
        _
      $region16: #{feed_forward.4} parent=11 // pred_fallthru
        _
    $region12: #{feed_forward.4} parent=5 // pred_fallthru
      _
    %p99 = scmp.lt.s32.totalorder %s8, 2
    // Predicated region
    $region17: #{feed_forward.4} parent=5 // pred_check
      %p100 = pneg %p99
    $region18: #{feed_forward.4} parent=5 // pred_check_branch
      %102 = sbr.rel (%p100) target = $region20
    $region19: #{feed_forward.4} parent=5 // pred_region
      // Predicated region
      $region21: #{feed_forward.4} parent=19 // pred_check
        %p103 = pneg %p28
      $region22: #{feed_forward.4} parent=19 // pred_check_branch
        %105 = sbr.rel (%p103) target = $region24
      $region23: #{feed_forward.4} parent=19 // pred_region
        %p106 = scmp.lt.s32.totalorder %s8, 1
        %s107 = scalar_select %p106, %s8, 1
        %s108 = smul.addr %s107, 54
        %s109 = smul.addr %s108, 8
        %s110 = scalar_lea.vmem %s0, %s109
      $region24: #{feed_forward.4} parent=19 // pred_fallthru
        _
    $region20: #{feed_forward.4} parent=5 // pred_fallthru
      _
    %p111 = scmp.le.s32.totalorder 1, %s8
    %p112 = scmp.lt.s32.totalorder %s8, 3
    %p113 = pnand %p111, %p112
    %p114 = pneg %p113
    // Predicated region
    $region25: #{feed_forward.4} parent=5 // pred_check
      _
    $region26: #{feed_forward.4} parent=5 // pred_check_branch
      %116 = sbr.rel (%p113) target = $region28
    $region27: #{feed_forward.4} parent=5 // pred_region
      %s117 = ssub.s32 %s8, 1
      %p118 = scmp.lt.s32.totalorder %s13, 1
      %s119 = scalar_select %p118, %s13, 1
      %s120 = smul.addr %s119, 54
      %s121 = smul.addr %s120, 8
      %s122 = scalar_lea.vmem %s0, %s121
      %p123 = pneg %p34
      %p124 = pneg %p31
      %p125 = pneg %p55
      %p126 = pneg %p52
      %p127 = pneg %p81
      %p128 = pneg %p78
      %p129 = scmp.lt.s32.totalorder %s13, 1
      %s130 = scalar_select %p129, %s13, 1
      %s131 = smul.addr %s130, 32
      %s132 = smul.addr %s131, 8
      %s133 = scalar_lea.vmem %s2, %s132
      %p134 = scmp.lt.s32.totalorder %s13, 1
      %s135 = scalar_select %p134, %s13, 1
      %s136 = smul.addr %s135, 54
      %s137 = smul.addr %s136, 8
      %s138 = scalar_lea.vmem %s0, %s137
      %p139 = scmp.lt.s32.totalorder %s13, 1
      %s140 = scalar_select %p139, %s13, 1
      %s141 = smul.addr %s140, 32
      %s142 = smul.addr %s141, 8
      %s143 = scalar_lea.vmem %s2, %s142
      %v144 = vld [vmem:[%s138] sm:$0xff]
      %v145 = vld [vmem:[%s138 + $0x8] sm:$0xff]
      %v146 = vld [vmem:[%s138 + $0x18] sm:$0xff]
      %v147 = vld [vmem:[%s138 + $0x20] sm:$0xff]
      %v148 = vld [vmem:[%s138 + $0x30] sm:$0xff]
      %v149 = vld [vmem:[%s138 + $0x38] sm:$0xff]
      %v150 = vld [vmem:[%s138 + $0x48] sm:$0xff]
      %v151 = vld [vmem:[%s138 + $0x50] sm:$0xff]
      %v152 = vld [vmem:[%s138 + $0x60] sm:$0xff]
      %v153 = vld [vmem:[%s138 + $0x68] sm:$0xff]
      %v154 = vld [vmem:[%s138 + $0x78] sm:$0xff]
      %v155 = vld [vmem:[%s138 + $0x80] sm:$0xff]
      %v156 = vld [vmem:[%s138 + $0x90] sm:$0xff]
      %v157 = vld [vmem:[%s138 + $0x98] sm:$0xff]
      %v158 = vld [vmem:[%s138 + $0xa8] sm:$0xff]
      %v159 = vld [vmem:[%s138 + $0xb0] sm:$0xff]
      %v160 = vld [vmem:[%s138 + $0xc0] sm:$0xff]
      %v161 = vld [vmem:[%s138 + $0xc8] sm:$0xff]
      %v162 = vld [vmem:[%s138 + $0xd8] sm:$0xff]
      %v163 = vld [vmem:[%s138 + $0xe0] sm:$0xff]
      %v164 = vld [vmem:[%s138 + $0xf0] sm:$0xff]
      %v165 = vld [vmem:[%s138 + $0xf8] sm:$0xff]
      %v166 = vld [vmem:[%s138 + $0x108] sm:$0xff]
      %v167 = vld [vmem:[%s138 + $0x110] sm:$0xff]
      %v168 = vld [vmem:[%s138 + $0x120] sm:$0xff]
      %v169 = vld [vmem:[%s138 + $0x128] sm:$0xff]
      %v170 = vld [vmem:[%s138 + $0x138] sm:$0xff]
      %v171 = vld [vmem:[%s138 + $0x140] sm:$0xff]
      %v172 = vld [vmem:[%s138 + $0x150] sm:$0xff]
      %v173 = vld [vmem:[%s138 + $0x158] sm:$0xff]
      %v174 = vld [vmem:[%s138 + $0x168] sm:$0xff]
      %v175 = vld [vmem:[%s138 + $0x170] sm:$0xff]
      %v176 = vld [vmem:[%s1] sm:$0x1]
      %v177 = vlaneseq
      %v178 = vshrl.u32 %v177, 7
      %v179 = vsub.s32 0, %v178
      %v180 = vrot.slane %v176, %v179
      %v181 = vmul.f32 %v144, %v180
      %v182 = vmul.f32 %v145, %v180
      %v183 = vmul.f32 %v146, %v180
      %v184 = vmul.f32 %v147, %v180
      %v185 = vmul.f32 %v148, %v180
      %v186 = vmul.f32 %v149, %v180
      %v187 = vmul.f32 %v150, %v180
      %v188 = vmul.f32 %v151, %v180
      %v189 = vmul.f32 %v152, %v180
      %v190 = vmul.f32 %v153, %v180
      %v191 = vmul.f32 %v154, %v180
      %v192 = vmul.f32 %v155, %v180
      %v193 = vmul.f32 %v156, %v180
      %v194 = vmul.f32 %v157, %v180
      %v195 = vmul.f32 %v158, %v180
      %v196 = vmul.f32 %v159, %v180
      %v197 = vmul.f32 %v160, %v180
      %v198 = vmul.f32 %v161, %v180
      %v199 = vmul.f32 %v162, %v180
      %v200 = vmul.f32 %v163, %v180
      %v201 = vmul.f32 %v164, %v180
      %v202 = vmul.f32 %v165, %v180
      %v203 = vmul.f32 %v166, %v180
      %v204 = vmul.f32 %v167, %v180
      %v205 = vmul.f32 %v168, %v180
      %v206 = vmul.f32 %v169, %v180
      %v207 = vmul.f32 %v170, %v180
      %v208 = vmul.f32 %v171, %v180
      %v209 = vmul.f32 %v172, %v180
      %v210 = vmul.f32 %v173, %v180
      %v211 = vmul.f32 %v174, %v180
      %v212 = vmul.f32 %v175, %v180
      %v213 = vld [vmem:[%s138 + $0x1] sm:$0xff]
      %v214 = vld [vmem:[%s138 + $0x9] sm:$0xff]
      %v215 = vld [vmem:[%s138 + $0x19] sm:$0xff]
      %v216 = vld [vmem:[%s138 + $0x21] sm:$0xff]
      %v217 = vld [vmem:[%s138 + $0x31] sm:$0xff]
      %v218 = vld [vmem:[%s138 + $0x39] sm:$0xff]
      %v219 = vld [vmem:[%s138 + $0x49] sm:$0xff]
      %v220 = vld [vmem:[%s138 + $0x51] sm:$0xff]
      %v221 = vld [vmem:[%s138 + $0x61] sm:$0xff]
      %v222 = vld [vmem:[%s138 + $0x69] sm:$0xff]
      %v223 = vld [vmem:[%s138 + $0x79] sm:$0xff]
      %v224 = vld [vmem:[%s138 + $0x81] sm:$0xff]
      %v225 = vld [vmem:[%s138 + $0x91] sm:$0xff]
      %v226 = vld [vmem:[%s138 + $0x99] sm:$0xff]
      %v227 = vld [vmem:[%s138 + $0xa9] sm:$0xff]
      %v228 = vld [vmem:[%s138 + $0xb1] sm:$0xff]
      %v229 = vld [vmem:[%s138 + $0xc1] sm:$0xff]
      %v230 = vld [vmem:[%s138 + $0xc9] sm:$0xff]
      %v231 = vld [vmem:[%s138 + $0xd9] sm:$0xff]
      %v232 = vld [vmem:[%s138 + $0xe1] sm:$0xff]
      %v233 = vld [vmem:[%s138 + $0xf1] sm:$0xff]
      %v234 = vld [vmem:[%s138 + $0xf9] sm:$0xff]
      %v235 = vld [vmem:[%s138 + $0x109] sm:$0xff]
      %v236 = vld [vmem:[%s138 + $0x111] sm:$0xff]
      %v237 = vld [vmem:[%s138 + $0x121] sm:$0xff]
      %v238 = vld [vmem:[%s138 + $0x129] sm:$0xff]
      %v239 = vld [vmem:[%s138 + $0x139] sm:$0xff]
      %v240 = vld [vmem:[%s138 + $0x141] sm:$0xff]
      %v241 = vld [vmem:[%s138 + $0x151] sm:$0xff]
      %v242 = vld [vmem:[%s138 + $0x159] sm:$0xff]
      %v243 = vld [vmem:[%s138 + $0x169] sm:$0xff]
      %v244 = vld [vmem:[%s138 + $0x171] sm:$0xff]
      %v245 = vld [vmem:[%s1 + $0x1] sm:$0x1]
      %v246 = vlaneseq
      %v247 = vshrl.u32 %v246, 7
      %v248 = vsub.s32 0, %v247
      %v249 = vrot.slane %v245, %v248
      %v250 = vmul.f32 %v213, %v249
      %v251 = vmul.f32 %v214, %v249
      %v252 = vmul.f32 %v215, %v249
      %v253 = vmul.f32 %v216, %v249
      %v254 = vmul.f32 %v217, %v249
      %v255 = vmul.f32 %v218, %v249
      %v256 = vmul.f32 %v219, %v249
      %v257 = vmul.f32 %v220, %v249
      %v258 = vmul.f32 %v221, %v249
      %v259 = vmul.f32 %v222, %v249
      %v260 = vmul.f32 %v223, %v249
      %v261 = vmul.f32 %v224, %v249
      %v262 = vmul.f32 %v225, %v249
      %v263 = vmul.f32 %v226, %v249
      %v264 = vmul.f32 %v227, %v249
      %v265 = vmul.f32 %v228, %v249
      %v266 = vmul.f32 %v229, %v249
      %v267 = vmul.f32 %v230, %v249
      %v268 = vmul.f32 %v231, %v249
      %v269 = vmul.f32 %v232, %v249
      %v270 = vmul.f32 %v233, %v249
      %v271 = vmul.f32 %v234, %v249
      %v272 = vmul.f32 %v235, %v249
      %v273 = vmul.f32 %v236, %v249
      %v274 = vmul.f32 %v237, %v249
      %v275 = vmul.f32 %v238, %v249
      %v276 = vmul.f32 %v239, %v249
      %v277 = vmul.f32 %v240, %v249
      %v278 = vmul.f32 %v241, %v249
      %v279 = vmul.f32 %v242, %v249
      %v280 = vmul.f32 %v243, %v249
      %v281 = vmul.f32 %v244, %v249
      %v282 = vadd.f32 %v181, %v250
      %v283 = vadd.f32 %v182, %v251
      %v284 = vadd.f32 %v183, %v252
      %v285 = vadd.f32 %v184, %v253
      %v286 = vadd.f32 %v185, %v254
      %v287 = vadd.f32 %v186, %v255
      %v288 = vadd.f32 %v187, %v256
      %v289 = vadd.f32 %v188, %v257
      %v290 = vadd.f32 %v189, %v258
      %v291 = vadd.f32 %v190, %v259
      %v292 = vadd.f32 %v191, %v260
      %v293 = vadd.f32 %v192, %v261
      %v294 = vadd.f32 %v193, %v262
      %v295 = vadd.f32 %v194, %v263
      %v296 = vadd.f32 %v195, %v264
      %v297 = vadd.f32 %v196, %v265
      %v298 = vadd.f32 %v197, %v266
      %v299 = vadd.f32 %v198, %v267
      %v300 = vadd.f32 %v199, %v268
      %v301 = vadd.f32 %v200, %v269
      %v302 = vadd.f32 %v201, %v270
      %v303 = vadd.f32 %v202, %v271
      %v304 = vadd.f32 %v203, %v272
      %v305 = vadd.f32 %v204, %v273
      %v306 = vadd.f32 %v205, %v274
      %v307 = vadd.f32 %v206, %v275
      %v308 = vadd.f32 %v207, %v276
      %v309 = vadd.f32 %v208, %v277
      %v310 = vadd.f32 %v209, %v278
      %v311 = vadd.f32 %v210, %v279
      %v312 = vadd.f32 %v211, %v280
      %v313 = vadd.f32 %v212, %v281
      %v314 = vld [vmem:[%s138 + $0x2] sm:$0xff]
      %v315 = vld [vmem:[%s138 + $0xa] sm:$0xff]
      %v316 = vld [vmem:[%s138 + $0x1a] sm:$0xff]
      %v317 = vld [vmem:[%s138 + $0x22] sm:$0xff]
      %v318 = vld [vmem:[%s138 + $0x32] sm:$0xff]
      %v319 = vld [vmem:[%s138 + $0x3a] sm:$0xff]
      %v320 = vld [vmem:[%s138 + $0x4a] sm:$0xff]
      %v321 = vld [vmem:[%s138 + $0x52] sm:$0xff]
      %v322 = vld [vmem:[%s138 + $0x62] sm:$0xff]
      %v323 = vld [vmem:[%s138 + $0x6a] sm:$0xff]
      %v324 = vld [vmem:[%s138 + $0x7a] sm:$0xff]
      %v325 = vld [vmem:[%s138 + $0x82] sm:$0xff]
      %v326 = vld [vmem:[%s138 + $0x92] sm:$0xff]
      %v327 = vld [vmem:[%s138 + $0x9a] sm:$0xff]
      %v328 = vld [vmem:[%s138 + $0xaa] sm:$0xff]
      %v329 = vld [vmem:[%s138 + $0xb2] sm:$0xff]
      %v330 = vld [vmem:[%s138 + $0xc2] sm:$0xff]
      %v331 = vld [vmem:[%s138 + $0xca] sm:$0xff]
      %v332 = vld [vmem:[%s138 + $0xda] sm:$0xff]
      %v333 = vld [vmem:[%s138 + $0xe2] sm:$0xff]
      %v334 = vld [vmem:[%s138 + $0xf2] sm:$0xff]
      %v335 = vld [vmem:[%s138 + $0xfa] sm:$0xff]
      %v336 = vld [vmem:[%s138 + $0x10a] sm:$0xff]
      %v337 = vld [vmem:[%s138 + $0x112] sm:$0xff]
      %v338 = vld [vmem:[%s138 + $0x122] sm:$0xff]
      %v339 = vld [vmem:[%s138 + $0x12a] sm:$0xff]
      %v340 = vld [vmem:[%s138 + $0x13a] sm:$0xff]
      %v341 = vld [vmem:[%s138 + $0x142] sm:$0xff]
      %v342 = vld [vmem:[%s138 + $0x152] sm:$0xff]
      %v343 = vld [vmem:[%s138 + $0x15a] sm:$0xff]
      %v344 = vld [vmem:[%s138 + $0x16a] sm:$0xff]
      %v345 = vld [vmem:[%s138 + $0x172] sm:$0xff]
      %v346 = vld [vmem:[%s1 + $0x2] sm:$0x1]
      %v347 = vlaneseq
      %v348 = vshrl.u32 %v347, 7
      %v349 = vsub.s32 0, %v348
      %v350 = vrot.slane %v346, %v349
      %v351 = vmul.f32 %v314, %v350
      %v352 = vmul.f32 %v315, %v350
      %v353 = vmul.f32 %v316, %v350
      %v354 = vmul.f32 %v317, %v350
      %v355 = vmul.f32 %v318, %v350
      %v356 = vmul.f32 %v319, %v350
      %v357 = vmul.f32 %v320, %v350
      %v358 = vmul.f32 %v321, %v350
      %v359 = vmul.f32 %v322, %v350
      %v360 = vmul.f32 %v323, %v350
      %v361 = vmul.f32 %v324, %v350
      %v362 = vmul.f32 %v325, %v350
      %v363 = vmul.f32 %v326, %v350
      %v364 = vmul.f32 %v327, %v350
      %v365 = vmul.f32 %v328, %v350
      %v366 = vmul.f32 %v329, %v350
      %v367 = vmul.f32 %v330, %v350
      %v368 = vmul.f32 %v331, %v350
      %v369 = vmul.f32 %v332, %v350
      %v370 = vmul.f32 %v333, %v350
      %v371 = vmul.f32 %v334, %v350
      %v372 = vmul.f32 %v335, %v350
      %v373 = vmul.f32 %v336, %v350
      %v374 = vmul.f32 %v337, %v350
      %v375 = vmul.f32 %v338, %v350
      %v376 = vmul.f32 %v339, %v350
      %v377 = vmul.f32 %v340, %v350
      %v378 = vmul.f32 %v341, %v350
      %v379 = vmul.f32 %v342, %v350
      %v380 = vmul.f32 %v343, %v350
      %v381 = vmul.f32 %v344, %v350
      %v382 = vmul.f32 %v345, %v350
      %v383 = vadd.f32 %v282, %v351
      %v384 = vadd.f32 %v283, %v352
      %v385 = vadd.f32 %v284, %v353
      %v386 = vadd.f32 %v285, %v354
      %v387 = vadd.f32 %v286, %v355
      %v388 = vadd.f32 %v287, %v356
      %v389 = vadd.f32 %v288, %v357
      %v390 = vadd.f32 %v289, %v358
      %v391 = vadd.f32 %v290, %v359
      %v392 = vadd.f32 %v291, %v360
      %v393 = vadd.f32 %v292, %v361
      %v394 = vadd.f32 %v293, %v362
      %v395 = vadd.f32 %v294, %v363
      %v396 = vadd.f32 %v295, %v364
      %v397 = vadd.f32 %v296, %v365
      %v398 = vadd.f32 %v297, %v366
      %v399 = vadd.f32 %v298, %v367
      %v400 = vadd.f32 %v299, %v368
      %v401 = vadd.f32 %v300, %v369
      %v402 = vadd.f32 %v301, %v370
      %v403 = vadd.f32 %v302, %v371
      %v404 = vadd.f32 %v303, %v372
      %v405 = vadd.f32 %v304, %v373
      %v406 = vadd.f32 %v305, %v374
      %v407 = vadd.f32 %v306, %v375
      %v408 = vadd.f32 %v307, %v376
      %v409 = vadd.f32 %v308, %v377
      %v410 = vadd.f32 %v309, %v378
      %v411 = vadd.f32 %v310, %v379
      %v412 = vadd.f32 %v311, %v380
      %v413 = vadd.f32 %v312, %v381
      %v414 = vadd.f32 %v313, %v382
      %s415 = scalar_lea.vmem %s138, 24
      %v416 = vld [vmem:[%s415] sm:$0xff]
      %v417 = vld [vmem:[%s415 + $0x8] sm:$0xff]
      %v418 = vld [vmem:[%s415 + $0x18] sm:$0xff]
      %v419 = vld [vmem:[%s415 + $0x20] sm:$0xff]
      %v420 = vld [vmem:[%s415 + $0x30] sm:$0xff]
      %v421 = vld [vmem:[%s415 + $0x38] sm:$0xff]
      %v422 = vld [vmem:[%s415 + $0x48] sm:$0xff]
      %v423 = vld [vmem:[%s415 + $0x50] sm:$0xff]
      %v424 = vld [vmem:[%s415 + $0x60] sm:$0xff]
      %v425 = vld [vmem:[%s415 + $0x68] sm:$0xff]
      %v426 = vld [vmem:[%s415 + $0x78] sm:$0xff]
      %v427 = vld [vmem:[%s415 + $0x80] sm:$0xff]
      %v428 = vld [vmem:[%s415 + $0x90] sm:$0xff]
      %v429 = vld [vmem:[%s415 + $0x98] sm:$0xff]
      %v430 = vld [vmem:[%s415 + $0xa8] sm:$0xff]
      %v431 = vld [vmem:[%s415 + $0xb0] sm:$0xff]
      %v432 = vld [vmem:[%s415 + $0xc0] sm:$0xff]
      %v433 = vld [vmem:[%s415 + $0xc8] sm:$0xff]
      %v434 = vld [vmem:[%s415 + $0xd8] sm:$0xff]
      %v435 = vld [vmem:[%s415 + $0xe0] sm:$0xff]
      %v436 = vld [vmem:[%s415 + $0xf0] sm:$0xff]
      %v437 = vld [vmem:[%s415 + $0xf8] sm:$0xff]
      %v438 = vld [vmem:[%s415 + $0x108] sm:$0xff]
      %v439 = vld [vmem:[%s415 + $0x110] sm:$0xff]
      %v440 = vld [vmem:[%s415 + $0x120] sm:$0xff]
      %v441 = vld [vmem:[%s415 + $0x128] sm:$0xff]
      %v442 = vld [vmem:[%s415 + $0x138] sm:$0xff]
      %v443 = vld [vmem:[%s415 + $0x140] sm:$0xff]
      %v444 = vld [vmem:[%s415 + $0x150] sm:$0xff]
      %v445 = vld [vmem:[%s415 + $0x158] sm:$0xff]
      %v446 = vld [vmem:[%s415 + $0x168] sm:$0xff]
      %v447 = vld [vmem:[%s415 + $0x170] sm:$0xff]
      %v448 = vld [vmem:[%s1 + $0x3] sm:$0x1]
      %v449 = vlaneseq
      %v450 = vshrl.u32 %v449, 7
      %v451 = vsub.s32 0, %v450
      %v452 = vrot.slane %v448, %v451
      %v453 = vmul.f32 %v416, %v452
      %v454 = vmul.f32 %v417, %v452
      %v455 = vmul.f32 %v418, %v452
      %v456 = vmul.f32 %v419, %v452
      %v457 = vmul.f32 %v420, %v452
      %v458 = vmul.f32 %v421, %v452
      %v459 = vmul.f32 %v422, %v452
      %v460 = vmul.f32 %v423, %v452
      %v461 = vmul.f32 %v424, %v452
      %v462 = vmul.f32 %v425, %v452
      %v463 = vmul.f32 %v426, %v452
      %v464 = vmul.f32 %v427, %v452
      %v465 = vmul.f32 %v428, %v452
      %v466 = vmul.f32 %v429, %v452
      %v467 = vmul.f32 %v430, %v452
      %v468 = vmul.f32 %v431, %v452
      %v469 = vmul.f32 %v432, %v452
      %v470 = vmul.f32 %v433, %v452
      %v471 = vmul.f32 %v434, %v452
      %v472 = vmul.f32 %v435, %v452
      %v473 = vmul.f32 %v436, %v452
      %v474 = vmul.f32 %v437, %v452
      %v475 = vmul.f32 %v438, %v452
      %v476 = vmul.f32 %v439, %v452
      %v477 = vmul.f32 %v440, %v452
      %v478 = vmul.f32 %v441, %v452
      %v479 = vmul.f32 %v442, %v452
      %v480 = vmul.f32 %v443, %v452
      %v481 = vmul.f32 %v444, %v452
      %v482 = vmul.f32 %v445, %v452
      %v483 = vmul.f32 %v446, %v452
      %v484 = vmul.f32 %v447, %v452
      %v485 = vadd.f32 %v383, %v453
      %v486 = vadd.f32 %v384, %v454
      %v487 = vadd.f32 %v385, %v455
      %v488 = vadd.f32 %v386, %v456
      %v489 = vadd.f32 %v387, %v457
      %v490 = vadd.f32 %v388, %v458
      %v491 = vadd.f32 %v389, %v459
      %v492 = vadd.f32 %v390, %v460
      %v493 = vadd.f32 %v391, %v461
      %v494 = vadd.f32 %v392, %v462
      %v495 = vadd.f32 %v393, %v463
      %v496 = vadd.f32 %v394, %v464
      %v497 = vadd.f32 %v395, %v465
      %v498 = vadd.f32 %v396, %v466
      %v499 = vadd.f32 %v397, %v467
      %v500 = vadd.f32 %v398, %v468
      %v501 = vadd.f32 %v399, %v469
      %v502 = vadd.f32 %v400, %v470
      %v503 = vadd.f32 %v401, %v471
      %v504 = vadd.f32 %v402, %v472
      %v505 = vadd.f32 %v403, %v473
      %v506 = vadd.f32 %v404, %v474
      %v507 = vadd.f32 %v405, %v475
      %v508 = vadd.f32 %v406, %v476
      %v509 = vadd.f32 %v407, %v477
      %v510 = vadd.f32 %v408, %v478
      %v511 = vadd.f32 %v409, %v479
      %v512 = vadd.f32 %v410, %v480
      %v513 = vadd.f32 %v411, %v481
      %v514 = vadd.f32 %v412, %v482
      %v515 = vadd.f32 %v413, %v483
      %v516 = vadd.f32 %v414, %v484
      %v517 = vld [vmem:[%s415 + $0x1] sm:$0xff]
      %v518 = vld [vmem:[%s415 + $0x9] sm:$0xff]
      %v519 = vld [vmem:[%s415 + $0x19] sm:$0xff]
      %v520 = vld [vmem:[%s415 + $0x21] sm:$0xff]
      %v521 = vld [vmem:[%s415 + $0x31] sm:$0xff]
      %v522 = vld [vmem:[%s415 + $0x39] sm:$0xff]
      %v523 = vld [vmem:[%s415 + $0x49] sm:$0xff]
      %v524 = vld [vmem:[%s415 + $0x51] sm:$0xff]
      %v525 = vld [vmem:[%s415 + $0x61] sm:$0xff]
      %v526 = vld [vmem:[%s415 + $0x69] sm:$0xff]
      %v527 = vld [vmem:[%s415 + $0x79] sm:$0xff]
      %v528 = vld [vmem:[%s415 + $0x81] sm:$0xff]
      %v529 = vld [vmem:[%s415 + $0x91] sm:$0xff]
      %v530 = vld [vmem:[%s415 + $0x99] sm:$0xff]
      %v531 = vld [vmem:[%s415 + $0xa9] sm:$0xff]
      %v532 = vld [vmem:[%s415 + $0xb1] sm:$0xff]
      %v533 = vld [vmem:[%s415 + $0xc1] sm:$0xff]
      %v534 = vld [vmem:[%s415 + $0xc9] sm:$0xff]
      %v535 = vld [vmem:[%s415 + $0xd9] sm:$0xff]
      %v536 = vld [vmem:[%s415 + $0xe1] sm:$0xff]
      %v537 = vld [vmem:[%s415 + $0xf1] sm:$0xff]
      %v538 = vld [vmem:[%s415 + $0xf9] sm:$0xff]
      %v539 = vld [vmem:[%s415 + $0x109] sm:$0xff]
      %v540 = vld [vmem:[%s415 + $0x111] sm:$0xff]
      %v541 = vld [vmem:[%s415 + $0x121] sm:$0xff]
      %v542 = vld [vmem:[%s415 + $0x129] sm:$0xff]
      %v543 = vld [vmem:[%s415 + $0x139] sm:$0xff]
      %v544 = vld [vmem:[%s415 + $0x141] sm:$0xff]
      %v545 = vld [vmem:[%s415 + $0x151] sm:$0xff]
      %v546 = vld [vmem:[%s415 + $0x159] sm:$0xff]
      %v547 = vld [vmem:[%s415 + $0x169] sm:$0xff]
      %v548 = vld [vmem:[%s415 + $0x171] sm:$0xff]
      %v549 = vld [vmem:[%s1 + $0x4] sm:$0x1]
      %v550 = vlaneseq
      %v551 = vshrl.u32 %v550, 7
      %v552 = vsub.s32 0, %v551
      %v553 = vrot.slane %v549, %v552
      %v554 = vmul.f32 %v517, %v553
      %v555 = vmul.f32 %v518, %v553
      %v556 = vmul.f32 %v519, %v553
      %v557 = vmul.f32 %v520, %v553
      %v558 = vmul.f32 %v521, %v553
      %v559 = vmul.f32 %v522, %v553
      %v560 = vmul.f32 %v523, %v553
      %v561 = vmul.f32 %v524, %v553
      %v562 = vmul.f32 %v525, %v553
      %v563 = vmul.f32 %v526, %v553
      %v564 = vmul.f32 %v527, %v553
      %v565 = vmul.f32 %v528, %v553
      %v566 = vmul.f32 %v529, %v553
      %v567 = vmul.f32 %v530, %v553
      %v568 = vmul.f32 %v531, %v553
      %v569 = vmul.f32 %v532, %v553
      %v570 = vmul.f32 %v533, %v553
      %v571 = vmul.f32 %v534, %v553
      %v572 = vmul.f32 %v535, %v553
      %v573 = vmul.f32 %v536, %v553
      %v574 = vmul.f32 %v537, %v553
      %v575 = vmul.f32 %v538, %v553
      %v576 = vmul.f32 %v539, %v553
      %v577 = vmul.f32 %v540, %v553
      %v578 = vmul.f32 %v541, %v553
      %v579 = vmul.f32 %v542, %v553
      %v580 = vmul.f32 %v543, %v553
      %v581 = vmul.f32 %v544, %v553
      %v582 = vmul.f32 %v545, %v553
      %v583 = vmul.f32 %v546, %v553
      %v584 = vmul.f32 %v547, %v553
      %v585 = vmul.f32 %v548, %v553
      %v586 = vadd.f32 %v485, %v554
      %v587 = vadd.f32 %v486, %v555
      %v588 = vadd.f32 %v487, %v556
      %v589 = vadd.f32 %v488, %v557
      %v590 = vadd.f32 %v489, %v558
      %v591 = vadd.f32 %v490, %v559
      %v592 = vadd.f32 %v491, %v560
      %v593 = vadd.f32 %v492, %v561
      %v594 = vadd.f32 %v493, %v562
      %v595 = vadd.f32 %v494, %v563
      %v596 = vadd.f32 %v495, %v564
      %v597 = vadd.f32 %v496, %v565
      %v598 = vadd.f32 %v497, %v566
      %v599 = vadd.f32 %v498, %v567
      %v600 = vadd.f32 %v499, %v568
      %v601 = vadd.f32 %v500, %v569
      %v602 = vadd.f32 %v501, %v570
      %v603 = vadd.f32 %v502, %v571
      %v604 = vadd.f32 %v503, %v572
      %v605 = vadd.f32 %v504, %v573
      %v606 = vadd.f32 %v505, %v574
      %v607 = vadd.f32 %v506, %v575
      %v608 = vadd.f32 %v507, %v576
      %v609 = vadd.f32 %v508, %v577
      %v610 = vadd.f32 %v509, %v578
      %v611 = vadd.f32 %v510, %v579
      %v612 = vadd.f32 %v511, %v580
      %v613 = vadd.f32 %v512, %v581
      %v614 = vadd.f32 %v513, %v582
      %v615 = vadd.f32 %v514, %v583
      %v616 = vadd.f32 %v515, %v584
      %v617 = vadd.f32 %v516, %v585
      %v618 = vld [vmem:[%s415 + $0x2] sm:$0xff]
      %v619 = vld [vmem:[%s415 + $0xa] sm:$0xff]
      %v620 = vld [vmem:[%s415 + $0x1a] sm:$0xff]
      %v621 = vld [vmem:[%s415 + $0x22] sm:$0xff]
      %v622 = vld [vmem:[%s415 + $0x32] sm:$0xff]
      %v623 = vld [vmem:[%s415 + $0x3a] sm:$0xff]
      %v624 = vld [vmem:[%s415 + $0x4a] sm:$0xff]
      %v625 = vld [vmem:[%s415 + $0x52] sm:$0xff]
      %v626 = vld [vmem:[%s415 + $0x62] sm:$0xff]
      %v627 = vld [vmem:[%s415 + $0x6a] sm:$0xff]
      %v628 = vld [vmem:[%s415 + $0x7a] sm:$0xff]
      %v629 = vld [vmem:[%s415 + $0x82] sm:$0xff]
      %v630 = vld [vmem:[%s415 + $0x92] sm:$0xff]
      %v631 = vld [vmem:[%s415 + $0x9a] sm:$0xff]
      %v632 = vld [vmem:[%s415 + $0xaa] sm:$0xff]
      %v633 = vld [vmem:[%s415 + $0xb2] sm:$0xff]
      %v634 = vld [vmem:[%s415 + $0xc2] sm:$0xff]
      %v635 = vld [vmem:[%s415 + $0xca] sm:$0xff]
      %v636 = vld [vmem:[%s415 + $0xda] sm:$0xff]
      %v637 = vld [vmem:[%s415 + $0xe2] sm:$0xff]
      %v638 = vld [vmem:[%s415 + $0xf2] sm:$0xff]
      %v639 = vld [vmem:[%s415 + $0xfa] sm:$0xff]
      %v640 = vld [vmem:[%s415 + $0x10a] sm:$0xff]
      %v641 = vld [vmem:[%s415 + $0x112] sm:$0xff]
      %v642 = vld [vmem:[%s415 + $0x122] sm:$0xff]
      %v643 = vld [vmem:[%s415 + $0x12a] sm:$0xff]
      %v644 = vld [vmem:[%s415 + $0x13a] sm:$0xff]
      %v645 = vld [vmem:[%s415 + $0x142] sm:$0xff]
      %v646 = vld [vmem:[%s415 + $0x152] sm:$0xff]
      %v647 = vld [vmem:[%s415 + $0x15a] sm:$0xff]
      %v648 = vld [vmem:[%s415 + $0x16a] sm:$0xff]
      %v649 = vld [vmem:[%s415 + $0x172] sm:$0xff]
      %v650 = vld [vmem:[%s1 + $0x5] sm:$0x1]
      %v651 = vlaneseq
      %v652 = vshrl.u32 %v651, 7
      %v653 = vsub.s32 0, %v652
      %v654 = vrot.slane %v650, %v653
      %v655 = vmul.f32 %v618, %v654
      %v656 = vmul.f32 %v619, %v654
      %v657 = vmul.f32 %v620, %v654
      %v658 = vmul.f32 %v621, %v654
      %v659 = vmul.f32 %v622, %v654
      %v660 = vmul.f32 %v623, %v654
      %v661 = vmul.f32 %v624, %v654
      %v662 = vmul.f32 %v625, %v654
      %v663 = vmul.f32 %v626, %v654
      %v664 = vmul.f32 %v627, %v654
      %v665 = vmul.f32 %v628, %v654
      %v666 = vmul.f32 %v629, %v654
      %v667 = vmul.f32 %v630, %v654
      %v668 = vmul.f32 %v631, %v654
      %v669 = vmul.f32 %v632, %v654
      %v670 = vmul.f32 %v633, %v654
      %v671 = vmul.f32 %v634, %v654
      %v672 = vmul.f32 %v635, %v654
      %v673 = vmul.f32 %v636, %v654
      %v674 = vmul.f32 %v637, %v654
      %v675 = vmul.f32 %v638, %v654
      %v676 = vmul.f32 %v639, %v654
      %v677 = vmul.f32 %v640, %v654
      %v678 = vmul.f32 %v641, %v654
      %v679 = vmul.f32 %v642, %v654
      %v680 = vmul.f32 %v643, %v654
      %v681 = vmul.f32 %v644, %v654
      %v682 = vmul.f32 %v645, %v654
      %v683 = vmul.f32 %v646, %v654
      %v684 = vmul.f32 %v647, %v654
      %v685 = vmul.f32 %v648, %v654
      %v686 = vmul.f32 %v649, %v654
      %v687 = vadd.f32 %v586, %v655
      %v688 = vadd.f32 %v587, %v656
      %v689 = vadd.f32 %v588, %v657
      %v690 = vadd.f32 %v589, %v658
      %v691 = vadd.f32 %v590, %v659
      %v692 = vadd.f32 %v591, %v660
      %v693 = vadd.f32 %v592, %v661
      %v694 = vadd.f32 %v593, %v662
      %v695 = vadd.f32 %v594, %v663
      %v696 = vadd.f32 %v595, %v664
      %v697 = vadd.f32 %v596, %v665
      %v698 = vadd.f32 %v597, %v666
      %v699 = vadd.f32 %v598, %v667
      %v700 = vadd.f32 %v599, %v668
      %v701 = vadd.f32 %v600, %v669
      %v702 = vadd.f32 %v601, %v670
      %v703 = vadd.f32 %v602, %v671
      %v704 = vadd.f32 %v603, %v672
      %v705 = vadd.f32 %v604, %v673
      %v706 = vadd.f32 %v605, %v674
      %v707 = vadd.f32 %v606, %v675
      %v708 = vadd.f32 %v607, %v676
      %v709 = vadd.f32 %v608, %v677
      %v710 = vadd.f32 %v609, %v678
      %v711 = vadd.f32 %v610, %v679
      %v712 = vadd.f32 %v611, %v680
      %v713 = vadd.f32 %v612, %v681
      %v714 = vadd.f32 %v613, %v682
      %v715 = vadd.f32 %v614, %v683
      %v716 = vadd.f32 %v615, %v684
      %v717 = vadd.f32 %v616, %v685
      %v718 = vadd.f32 %v617, %v686
      %s719 = scalar_lea.vmem %s138, 48
      %v720 = vld [vmem:[%s719] sm:$0xff]
      %v721 = vld [vmem:[%s719 + $0x8] sm:$0xff]
      %v722 = vld [vmem:[%s719 + $0x18] sm:$0xff]
      %v723 = vld [vmem:[%s719 + $0x20] sm:$0xff]
      %v724 = vld [vmem:[%s719 + $0x30] sm:$0xff]
      %v725 = vld [vmem:[%s719 + $0x38] sm:$0xff]
      %v726 = vld [vmem:[%s719 + $0x48] sm:$0xff]
      %v727 = vld [vmem:[%s719 + $0x50] sm:$0xff]
      %v728 = vld [vmem:[%s719 + $0x60] sm:$0xff]
      %v729 = vld [vmem:[%s719 + $0x68] sm:$0xff]
      %v730 = vld [vmem:[%s719 + $0x78] sm:$0xff]
      %v731 = vld [vmem:[%s719 + $0x80] sm:$0xff]
      %v732 = vld [vmem:[%s719 + $0x90] sm:$0xff]
      %v733 = vld [vmem:[%s719 + $0x98] sm:$0xff]
      %v734 = vld [vmem:[%s719 + $0xa8] sm:$0xff]
      %v735 = vld [vmem:[%s719 + $0xb0] sm:$0xff]
      %v736 = vld [vmem:[%s719 + $0xc0] sm:$0xff]
      %v737 = vld [vmem:[%s719 + $0xc8] sm:$0xff]
      %v738 = vld [vmem:[%s719 + $0xd8] sm:$0xff]
      %v739 = vld [vmem:[%s719 + $0xe0] sm:$0xff]
      %v740 = vld [vmem:[%s719 + $0xf0] sm:$0xff]
      %v741 = vld [vmem:[%s719 + $0xf8] sm:$0xff]
      %v742 = vld [vmem:[%s719 + $0x108] sm:$0xff]
      %v743 = vld [vmem:[%s719 + $0x110] sm:$0xff]
      %v744 = vld [vmem:[%s719 + $0x120] sm:$0xff]
      %v745 = vld [vmem:[%s719 + $0x128] sm:$0xff]
      %v746 = vld [vmem:[%s719 + $0x138] sm:$0xff]
      %v747 = vld [vmem:[%s719 + $0x140] sm:$0xff]
      %v748 = vld [vmem:[%s719 + $0x150] sm:$0xff]
      %v749 = vld [vmem:[%s719 + $0x158] sm:$0xff]
      %v750 = vld [vmem:[%s719 + $0x168] sm:$0xff]
      %v751 = vld [vmem:[%s719 + $0x170] sm:$0xff]
      %v752 = vld [vmem:[%s1 + $0x6] sm:$0x1]
      %v753 = vlaneseq
      %v754 = vshrl.u32 %v753, 7
      %v755 = vsub.s32 0, %v754
      %v756 = vrot.slane %v752, %v755
      %v757 = vmul.f32 %v720, %v756
      %v758 = vmul.f32 %v721, %v756
      %v759 = vmul.f32 %v722, %v756
      %v760 = vmul.f32 %v723, %v756
      %v761 = vmul.f32 %v724, %v756
      %v762 = vmul.f32 %v725, %v756
      %v763 = vmul.f32 %v726, %v756
      %v764 = vmul.f32 %v727, %v756
      %v765 = vmul.f32 %v728, %v756
      %v766 = vmul.f32 %v729, %v756
      %v767 = vmul.f32 %v730, %v756
      %v768 = vmul.f32 %v731, %v756
      %v769 = vmul.f32 %v732, %v756
      %v770 = vmul.f32 %v733, %v756
      %v771 = vmul.f32 %v734, %v756
      %v772 = vmul.f32 %v735, %v756
      %v773 = vmul.f32 %v736, %v756
      %v774 = vmul.f32 %v737, %v756
      %v775 = vmul.f32 %v738, %v756
      %v776 = vmul.f32 %v739, %v756
      %v777 = vmul.f32 %v740, %v756
      %v778 = vmul.f32 %v741, %v756
      %v779 = vmul.f32 %v742, %v756
      %v780 = vmul.f32 %v743, %v756
      %v781 = vmul.f32 %v744, %v756
      %v782 = vmul.f32 %v745, %v756
      %v783 = vmul.f32 %v746, %v756
      %v784 = vmul.f32 %v747, %v756
      %v785 = vmul.f32 %v748, %v756
      %v786 = vmul.f32 %v749, %v756
      %v787 = vmul.f32 %v750, %v756
      %v788 = vmul.f32 %v751, %v756
      %v789 = vadd.f32 %v687, %v757
      %v790 = vadd.f32 %v688, %v758
      %v791 = vadd.f32 %v689, %v759
      %v792 = vadd.f32 %v690, %v760
      %v793 = vadd.f32 %v691, %v761
      %v794 = vadd.f32 %v692, %v762
      %v795 = vadd.f32 %v693, %v763
      %v796 = vadd.f32 %v694, %v764
      %v797 = vadd.f32 %v695, %v765
      %v798 = vadd.f32 %v696, %v766
      %v799 = vadd.f32 %v697, %v767
      %v800 = vadd.f32 %v698, %v768
      %v801 = vadd.f32 %v699, %v769
      %v802 = vadd.f32 %v700, %v770
      %v803 = vadd.f32 %v701, %v771
      %v804 = vadd.f32 %v702, %v772
      %v805 = vadd.f32 %v703, %v773
      %v806 = vadd.f32 %v704, %v774
      %v807 = vadd.f32 %v705, %v775
      %v808 = vadd.f32 %v706, %v776
      %v809 = vadd.f32 %v707, %v777
      %v810 = vadd.f32 %v708, %v778
      %v811 = vadd.f32 %v709, %v779
      %v812 = vadd.f32 %v710, %v780
      %v813 = vadd.f32 %v711, %v781
      %v814 = vadd.f32 %v712, %v782
      %v815 = vadd.f32 %v713, %v783
      %v816 = vadd.f32 %v714, %v784
      %v817 = vadd.f32 %v715, %v785
      %v818 = vadd.f32 %v716, %v786
      %v819 = vadd.f32 %v717, %v787
      %v820 = vadd.f32 %v718, %v788
      %v821 = vld [vmem:[%s719 + $0x1] sm:$0xff]
      %v822 = vld [vmem:[%s719 + $0x9] sm:$0xff]
      %v823 = vld [vmem:[%s719 + $0x19] sm:$0xff]
      %v824 = vld [vmem:[%s719 + $0x21] sm:$0xff]
      %v825 = vld [vmem:[%s719 + $0x31] sm:$0xff]
      %v826 = vld [vmem:[%s719 + $0x39] sm:$0xff]
      %v827 = vld [vmem:[%s719 + $0x49] sm:$0xff]
      %v828 = vld [vmem:[%s719 + $0x51] sm:$0xff]
      %v829 = vld [vmem:[%s719 + $0x61] sm:$0xff]
      %v830 = vld [vmem:[%s719 + $0x69] sm:$0xff]
      %v831 = vld [vmem:[%s719 + $0x79] sm:$0xff]
      %v832 = vld [vmem:[%s719 + $0x81] sm:$0xff]
      %v833 = vld [vmem:[%s719 + $0x91] sm:$0xff]
      %v834 = vld [vmem:[%s719 + $0x99] sm:$0xff]
      %v835 = vld [vmem:[%s719 + $0xa9] sm:$0xff]
      %v836 = vld [vmem:[%s719 + $0xb1] sm:$0xff]
      %v837 = vld [vmem:[%s719 + $0xc1] sm:$0xff]
      %v838 = vld [vmem:[%s719 + $0xc9] sm:$0xff]
      %v839 = vld [vmem:[%s719 + $0xd9] sm:$0xff]
      %v840 = vld [vmem:[%s719 + $0xe1] sm:$0xff]
      %v841 = vld [vmem:[%s719 + $0xf1] sm:$0xff]
      %v842 = vld [vmem:[%s719 + $0xf9] sm:$0xff]
      %v843 = vld [vmem:[%s719 + $0x109] sm:$0xff]
      %v844 = vld [vmem:[%s719 + $0x111] sm:$0xff]
      %v845 = vld [vmem:[%s719 + $0x121] sm:$0xff]
      %v846 = vld [vmem:[%s719 + $0x129] sm:$0xff]
      %v847 = vld [vmem:[%s719 + $0x139] sm:$0xff]
      %v848 = vld [vmem:[%s719 + $0x141] sm:$0xff]
      %v849 = vld [vmem:[%s719 + $0x151] sm:$0xff]
      %v850 = vld [vmem:[%s719 + $0x159] sm:$0xff]
      %v851 = vld [vmem:[%s719 + $0x169] sm:$0xff]
      %v852 = vld [vmem:[%s719 + $0x171] sm:$0xff]
      %v853 = vld [vmem:[%s1 + $0x7] sm:$0x1]
      %v854 = vlaneseq
      %v855 = vshrl.u32 %v854, 7
      %v856 = vsub.s32 0, %v855
      %v857 = vrot.slane %v853, %v856
      %v858 = vmul.f32 %v821, %v857
      %v859 = vmul.f32 %v822, %v857
      %v860 = vmul.f32 %v823, %v857
      %v861 = vmul.f32 %v824, %v857
      %v862 = vmul.f32 %v825, %v857
      %v863 = vmul.f32 %v826, %v857
      %v864 = vmul.f32 %v827, %v857
      %v865 = vmul.f32 %v828, %v857
      %v866 = vmul.f32 %v829, %v857
      %v867 = vmul.f32 %v830, %v857
      %v868 = vmul.f32 %v831, %v857
      %v869 = vmul.f32 %v832, %v857
      %v870 = vmul.f32 %v833, %v857
      %v871 = vmul.f32 %v834, %v857
      %v872 = vmul.f32 %v835, %v857
      %v873 = vmul.f32 %v836, %v857
      %v874 = vmul.f32 %v837, %v857
      %v875 = vmul.f32 %v838, %v857
      %v876 = vmul.f32 %v839, %v857
      %v877 = vmul.f32 %v840, %v857
      %v878 = vmul.f32 %v841, %v857
      %v879 = vmul.f32 %v842, %v857
      %v880 = vmul.f32 %v843, %v857
      %v881 = vmul.f32 %v844, %v857
      %v882 = vmul.f32 %v845, %v857
      %v883 = vmul.f32 %v846, %v857
      %v884 = vmul.f32 %v847, %v857
      %v885 = vmul.f32 %v848, %v857
      %v886 = vmul.f32 %v849, %v857
      %v887 = vmul.f32 %v850, %v857
      %v888 = vmul.f32 %v851, %v857
      %v889 = vmul.f32 %v852, %v857
      %v890 = vadd.f32 %v789, %v858
      %v891 = vadd.f32 %v790, %v859
      %v892 = vadd.f32 %v791, %v860
      %v893 = vadd.f32 %v792, %v861
      %v894 = vadd.f32 %v793, %v862
      %v895 = vadd.f32 %v794, %v863
      %v896 = vadd.f32 %v795, %v864
      %v897 = vadd.f32 %v796, %v865
      %v898 = vadd.f32 %v797, %v866
      %v899 = vadd.f32 %v798, %v867
      %v900 = vadd.f32 %v799, %v868
      %v901 = vadd.f32 %v800, %v869
      %v902 = vadd.f32 %v801, %v870
      %v903 = vadd.f32 %v802, %v871
      %v904 = vadd.f32 %v803, %v872
      %v905 = vadd.f32 %v804, %v873
      %v906 = vadd.f32 %v805, %v874
      %v907 = vadd.f32 %v806, %v875
      %v908 = vadd.f32 %v807, %v876
      %v909 = vadd.f32 %v808, %v877
      %v910 = vadd.f32 %v809, %v878
      %v911 = vadd.f32 %v810, %v879
      %v912 = vadd.f32 %v811, %v880
      %v913 = vadd.f32 %v812, %v881
      %v914 = vadd.f32 %v813, %v882
      %v915 = vadd.f32 %v814, %v883
      %v916 = vadd.f32 %v815, %v884
      %v917 = vadd.f32 %v816, %v885
      %v918 = vadd.f32 %v817, %v886
      %v919 = vadd.f32 %v818, %v887
      %v920 = vadd.f32 %v819, %v888
      %v921 = vadd.f32 %v820, %v889
      %v922 = vld [vmem:[%s719 + $0x2] sm:$0xff]
      %v923 = vld [vmem:[%s719 + $0xa] sm:$0xff]
      %v924 = vld [vmem:[%s719 + $0x1a] sm:$0xff]
      %v925 = vld [vmem:[%s719 + $0x22] sm:$0xff]
      %v926 = vld [vmem:[%s719 + $0x32] sm:$0xff]
      %v927 = vld [vmem:[%s719 + $0x3a] sm:$0xff]
      %v928 = vld [vmem:[%s719 + $0x4a] sm:$0xff]
      %v929 = vld [vmem:[%s719 + $0x52] sm:$0xff]
      %v930 = vld [vmem:[%s719 + $0x62] sm:$0xff]
      %v931 = vld [vmem:[%s719 + $0x6a] sm:$0xff]
      %v932 = vld [vmem:[%s719 + $0x7a] sm:$0xff]
      %v933 = vld [vmem:[%s719 + $0x82] sm:$0xff]
      %v934 = vld [vmem:[%s719 + $0x92] sm:$0xff]
      %v935 = vld [vmem:[%s719 + $0x9a] sm:$0xff]
      %v936 = vld [vmem:[%s719 + $0xaa] sm:$0xff]
      %v937 = vld [vmem:[%s719 + $0xb2] sm:$0xff]
      %v938 = vld [vmem:[%s719 + $0xc2] sm:$0xff]
      %v939 = vld [vmem:[%s719 + $0xca] sm:$0xff]
      %v940 = vld [vmem:[%s719 + $0xda] sm:$0xff]
      %v941 = vld [vmem:[%s719 + $0xe2] sm:$0xff]
      %v942 = vld [vmem:[%s719 + $0xf2] sm:$0xff]
      %v943 = vld [vmem:[%s719 + $0xfa] sm:$0xff]
      %v944 = vld [vmem:[%s719 + $0x10a] sm:$0xff]
      %v945 = vld [vmem:[%s719 + $0x112] sm:$0xff]
      %v946 = vld [vmem:[%s719 + $0x122] sm:$0xff]
      %v947 = vld [vmem:[%s719 + $0x12a] sm:$0xff]
      %v948 = vld [vmem:[%s719 + $0x13a] sm:$0xff]
      %v949 = vld [vmem:[%s719 + $0x142] sm:$0xff]
      %v950 = vld [vmem:[%s719 + $0x152] sm:$0xff]
      %v951 = vld [vmem:[%s719 + $0x15a] sm:$0xff]
      %v952 = vld [vmem:[%s719 + $0x16a] sm:$0xff]
      %v953 = vld [vmem:[%s719 + $0x172] sm:$0xff]
      %v954 = vld [vmem:[%s1 + $0x8] sm:$0x1]
      %v955 = vlaneseq
      %v956 = vshrl.u32 %v955, 7
      %v957 = vsub.s32 0, %v956
      %v958 = vrot.slane %v954, %v957
      %v959 = vmul.f32 %v922, %v958
      %v960 = vmul.f32 %v923, %v958
      %v961 = vmul.f32 %v924, %v958
      %v962 = vmul.f32 %v925, %v958
      %v963 = vmul.f32 %v926, %v958
      %v964 = vmul.f32 %v927, %v958
      %v965 = vmul.f32 %v928, %v958
      %v966 = vmul.f32 %v929, %v958
      %v967 = vmul.f32 %v930, %v958
      %v968 = vmul.f32 %v931, %v958
      %v969 = vmul.f32 %v932, %v958
      %v970 = vmul.f32 %v933, %v958
      %v971 = vmul.f32 %v934, %v958
      %v972 = vmul.f32 %v935, %v958
      %v973 = vmul.f32 %v936, %v958
      %v974 = vmul.f32 %v937, %v958
      %v975 = vmul.f32 %v938, %v958
      %v976 = vmul.f32 %v939, %v958
      %v977 = vmul.f32 %v940, %v958
      %v978 = vmul.f32 %v941, %v958
      %v979 = vmul.f32 %v942, %v958
      %v980 = vmul.f32 %v943, %v958
      %v981 = vmul.f32 %v944, %v958
      %v982 = vmul.f32 %v945, %v958
      %v983 = vmul.f32 %v946, %v958
      %v984 = vmul.f32 %v947, %v958
      %v985 = vmul.f32 %v948, %v958
      %v986 = vmul.f32 %v949, %v958
      %v987 = vmul.f32 %v950, %v958
      %v988 = vmul.f32 %v951, %v958
      %v989 = vmul.f32 %v952, %v958
      %v990 = vmul.f32 %v953, %v958
      %v991 = vadd.f32 %v890, %v959
      %v992 = vadd.f32 %v891, %v960
      %v993 = vadd.f32 %v892, %v961
      %v994 = vadd.f32 %v893, %v962
      %v995 = vadd.f32 %v894, %v963
      %v996 = vadd.f32 %v895, %v964
      %v997 = vadd.f32 %v896, %v965
      %v998 = vadd.f32 %v897, %v966
      %v999 = vadd.f32 %v898, %v967
      %v1000 = vadd.f32 %v899, %v968
      %v1001 = vadd.f32 %v900, %v969
      %v1002 = vadd.f32 %v901, %v970
      %v1003 = vadd.f32 %v902, %v971
      %v1004 = vadd.f32 %v903, %v972
      %v1005 = vadd.f32 %v904, %v973
      %v1006 = vadd.f32 %v905, %v974
      %v1007 = vadd.f32 %v906, %v975
      %v1008 = vadd.f32 %v907, %v976
      %v1009 = vadd.f32 %v908, %v977
      %v1010 = vadd.f32 %v909, %v978
      %v1011 = vadd.f32 %v910, %v979
      %v1012 = vadd.f32 %v911, %v980
      %v1013 = vadd.f32 %v912, %v981
      %v1014 = vadd.f32 %v913, %v982
      %v1015 = vadd.f32 %v914, %v983
      %v1016 = vadd.f32 %v915, %v984
      %v1017 = vadd.f32 %v916, %v985
      %v1018 = vadd.f32 %v917, %v986
      %v1019 = vadd.f32 %v918, %v987
      %v1020 = vadd.f32 %v919, %v988
      %v1021 = vadd.f32 %v920, %v989
      %v1022 = vadd.f32 %v921, %v990
      %v1023 = vmul.f32 %v991, 0.5
      %v1024 = vmul.f32 %v992, 0.5
      %v1025 = vmul.f32 %v993, 0.5
      %v1026 = vmul.f32 %v994, 0.5
      %v1027 = vmul.f32 %v995, 0.5
      %v1028 = vmul.f32 %v996, 0.5
      %v1029 = vmul.f32 %v997, 0.5
      %v1030 = vmul.f32 %v998, 0.5
      %v1031 = vmul.f32 %v999, 0.5
      %v1032 = vmul.f32 %v1000, 0.5
      %v1033 = vmul.f32 %v1001, 0.5
      %v1034 = vmul.f32 %v1002, 0.5
      %v1035 = vmul.f32 %v1003, 0.5
      %v1036 = vmul.f32 %v1004, 0.5
      %v1037 = vmul.f32 %v1005, 0.5
      %v1038 = vmul.f32 %v1006, 0.5
      %v1039 = vmul.f32 %v1007, 0.5
      %v1040 = vmul.f32 %v1008, 0.5
      %v1041 = vmul.f32 %v1009, 0.5
      %v1042 = vmul.f32 %v1010, 0.5
      %v1043 = vmul.f32 %v1011, 0.5
      %v1044 = vmul.f32 %v1012, 0.5
      %v1045 = vmul.f32 %v1013, 0.5
      %v1046 = vmul.f32 %v1014, 0.5
      %v1047 = vmul.f32 %v1015, 0.5
      %v1048 = vmul.f32 %v1016, 0.5
      %v1049 = vmul.f32 %v1017, 0.5
      %v1050 = vmul.f32 %v1018, 0.5
      %v1051 = vmul.f32 %v1019, 0.5
      %v1052 = vmul.f32 %v1020, 0.5
      %v1053 = vmul.f32 %v1021, 0.5
      %v1054 = vmul.f32 %v1022, 0.5
      %v1055 = vmul.f32 %v991, 0.70710677
      %v1056 = vmul.f32 %v992, 0.70710677
      %v1057 = vmul.f32 %v993, 0.70710677
      %v1058 = vmul.f32 %v994, 0.70710677
      %v1059 = vmul.f32 %v995, 0.70710677
      %v1060 = vmul.f32 %v996, 0.70710677
      %v1061 = vmul.f32 %v997, 0.70710677
      %v1062 = vmul.f32 %v998, 0.70710677
      %v1063 = vmul.f32 %v999, 0.70710677
      %v1064 = vmul.f32 %v1000, 0.70710677
      %v1065 = vmul.f32 %v1001, 0.70710677
      %v1066 = vmul.f32 %v1002, 0.70710677
      %v1067 = vmul.f32 %v1003, 0.70710677
      %v1068 = vmul.f32 %v1004, 0.70710677
      %v1069 = vmul.f32 %v1005, 0.70710677
      %v1070 = vmul.f32 %v1006, 0.70710677
      %v1071 = vmul.f32 %v1007, 0.70710677
      %v1072 = vmul.f32 %v1008, 0.70710677
      %v1073 = vmul.f32 %v1009, 0.70710677
      %v1074 = vmul.f32 %v1010, 0.70710677
      %v1075 = vmul.f32 %v1011, 0.70710677
      %v1076 = vmul.f32 %v1012, 0.70710677
      %v1077 = vmul.f32 %v1013, 0.70710677
      %v1078 = vmul.f32 %v1014, 0.70710677
      %v1079 = vmul.f32 %v1015, 0.70710677
      %v1080 = vmul.f32 %v1016, 0.70710677
      %v1081 = vmul.f32 %v1017, 0.70710677
      %v1082 = vmul.f32 %v1018, 0.70710677
      %v1083 = vmul.f32 %v1019, 0.70710677
      %v1084 = vmul.f32 %v1020, 0.70710677
      %v1085 = vmul.f32 %v1021, 0.70710677
      %v1086 = vmul.f32 %v1022, 0.70710677
      %vm1087 = vcmp.ge.f32.partialorder %v1055, 0.0
      %vm1088 = vcmp.ge.f32.partialorder %v1056, 0.0
      %vm1089 = vcmp.ge.f32.partialorder %v1057, 0.0
      %vm1090 = vcmp.ge.f32.partialorder %v1058, 0.0
      %vm1091 = vcmp.ge.f32.partialorder %v1059, 0.0
      %vm1092 = vcmp.ge.f32.partialorder %v1060, 0.0
      %vm1093 = vcmp.ge.f32.partialorder %v1061, 0.0
      %vm1094 = vcmp.ge.f32.partialorder %v1062, 0.0
      %vm1095 = vcmp.ge.f32.partialorder %v1063, 0.0
      %vm1096 = vcmp.ge.f32.partialorder %v1064, 0.0
      %vm1097 = vcmp.ge.f32.partialorder %v1065, 0.0
      %vm1098 = vcmp.ge.f32.partialorder %v1066, 0.0
      %vm1099 = vcmp.ge.f32.partialorder %v1067, 0.0
      %vm1100 = vcmp.ge.f32.partialorder %v1068, 0.0
      %vm1101 = vcmp.ge.f32.partialorder %v1069, 0.0
      %vm1102 = vcmp.ge.f32.partialorder %v1070, 0.0
      %vm1103 = vcmp.ge.f32.partialorder %v1071, 0.0
      %vm1104 = vcmp.ge.f32.partialorder %v1072, 0.0
      %vm1105 = vcmp.ge.f32.partialorder %v1073, 0.0
      %vm1106 = vcmp.ge.f32.partialorder %v1074, 0.0
      %vm1107 = vcmp.ge.f32.partialorder %v1075, 0.0
      %vm1108 = vcmp.ge.f32.partialorder %v1076, 0.0
      %vm1109 = vcmp.ge.f32.partialorder %v1077, 0.0
      %vm1110 = vcmp.ge.f32.partialorder %v1078, 0.0
      %vm1111 = vcmp.ge.f32.partialorder %v1079, 0.0
      %vm1112 = vcmp.ge.f32.partialorder %v1080, 0.0
      %vm1113 = vcmp.ge.f32.partialorder %v1081, 0.0
      %vm1114 = vcmp.ge.f32.partialorder %v1082, 0.0
      %vm1115 = vcmp.ge.f32.partialorder %v1083, 0.0
      %vm1116 = vcmp.ge.f32.partialorder %v1084, 0.0
      %vm1117 = vcmp.ge.f32.partialorder %v1085, 0.0
      %vm1118 = vcmp.ge.f32.partialorder %v1086, 0.0
      %v1119 = vsel %vm1087, 1.0, -1.0
      %v1120 = vsel %vm1088, 1.0, -1.0
      %v1121 = vsel %vm1089, 1.0, -1.0
      %v1122 = vsel %vm1090, 1.0, -1.0
      %v1123 = vsel %vm1091, 1.0, -1.0
      %v1124 = vsel %vm1092, 1.0, -1.0
      %v1125 = vsel %vm1093, 1.0, -1.0
      %v1126 = vsel %vm1094, 1.0, -1.0
      %v1127 = vsel %vm1095, 1.0, -1.0
      %v1128 = vsel %vm1096, 1.0, -1.0
      %v1129 = vsel %vm1097, 1.0, -1.0
      %v1130 = vsel %vm1098, 1.0, -1.0
      %v1131 = vsel %vm1099, 1.0, -1.0
      %v1132 = vsel %vm1100, 1.0, -1.0
      %v1133 = vsel %vm1101, 1.0, -1.0
      %v1134 = vsel %vm1102, 1.0, -1.0
      %v1135 = vsel %vm1103, 1.0, -1.0
      %v1136 = vsel %vm1104, 1.0, -1.0
      %v1137 = vsel %vm1105, 1.0, -1.0
      %v1138 = vsel %vm1106, 1.0, -1.0
      %v1139 = vsel %vm1107, 1.0, -1.0
      %v1140 = vsel %vm1108, 1.0, -1.0
      %v1141 = vsel %vm1109, 1.0, -1.0
      %v1142 = vsel %vm1110, 1.0, -1.0
      %v1143 = vsel %vm1111, 1.0, -1.0
      %v1144 = vsel %vm1112, 1.0, -1.0
      %v1145 = vsel %vm1113, 1.0, -1.0
      %v1146 = vsel %vm1114, 1.0, -1.0
      %v1147 = vsel %vm1115, 1.0, -1.0
      %v1148 = vsel %vm1116, 1.0, -1.0
      %v1149 = vsel %vm1117, 1.0, -1.0
      %v1150 = vsel %vm1118, 1.0, -1.0
      %v1151 = vand.u32 2147483647, %v1055
      %v1152 = vand.u32 2147483647, %v1056
      %v1153 = vand.u32 2147483647, %v1057
      %v1154 = vand.u32 2147483647, %v1058
      %v1155 = vand.u32 2147483647, %v1059
      %v1156 = vand.u32 2147483647, %v1060
      %v1157 = vand.u32 2147483647, %v1061
      %v1158 = vand.u32 2147483647, %v1062
      %v1159 = vand.u32 2147483647, %v1063
      %v1160 = vand.u32 2147483647, %v1064
      %v1161 = vand.u32 2147483647, %v1065
      %v1162 = vand.u32 2147483647, %v1066
      %v1163 = vand.u32 2147483647, %v1067
      %v1164 = vand.u32 2147483647, %v1068
      %v1165 = vand.u32 2147483647, %v1069
      %v1166 = vand.u32 2147483647, %v1070
      %v1167 = vand.u32 2147483647, %v1071
      %v1168 = vand.u32 2147483647, %v1072
      %v1169 = vand.u32 2147483647, %v1073
      %v1170 = vand.u32 2147483647, %v1074
      %v1171 = vand.u32 2147483647, %v1075
      %v1172 = vand.u32 2147483647, %v1076
      %v1173 = vand.u32 2147483647, %v1077
      %v1174 = vand.u32 2147483647, %v1078
      %v1175 = vand.u32 2147483647, %v1079
      %v1176 = vand.u32 2147483647, %v1080
      %v1177 = vand.u32 2147483647, %v1081
      %v1178 = vand.u32 2147483647, %v1082
      %v1179 = vand.u32 2147483647, %v1083
      %v1180 = vand.u32 2147483647, %v1084
      %v1181 = vand.u32 2147483647, %v1085
      %v1182 = vand.u32 2147483647, %v1086
      %v1183 = vmul.f32 %v1151, 0.3275911
      %v1184 = vmul.f32 %v1152, 0.3275911
      %v1185 = vmul.f32 %v1153, 0.3275911
      %v1186 = vmul.f32 %v1154, 0.3275911
      %v1187 = vmul.f32 %v1155, 0.3275911
      %v1188 = vmul.f32 %v1156, 0.3275911
      %v1189 = vmul.f32 %v1157, 0.3275911
      %v1190 = vmul.f32 %v1158, 0.3275911
      %v1191 = vmul.f32 %v1159, 0.3275911
      %v1192 = vmul.f32 %v1160, 0.3275911
      %v1193 = vmul.f32 %v1161, 0.3275911
      %v1194 = vmul.f32 %v1162, 0.3275911
      %v1195 = vmul.f32 %v1163, 0.3275911
      %v1196 = vmul.f32 %v1164, 0.3275911
      %v1197 = vmul.f32 %v1165, 0.3275911
      %v1198 = vmul.f32 %v1166, 0.3275911
      %v1199 = vmul.f32 %v1167, 0.3275911
      %v1200 = vmul.f32 %v1168, 0.3275911
      %v1201 = vmul.f32 %v1169, 0.3275911
      %v1202 = vmul.f32 %v1170, 0.3275911
      %v1203 = vmul.f32 %v1171, 0.3275911
      %v1204 = vmul.f32 %v1172, 0.3275911
      %v1205 = vmul.f32 %v1173, 0.3275911
      %v1206 = vmul.f32 %v1174, 0.3275911
      %v1207 = vmul.f32 %v1175, 0.3275911
      %v1208 = vmul.f32 %v1176, 0.3275911
      %v1209 = vmul.f32 %v1177, 0.3275911
      %v1210 = vmul.f32 %v1178, 0.3275911
      %v1211 = vmul.f32 %v1179, 0.3275911
      %v1212 = vmul.f32 %v1180, 0.3275911
      %v1213 = vmul.f32 %v1181, 0.3275911
      %v1214 = vmul.f32 %v1182, 0.3275911
      %v1215 = vadd.f32 %v1183, 1.0
      %v1216 = vadd.f32 %v1184, 1.0
      %v1217 = vadd.f32 %v1185, 1.0
      %v1218 = vadd.f32 %v1186, 1.0
      %v1219 = vadd.f32 %v1187, 1.0
      %v1220 = vadd.f32 %v1188, 1.0
      %v1221 = vadd.f32 %v1189, 1.0
      %v1222 = vadd.f32 %v1190, 1.0
      %v1223 = vadd.f32 %v1191, 1.0
      %v1224 = vadd.f32 %v1192, 1.0
      %v1225 = vadd.f32 %v1193, 1.0
      %v1226 = vadd.f32 %v1194, 1.0
      %v1227 = vadd.f32 %v1195, 1.0
      %v1228 = vadd.f32 %v1196, 1.0
      %v1229 = vadd.f32 %v1197, 1.0
      %v1230 = vadd.f32 %v1198, 1.0
      %v1231 = vadd.f32 %v1199, 1.0
      %v1232 = vadd.f32 %v1200, 1.0
      %v1233 = vadd.f32 %v1201, 1.0
      %v1234 = vadd.f32 %v1202, 1.0
      %v1235 = vadd.f32 %v1203, 1.0
      %v1236 = vadd.f32 %v1204, 1.0
      %v1237 = vadd.f32 %v1205, 1.0
      %v1238 = vadd.f32 %v1206, 1.0
      %v1239 = vadd.f32 %v1207, 1.0
      %v1240 = vadd.f32 %v1208, 1.0
      %v1241 = vadd.f32 %v1209, 1.0
      %v1242 = vadd.f32 %v1210, 1.0
      %v1243 = vadd.f32 %v1211, 1.0
      %v1244 = vadd.f32 %v1212, 1.0
      %v1245 = vadd.f32 %v1213, 1.0
      %v1246 = vadd.f32 %v1214, 1.0
      %v1247 = vrcp.pop %v1215
      %v1248 = vmul.f32 1.0, %v1247
      %v1249 = vrcp.pop %v1216
      %v1250 = vmul.f32 1.0, %v1249
      %v1251 = vrcp.pop %v1217
      %v1252 = vmul.f32 1.0, %v1251
      %v1253 = vrcp.pop %v1218
      %v1254 = vmul.f32 1.0, %v1253
      %v1255 = vrcp.pop %v1219
      %v1256 = vmul.f32 1.0, %v1255
      %v1257 = vrcp.pop %v1220
      %v1258 = vmul.f32 1.0, %v1257
      %v1259 = vrcp.pop %v1221
      %v1260 = vmul.f32 1.0, %v1259
      %v1261 = vrcp.pop %v1222
      %v1262 = vmul.f32 1.0, %v1261
      %v1263 = vrcp.pop %v1223
      %v1264 = vmul.f32 1.0, %v1263
      %v1265 = vrcp.pop %v1224
      %v1266 = vmul.f32 1.0, %v1265
      %v1267 = vrcp.pop %v1225
      %v1268 = vmul.f32 1.0, %v1267
      %v1269 = vrcp.pop %v1226
      %v1270 = vmul.f32 1.0, %v1269
      %v1271 = vrcp.pop %v1227
      %v1272 = vmul.f32 1.0, %v1271
      %v1273 = vrcp.pop %v1228
      %v1274 = vmul.f32 1.0, %v1273
      %v1275 = vrcp.pop %v1229
      %v1276 = vmul.f32 1.0, %v1275
      %v1277 = vrcp.pop %v1230
      %v1278 = vmul.f32 1.0, %v1277
      %v1279 = vrcp.pop %v1231
      %v1280 = vmul.f32 1.0, %v1279
      %v1281 = vrcp.pop %v1232
      %v1282 = vmul.f32 1.0, %v1281
      %v1283 = vrcp.pop %v1233
      %v1284 = vmul.f32 1.0, %v1283
      %v1285 = vrcp.pop %v1234
      %v1286 = vmul.f32 1.0, %v1285
      %v1287 = vrcp.pop %v1235
      %v1288 = vmul.f32 1.0, %v1287
      %v1289 = vrcp.pop %v1236
      %v1290 = vmul.f32 1.0, %v1289
      %v1291 = vrcp.pop %v1237
      %v1292 = vmul.f32 1.0, %v1291
      %v1293 = vrcp.pop %v1238
      %v1294 = vmul.f32 1.0, %v1293
      %v1295 = vrcp.pop %v1239
      %v1296 = vmul.f32 1.0, %v1295
      %v1297 = vrcp.pop %v1240
      %v1298 = vmul.f32 1.0, %v1297
      %v1299 = vrcp.pop %v1241
      %v1300 = vmul.f32 1.0, %v1299
      %v1301 = vrcp.pop %v1242
      %v1302 = vmul.f32 1.0, %v1301
      %v1303 = vrcp.pop %v1243
      %v1304 = vmul.f32 1.0, %v1303
      %v1305 = vrcp.pop %v1244
      %v1306 = vmul.f32 1.0, %v1305
      %v1307 = vrcp.pop %v1245
      %v1308 = vmul.f32 1.0, %v1307
      %v1309 = vrcp.pop %v1246
      %v1310 = vmul.f32 1.0, %v1309
      %v1311 = vmul.f32 %v1248, 1.0614054
      %v1312 = vmul.f32 %v1250, 1.0614054
      %v1313 = vmul.f32 %v1252, 1.0614054
      %v1314 = vmul.f32 %v1254, 1.0614054
      %v1315 = vmul.f32 %v1256, 1.0614054
      %v1316 = vmul.f32 %v1258, 1.0614054
      %v1317 = vmul.f32 %v1260, 1.0614054
      %v1318 = vmul.f32 %v1262, 1.0614054
      %v1319 = vmul.f32 %v1264, 1.0614054
      %v1320 = vmul.f32 %v1266, 1.0614054
      %v1321 = vmul.f32 %v1268, 1.0614054
      %v1322 = vmul.f32 %v1270, 1.0614054
      %v1323 = vmul.f32 %v1272, 1.0614054
      %v1324 = vmul.f32 %v1274, 1.0614054
      %v1325 = vmul.f32 %v1276, 1.0614054
      %v1326 = vmul.f32 %v1278, 1.0614054
      %v1327 = vmul.f32 %v1280, 1.0614054
      %v1328 = vmul.f32 %v1282, 1.0614054
      %v1329 = vmul.f32 %v1284, 1.0614054
      %v1330 = vmul.f32 %v1286, 1.0614054
      %v1331 = vmul.f32 %v1288, 1.0614054
      %v1332 = vmul.f32 %v1290, 1.0614054
      %v1333 = vmul.f32 %v1292, 1.0614054
      %v1334 = vmul.f32 %v1294, 1.0614054
      %v1335 = vmul.f32 %v1296, 1.0614054
      %v1336 = vmul.f32 %v1298, 1.0614054
      %v1337 = vmul.f32 %v1300, 1.0614054
      %v1338 = vmul.f32 %v1302, 1.0614054
      %v1339 = vmul.f32 %v1304, 1.0614054
      %v1340 = vmul.f32 %v1306, 1.0614054
      %v1341 = vmul.f32 %v1308, 1.0614054
      %v1342 = vmul.f32 %v1310, 1.0614054
      %v1343 = vadd.f32 %v1311, -1.4531521
      %v1344 = vadd.f32 %v1312, -1.4531521
      %v1345 = vadd.f32 %v1313, -1.4531521
      %v1346 = vadd.f32 %v1314, -1.4531521
      %v1347 = vadd.f32 %v1315, -1.4531521
      %v1348 = vadd.f32 %v1316, -1.4531521
      %v1349 = vadd.f32 %v1317, -1.4531521
      %v1350 = vadd.f32 %v1318, -1.4531521
      %v1351 = vadd.f32 %v1319, -1.4531521
      %v1352 = vadd.f32 %v1320, -1.4531521
      %v1353 = vadd.f32 %v1321, -1.4531521
      %v1354 = vadd.f32 %v1322, -1.4531521
      %v1355 = vadd.f32 %v1323, -1.4531521
      %v1356 = vadd.f32 %v1324, -1.4531521
      %v1357 = vadd.f32 %v1325, -1.4531521
      %v1358 = vadd.f32 %v1326, -1.4531521
      %v1359 = vadd.f32 %v1327, -1.4531521
      %v1360 = vadd.f32 %v1328, -1.4531521
      %v1361 = vadd.f32 %v1329, -1.4531521
      %v1362 = vadd.f32 %v1330, -1.4531521
      %v1363 = vadd.f32 %v1331, -1.4531521
      %v1364 = vadd.f32 %v1332, -1.4531521
      %v1365 = vadd.f32 %v1333, -1.4531521
      %v1366 = vadd.f32 %v1334, -1.4531521
      %v1367 = vadd.f32 %v1335, -1.4531521
      %v1368 = vadd.f32 %v1336, -1.4531521
      %v1369 = vadd.f32 %v1337, -1.4531521
      %v1370 = vadd.f32 %v1338, -1.4531521
      %v1371 = vadd.f32 %v1339, -1.4531521
      %v1372 = vadd.f32 %v1340, -1.4531521
      %v1373 = vadd.f32 %v1341, -1.4531521
      %v1374 = vadd.f32 %v1342, -1.4531521
      %v1375 = vmul.f32 %v1248, %v1343
      %v1376 = vmul.f32 %v1250, %v1344
      %v1377 = vmul.f32 %v1252, %v1345
      %v1378 = vmul.f32 %v1254, %v1346
      %v1379 = vmul.f32 %v1256, %v1347
      %v1380 = vmul.f32 %v1258, %v1348
      %v1381 = vmul.f32 %v1260, %v1349
      %v1382 = vmul.f32 %v1262, %v1350
      %v1383 = vmul.f32 %v1264, %v1351
      %v1384 = vmul.f32 %v1266, %v1352
      %v1385 = vmul.f32 %v1268, %v1353
      %v1386 = vmul.f32 %v1270, %v1354
      %v1387 = vmul.f32 %v1272, %v1355
      %v1388 = vmul.f32 %v1274, %v1356
      %v1389 = vmul.f32 %v1276, %v1357
      %v1390 = vmul.f32 %v1278, %v1358
      %v1391 = vmul.f32 %v1280, %v1359
      %v1392 = vmul.f32 %v1282, %v1360
      %v1393 = vmul.f32 %v1284, %v1361
      %v1394 = vmul.f32 %v1286, %v1362
      %v1395 = vmul.f32 %v1288, %v1363
      %v1396 = vmul.f32 %v1290, %v1364
      %v1397 = vmul.f32 %v1292, %v1365
      %v1398 = vmul.f32 %v1294, %v1366
      %v1399 = vmul.f32 %v1296, %v1367
      %v1400 = vmul.f32 %v1298, %v1368
      %v1401 = vmul.f32 %v1300, %v1369
      %v1402 = vmul.f32 %v1302, %v1370
      %v1403 = vmul.f32 %v1304, %v1371
      %v1404 = vmul.f32 %v1306, %v1372
      %v1405 = vmul.f32 %v1308, %v1373
      %v1406 = vmul.f32 %v1310, %v1374
      %v1407 = vadd.f32 %v1375, 1.4214138
      %v1408 = vadd.f32 %v1376, 1.4214138
      %v1409 = vadd.f32 %v1377, 1.4214138
      %v1410 = vadd.f32 %v1378, 1.4214138
      %v1411 = vadd.f32 %v1379, 1.4214138
      %v1412 = vadd.f32 %v1380, 1.4214138
      %v1413 = vadd.f32 %v1381, 1.4214138
      %v1414 = vadd.f32 %v1382, 1.4214138
      %v1415 = vadd.f32 %v1383, 1.4214138
      %v1416 = vadd.f32 %v1384, 1.4214138
      %v1417 = vadd.f32 %v1385, 1.4214138
      %v1418 = vadd.f32 %v1386, 1.4214138
      %v1419 = vadd.f32 %v1387, 1.4214138
      %v1420 = vadd.f32 %v1388, 1.4214138
      %v1421 = vadd.f32 %v1389, 1.4214138
      %v1422 = vadd.f32 %v1390, 1.4214138
      %v1423 = vadd.f32 %v1391, 1.4214138
      %v1424 = vadd.f32 %v1392, 1.4214138
      %v1425 = vadd.f32 %v1393, 1.4214138
      %v1426 = vadd.f32 %v1394, 1.4214138
      %v1427 = vadd.f32 %v1395, 1.4214138
      %v1428 = vadd.f32 %v1396, 1.4214138
      %v1429 = vadd.f32 %v1397, 1.4214138
      %v1430 = vadd.f32 %v1398, 1.4214138
      %v1431 = vadd.f32 %v1399, 1.4214138
      %v1432 = vadd.f32 %v1400, 1.4214138
      %v1433 = vadd.f32 %v1401, 1.4214138
      %v1434 = vadd.f32 %v1402, 1.4214138
      %v1435 = vadd.f32 %v1403, 1.4214138
      %v1436 = vadd.f32 %v1404, 1.4214138
      %v1437 = vadd.f32 %v1405, 1.4214138
      %v1438 = vadd.f32 %v1406, 1.4214138
      %v1439 = vmul.f32 %v1248, %v1407
      %v1440 = vmul.f32 %v1250, %v1408
      %v1441 = vmul.f32 %v1252, %v1409
      %v1442 = vmul.f32 %v1254, %v1410
      %v1443 = vmul.f32 %v1256, %v1411
      %v1444 = vmul.f32 %v1258, %v1412
      %v1445 = vmul.f32 %v1260, %v1413
      %v1446 = vmul.f32 %v1262, %v1414
      %v1447 = vmul.f32 %v1264, %v1415
      %v1448 = vmul.f32 %v1266, %v1416
      %v1449 = vmul.f32 %v1268, %v1417
      %v1450 = vmul.f32 %v1270, %v1418
      %v1451 = vmul.f32 %v1272, %v1419
      %v1452 = vmul.f32 %v1274, %v1420
      %v1453 = vmul.f32 %v1276, %v1421
      %v1454 = vmul.f32 %v1278, %v1422
      %v1455 = vmul.f32 %v1280, %v1423
      %v1456 = vmul.f32 %v1282, %v1424
      %v1457 = vmul.f32 %v1284, %v1425
      %v1458 = vmul.f32 %v1286, %v1426
      %v1459 = vmul.f32 %v1288, %v1427
      %v1460 = vmul.f32 %v1290, %v1428
      %v1461 = vmul.f32 %v1292, %v1429
      %v1462 = vmul.f32 %v1294, %v1430
      %v1463 = vmul.f32 %v1296, %v1431
      %v1464 = vmul.f32 %v1298, %v1432
      %v1465 = vmul.f32 %v1300, %v1433
      %v1466 = vmul.f32 %v1302, %v1434
      %v1467 = vmul.f32 %v1304, %v1435
      %v1468 = vmul.f32 %v1306, %v1436
      %v1469 = vmul.f32 %v1308, %v1437
      %v1470 = vmul.f32 %v1310, %v1438
      %v1471 = vadd.f32 %v1439, -0.28449672
      %v1472 = vadd.f32 %v1440, -0.28449672
      %v1473 = vadd.f32 %v1441, -0.28449672
      %v1474 = vadd.f32 %v1442, -0.28449672
      %v1475 = vadd.f32 %v1443, -0.28449672
      %v1476 = vadd.f32 %v1444, -0.28449672
      %v1477 = vadd.f32 %v1445, -0.28449672
      %v1478 = vadd.f32 %v1446, -0.28449672
      %v1479 = vadd.f32 %v1447, -0.28449672
      %v1480 = vadd.f32 %v1448, -0.28449672
      %v1481 = vadd.f32 %v1449, -0.28449672
      %v1482 = vadd.f32 %v1450, -0.28449672
      %v1483 = vadd.f32 %v1451, -0.28449672
      %v1484 = vadd.f32 %v1452, -0.28449672
      %v1485 = vadd.f32 %v1453, -0.28449672
      %v1486 = vadd.f32 %v1454, -0.28449672
      %v1487 = vadd.f32 %v1455, -0.28449672
      %v1488 = vadd.f32 %v1456, -0.28449672
      %v1489 = vadd.f32 %v1457, -0.28449672
      %v1490 = vadd.f32 %v1458, -0.28449672
      %v1491 = vadd.f32 %v1459, -0.28449672
      %v1492 = vadd.f32 %v1460, -0.28449672
      %v1493 = vadd.f32 %v1461, -0.28449672
      %v1494 = vadd.f32 %v1462, -0.28449672
      %v1495 = vadd.f32 %v1463, -0.28449672
      %v1496 = vadd.f32 %v1464, -0.28449672
      %v1497 = vadd.f32 %v1465, -0.28449672
      %v1498 = vadd.f32 %v1466, -0.28449672
      %v1499 = vadd.f32 %v1467, -0.28449672
      %v1500 = vadd.f32 %v1468, -0.28449672
      %v1501 = vadd.f32 %v1469, -0.28449672
      %v1502 = vadd.f32 %v1470, -0.28449672
      %v1503 = vmul.f32 %v1248, %v1471
      %v1504 = vmul.f32 %v1250, %v1472
      %v1505 = vmul.f32 %v1252, %v1473
      %v1506 = vmul.f32 %v1254, %v1474
      %v1507 = vmul.f32 %v1256, %v1475
      %v1508 = vmul.f32 %v1258, %v1476
      %v1509 = vmul.f32 %v1260, %v1477
      %v1510 = vmul.f32 %v1262, %v1478
      %v1511 = vmul.f32 %v1264, %v1479
      %v1512 = vmul.f32 %v1266, %v1480
      %v1513 = vmul.f32 %v1268, %v1481
      %v1514 = vmul.f32 %v1270, %v1482
      %v1515 = vmul.f32 %v1272, %v1483
      %v1516 = vmul.f32 %v1274, %v1484
      %v1517 = vmul.f32 %v1276, %v1485
      %v1518 = vmul.f32 %v1278, %v1486
      %v1519 = vmul.f32 %v1280, %v1487
      %v1520 = vmul.f32 %v1282, %v1488
      %v1521 = vmul.f32 %v1284, %v1489
      %v1522 = vmul.f32 %v1286, %v1490
      %v1523 = vmul.f32 %v1288, %v1491
      %v1524 = vmul.f32 %v1290, %v1492
      %v1525 = vmul.f32 %v1292, %v1493
      %v1526 = vmul.f32 %v1294, %v1494
      %v1527 = vmul.f32 %v1296, %v1495
      %v1528 = vmul.f32 %v1298, %v1496
      %v1529 = vmul.f32 %v1300, %v1497
      %v1530 = vmul.f32 %v1302, %v1498
      %v1531 = vmul.f32 %v1304, %v1499
      %v1532 = vmul.f32 %v1306, %v1500
      %v1533 = vmul.f32 %v1308, %v1501
      %v1534 = vmul.f32 %v1310, %v1502
      %v1535 = vadd.f32 %v1503, 0.2548296
      %v1536 = vadd.f32 %v1504, 0.2548296
      %v1537 = vadd.f32 %v1505, 0.2548296
      %v1538 = vadd.f32 %v1506, 0.2548296
      %v1539 = vadd.f32 %v1507, 0.2548296
      %v1540 = vadd.f32 %v1508, 0.2548296
      %v1541 = vadd.f32 %v1509, 0.2548296
      %v1542 = vadd.f32 %v1510, 0.2548296
      %v1543 = vadd.f32 %v1511, 0.2548296
      %v1544 = vadd.f32 %v1512, 0.2548296
      %v1545 = vadd.f32 %v1513, 0.2548296
      %v1546 = vadd.f32 %v1514, 0.2548296
      %v1547 = vadd.f32 %v1515, 0.2548296
      %v1548 = vadd.f32 %v1516, 0.2548296
      %v1549 = vadd.f32 %v1517, 0.2548296
      %v1550 = vadd.f32 %v1518, 0.2548296
      %v1551 = vadd.f32 %v1519, 0.2548296
      %v1552 = vadd.f32 %v1520, 0.2548296
      %v1553 = vadd.f32 %v1521, 0.2548296
      %v1554 = vadd.f32 %v1522, 0.2548296
      %v1555 = vadd.f32 %v1523, 0.2548296
      %v1556 = vadd.f32 %v1524, 0.2548296
      %v1557 = vadd.f32 %v1525, 0.2548296
      %v1558 = vadd.f32 %v1526, 0.2548296
      %v1559 = vadd.f32 %v1527, 0.2548296
      %v1560 = vadd.f32 %v1528, 0.2548296
      %v1561 = vadd.f32 %v1529, 0.2548296
      %v1562 = vadd.f32 %v1530, 0.2548296
      %v1563 = vadd.f32 %v1531, 0.2548296
      %v1564 = vadd.f32 %v1532, 0.2548296
      %v1565 = vadd.f32 %v1533, 0.2548296
      %v1566 = vadd.f32 %v1534, 0.2548296
      %v1567 = vmul.f32 %v1248, %v1535
      %v1568 = vmul.f32 %v1250, %v1536
      %v1569 = vmul.f32 %v1252, %v1537
      %v1570 = vmul.f32 %v1254, %v1538
      %v1571 = vmul.f32 %v1256, %v1539
      %v1572 = vmul.f32 %v1258, %v1540
      %v1573 = vmul.f32 %v1260, %v1541
      %v1574 = vmul.f32 %v1262, %v1542
      %v1575 = vmul.f32 %v1264, %v1543
      %v1576 = vmul.f32 %v1266, %v1544
      %v1577 = vmul.f32 %v1268, %v1545
      %v1578 = vmul.f32 %v1270, %v1546
      %v1579 = vmul.f32 %v1272, %v1547
      %v1580 = vmul.f32 %v1274, %v1548
      %v1581 = vmul.f32 %v1276, %v1549
      %v1582 = vmul.f32 %v1278, %v1550
      %v1583 = vmul.f32 %v1280, %v1551
      %v1584 = vmul.f32 %v1282, %v1552
      %v1585 = vmul.f32 %v1284, %v1553
      %v1586 = vmul.f32 %v1286, %v1554
      %v1587 = vmul.f32 %v1288, %v1555
      %v1588 = vmul.f32 %v1290, %v1556
      %v1589 = vmul.f32 %v1292, %v1557
      %v1590 = vmul.f32 %v1294, %v1558
      %v1591 = vmul.f32 %v1296, %v1559
      %v1592 = vmul.f32 %v1298, %v1560
      %v1593 = vmul.f32 %v1300, %v1561
      %v1594 = vmul.f32 %v1302, %v1562
      %v1595 = vmul.f32 %v1304, %v1563
      %v1596 = vmul.f32 %v1306, %v1564
      %v1597 = vmul.f32 %v1308, %v1565
      %v1598 = vmul.f32 %v1310, %v1566
      %v1599 = vsub.f32 0.0, %v1151
      %v1600 = vsub.f32 0.0, %v1152
      %v1601 = vsub.f32 0.0, %v1153
      %v1602 = vsub.f32 0.0, %v1154
      %v1603 = vsub.f32 0.0, %v1155
      %v1604 = vsub.f32 0.0, %v1156
      %v1605 = vsub.f32 0.0, %v1157
      %v1606 = vsub.f32 0.0, %v1158
      %v1607 = vsub.f32 0.0, %v1159
      %v1608 = vsub.f32 0.0, %v1160
      %v1609 = vsub.f32 0.0, %v1161
      %v1610 = vsub.f32 0.0, %v1162
      %v1611 = vsub.f32 0.0, %v1163
      %v1612 = vsub.f32 0.0, %v1164
      %v1613 = vsub.f32 0.0, %v1165
      %v1614 = vsub.f32 0.0, %v1166
      %v1615 = vsub.f32 0.0, %v1167
      %v1616 = vsub.f32 0.0, %v1168
      %v1617 = vsub.f32 0.0, %v1169
      %v1618 = vsub.f32 0.0, %v1170
      %v1619 = vsub.f32 0.0, %v1171
      %v1620 = vsub.f32 0.0, %v1172
      %v1621 = vsub.f32 0.0, %v1173
      %v1622 = vsub.f32 0.0, %v1174
      %v1623 = vsub.f32 0.0, %v1175
      %v1624 = vsub.f32 0.0, %v1176
      %v1625 = vsub.f32 0.0, %v1177
      %v1626 = vsub.f32 0.0, %v1178
      %v1627 = vsub.f32 0.0, %v1179
      %v1628 = vsub.f32 0.0, %v1180
      %v1629 = vsub.f32 0.0, %v1181
      %v1630 = vsub.f32 0.0, %v1182
      %v1631 = vmul.f32 %v1599, %v1151
      %v1632 = vmul.f32 %v1600, %v1152
      %v1633 = vmul.f32 %v1601, %v1153
      %v1634 = vmul.f32 %v1602, %v1154
      %v1635 = vmul.f32 %v1603, %v1155
      %v1636 = vmul.f32 %v1604, %v1156
      %v1637 = vmul.f32 %v1605, %v1157
      %v1638 = vmul.f32 %v1606, %v1158
      %v1639 = vmul.f32 %v1607, %v1159
      %v1640 = vmul.f32 %v1608, %v1160
      %v1641 = vmul.f32 %v1609, %v1161
      %v1642 = vmul.f32 %v1610, %v1162
      %v1643 = vmul.f32 %v1611, %v1163
      %v1644 = vmul.f32 %v1612, %v1164
      %v1645 = vmul.f32 %v1613, %v1165
      %v1646 = vmul.f32 %v1614, %v1166
      %v1647 = vmul.f32 %v1615, %v1167
      %v1648 = vmul.f32 %v1616, %v1168
      %v1649 = vmul.f32 %v1617, %v1169
      %v1650 = vmul.f32 %v1618, %v1170
      %v1651 = vmul.f32 %v1619, %v1171
      %v1652 = vmul.f32 %v1620, %v1172
      %v1653 = vmul.f32 %v1621, %v1173
      %v1654 = vmul.f32 %v1622, %v1174
      %v1655 = vmul.f32 %v1623, %v1175
      %v1656 = vmul.f32 %v1624, %v1176
      %v1657 = vmul.f32 %v1625, %v1177
      %v1658 = vmul.f32 %v1626, %v1178
      %v1659 = vmul.f32 %v1627, %v1179
      %v1660 = vmul.f32 %v1628, %v1180
      %v1661 = vmul.f32 %v1629, %v1181
      %v1662 = vmul.f32 %v1630, %v1182
      %v1663 = vmul.f32 %v1631, 1.442695
      %v1664 = vpow.pop %v1663
      %v1665 = vmul.f32 %v1632, 1.442695
      %v1666 = vpow.pop %v1665
      %v1667 = vmul.f32 %v1633, 1.442695
      %v1668 = vpow.pop %v1667
      %v1669 = vmul.f32 %v1634, 1.442695
      %v1670 = vpow.pop %v1669
      %v1671 = vmul.f32 %v1635, 1.442695
      %v1672 = vpow.pop %v1671
      %v1673 = vmul.f32 %v1636, 1.442695
      %v1674 = vpow.pop %v1673
      %v1675 = vmul.f32 %v1637, 1.442695
      %v1676 = vpow.pop %v1675
      %v1677 = vmul.f32 %v1638, 1.442695
      %v1678 = vpow.pop %v1677
      %v1679 = vmul.f32 %v1639, 1.442695
      %v1680 = vpow.pop %v1679
      %v1681 = vmul.f32 %v1640, 1.442695
      %v1682 = vpow.pop %v1681
      %v1683 = vmul.f32 %v1641, 1.442695
      %v1684 = vpow.pop %v1683
      %v1685 = vmul.f32 %v1642, 1.442695
      %v1686 = vpow.pop %v1685
      %v1687 = vmul.f32 %v1643, 1.442695
      %v1688 = vpow.pop %v1687
      %v1689 = vmul.f32 %v1644, 1.442695
      %v1690 = vpow.pop %v1689
      %v1691 = vmul.f32 %v1645, 1.442695
      %v1692 = vpow.pop %v1691
      %v1693 = vmul.f32 %v1646, 1.442695
      %v1694 = vpow.pop %v1693
      %v1695 = vmul.f32 %v1647, 1.442695
      %v1696 = vpow.pop %v1695
      %v1697 = vmul.f32 %v1648, 1.442695
      %v1698 = vpow.pop %v1697
      %v1699 = vmul.f32 %v1649, 1.442695
      %v1700 = vpow.pop %v1699
      %v1701 = vmul.f32 %v1650, 1.442695
      %v1702 = vpow.pop %v1701
      %v1703 = vmul.f32 %v1651, 1.442695
      %v1704 = vpow.pop %v1703
      %v1705 = vmul.f32 %v1652, 1.442695
      %v1706 = vpow.pop %v1705
      %v1707 = vmul.f32 %v1653, 1.442695
      %v1708 = vpow.pop %v1707
      %v1709 = vmul.f32 %v1654, 1.442695
      %v1710 = vpow.pop %v1709
      %v1711 = vmul.f32 %v1655, 1.442695
      %v1712 = vpow.pop %v1711
      %v1713 = vmul.f32 %v1656, 1.442695
      %v1714 = vpow.pop %v1713
      %v1715 = vmul.f32 %v1657, 1.442695
      %v1716 = vpow.pop %v1715
      %v1717 = vmul.f32 %v1658, 1.442695
      %v1718 = vpow.pop %v1717
      %v1719 = vmul.f32 %v1659, 1.442695
      %v1720 = vpow.pop %v1719
      %v1721 = vmul.f32 %v1660, 1.442695
      %v1722 = vpow.pop %v1721
      %v1723 = vmul.f32 %v1661, 1.442695
      %v1724 = vpow.pop %v1723
      %v1725 = vmul.f32 %v1662, 1.442695
      %v1726 = vpow.pop %v1725
      %v1727 = vmul.f32 %v1567, %v1664
      %v1728 = vmul.f32 %v1568, %v1666
      %v1729 = vmul.f32 %v1569, %v1668
      %v1730 = vmul.f32 %v1570, %v1670
      %v1731 = vmul.f32 %v1571, %v1672
      %v1732 = vmul.f32 %v1572, %v1674
      %v1733 = vmul.f32 %v1573, %v1676
      %v1734 = vmul.f32 %v1574, %v1678
      %v1735 = vmul.f32 %v1575, %v1680
      %v1736 = vmul.f32 %v1576, %v1682
      %v1737 = vmul.f32 %v1577, %v1684
      %v1738 = vmul.f32 %v1578, %v1686
      %v1739 = vmul.f32 %v1579, %v1688
      %v1740 = vmul.f32 %v1580, %v1690
      %v1741 = vmul.f32 %v1581, %v1692
      %v1742 = vmul.f32 %v1582, %v1694
      %v1743 = vmul.f32 %v1583, %v1696
      %v1744 = vmul.f32 %v1584, %v1698
      %v1745 = vmul.f32 %v1585, %v1700
      %v1746 = vmul.f32 %v1586, %v1702
      %v1747 = vmul.f32 %v1587, %v1704
      %v1748 = vmul.f32 %v1588, %v1706
      %v1749 = vmul.f32 %v1589, %v1708
      %v1750 = vmul.f32 %v1590, %v1710
      %v1751 = vmul.f32 %v1591, %v1712
      %v1752 = vmul.f32 %v1592, %v1714
      %v1753 = vmul.f32 %v1593, %v1716
      %v1754 = vmul.f32 %v1594, %v1718
      %v1755 = vmul.f32 %v1595, %v1720
      %v1756 = vmul.f32 %v1596, %v1722
      %v1757 = vmul.f32 %v1597, %v1724
      %v1758 = vmul.f32 %v1598, %v1726
      %v1759 = vsub.f32 1.0, %v1727
      %v1760 = vsub.f32 1.0, %v1728
      %v1761 = vsub.f32 1.0, %v1729
      %v1762 = vsub.f32 1.0, %v1730
      %v1763 = vsub.f32 1.0, %v1731
      %v1764 = vsub.f32 1.0, %v1732
      %v1765 = vsub.f32 1.0, %v1733
      %v1766 = vsub.f32 1.0, %v1734
      %v1767 = vsub.f32 1.0, %v1735
      %v1768 = vsub.f32 1.0, %v1736
      %v1769 = vsub.f32 1.0, %v1737
      %v1770 = vsub.f32 1.0, %v1738
      %v1771 = vsub.f32 1.0, %v1739
      %v1772 = vsub.f32 1.0, %v1740
      %v1773 = vsub.f32 1.0, %v1741
      %v1774 = vsub.f32 1.0, %v1742
      %v1775 = vsub.f32 1.0, %v1743
      %v1776 = vsub.f32 1.0, %v1744
      %v1777 = vsub.f32 1.0, %v1745
      %v1778 = vsub.f32 1.0, %v1746
      %v1779 = vsub.f32 1.0, %v1747
      %v1780 = vsub.f32 1.0, %v1748
      %v1781 = vsub.f32 1.0, %v1749
      %v1782 = vsub.f32 1.0, %v1750
      %v1783 = vsub.f32 1.0, %v1751
      %v1784 = vsub.f32 1.0, %v1752
      %v1785 = vsub.f32 1.0, %v1753
      %v1786 = vsub.f32 1.0, %v1754
      %v1787 = vsub.f32 1.0, %v1755
      %v1788 = vsub.f32 1.0, %v1756
      %v1789 = vsub.f32 1.0, %v1757
      %v1790 = vsub.f32 1.0, %v1758
      %v1791 = vmul.f32 %v1119, %v1759
      %v1792 = vmul.f32 %v1120, %v1760
      %v1793 = vmul.f32 %v1121, %v1761
      %v1794 = vmul.f32 %v1122, %v1762
      %v1795 = vmul.f32 %v1123, %v1763
      %v1796 = vmul.f32 %v1124, %v1764
      %v1797 = vmul.f32 %v1125, %v1765
      %v1798 = vmul.f32 %v1126, %v1766
      %v1799 = vmul.f32 %v1127, %v1767
      %v1800 = vmul.f32 %v1128, %v1768
      %v1801 = vmul.f32 %v1129, %v1769
      %v1802 = vmul.f32 %v1130, %v1770
      %v1803 = vmul.f32 %v1131, %v1771
      %v1804 = vmul.f32 %v1132, %v1772
      %v1805 = vmul.f32 %v1133, %v1773
      %v1806 = vmul.f32 %v1134, %v1774
      %v1807 = vmul.f32 %v1135, %v1775
      %v1808 = vmul.f32 %v1136, %v1776
      %v1809 = vmul.f32 %v1137, %v1777
      %v1810 = vmul.f32 %v1138, %v1778
      %v1811 = vmul.f32 %v1139, %v1779
      %v1812 = vmul.f32 %v1140, %v1780
      %v1813 = vmul.f32 %v1141, %v1781
      %v1814 = vmul.f32 %v1142, %v1782
      %v1815 = vmul.f32 %v1143, %v1783
      %v1816 = vmul.f32 %v1144, %v1784
      %v1817 = vmul.f32 %v1145, %v1785
      %v1818 = vmul.f32 %v1146, %v1786
      %v1819 = vmul.f32 %v1147, %v1787
      %v1820 = vmul.f32 %v1148, %v1788
      %v1821 = vmul.f32 %v1149, %v1789
      %v1822 = vmul.f32 %v1150, %v1790
      %v1823 = vadd.f32 %v1791, 1.0
      %v1824 = vadd.f32 %v1792, 1.0
      %v1825 = vadd.f32 %v1793, 1.0
      %v1826 = vadd.f32 %v1794, 1.0
      %v1827 = vadd.f32 %v1795, 1.0
      %v1828 = vadd.f32 %v1796, 1.0
      %v1829 = vadd.f32 %v1797, 1.0
      %v1830 = vadd.f32 %v1798, 1.0
      %v1831 = vadd.f32 %v1799, 1.0
      %v1832 = vadd.f32 %v1800, 1.0
      %v1833 = vadd.f32 %v1801, 1.0
      %v1834 = vadd.f32 %v1802, 1.0
      %v1835 = vadd.f32 %v1803, 1.0
      %v1836 = vadd.f32 %v1804, 1.0
      %v1837 = vadd.f32 %v1805, 1.0
      %v1838 = vadd.f32 %v1806, 1.0
      %v1839 = vadd.f32 %v1807, 1.0
      %v1840 = vadd.f32 %v1808, 1.0
      %v1841 = vadd.f32 %v1809, 1.0
      %v1842 = vadd.f32 %v1810, 1.0
      %v1843 = vadd.f32 %v1811, 1.0
      %v1844 = vadd.f32 %v1812, 1.0
      %v1845 = vadd.f32 %v1813, 1.0
      %v1846 = vadd.f32 %v1814, 1.0
      %v1847 = vadd.f32 %v1815, 1.0
      %v1848 = vadd.f32 %v1816, 1.0
      %v1849 = vadd.f32 %v1817, 1.0
      %v1850 = vadd.f32 %v1818, 1.0
      %v1851 = vadd.f32 %v1819, 1.0
      %v1852 = vadd.f32 %v1820, 1.0
      %v1853 = vadd.f32 %v1821, 1.0
      %v1854 = vadd.f32 %v1822, 1.0
      %v1855 = vmul.f32 %v1023, %v1823
      %v1856 = vmul.f32 %v1024, %v1824
      %v1857 = vmul.f32 %v1025, %v1825
      %v1858 = vmul.f32 %v1026, %v1826
      %v1859 = vmul.f32 %v1027, %v1827
      %v1860 = vmul.f32 %v1028, %v1828
      %v1861 = vmul.f32 %v1029, %v1829
      %v1862 = vmul.f32 %v1030, %v1830
      %v1863 = vmul.f32 %v1031, %v1831
      %v1864 = vmul.f32 %v1032, %v1832
      %v1865 = vmul.f32 %v1033, %v1833
      %v1866 = vmul.f32 %v1034, %v1834
      %v1867 = vmul.f32 %v1035, %v1835
      %v1868 = vmul.f32 %v1036, %v1836
      %v1869 = vmul.f32 %v1037, %v1837
      %v1870 = vmul.f32 %v1038, %v1838
      %v1871 = vmul.f32 %v1039, %v1839
      %v1872 = vmul.f32 %v1040, %v1840
      %v1873 = vmul.f32 %v1041, %v1841
      %v1874 = vmul.f32 %v1042, %v1842
      %v1875 = vmul.f32 %v1043, %v1843
      %v1876 = vmul.f32 %v1044, %v1844
      %v1877 = vmul.f32 %v1045, %v1845
      %v1878 = vmul.f32 %v1046, %v1846
      %v1879 = vmul.f32 %v1047, %v1847
      %v1880 = vmul.f32 %v1048, %v1848
      %v1881 = vmul.f32 %v1049, %v1849
      %v1882 = vmul.f32 %v1050, %v1850
      %v1883 = vmul.f32 %v1051, %v1851
      %v1884 = vmul.f32 %v1052, %v1852
      %v1885 = vmul.f32 %v1053, %v1853
      %v1886 = vmul.f32 %v1054, %v1854
      %vm1887 = vcmask 523264
      %1888 = vst.msk [vmem:[%s143] sm:$0xff] %vm1887, %v1855
      %1889 = vst.msk [vmem:[%s143 + $0x8] sm:$0xff] %vm1887, %v1856
      %1890 = vst.msk [vmem:[%s143 + $0x10] sm:$0xff] %vm1887, %v1857
      %1891 = vst.msk [vmem:[%s143 + $0x18] sm:$0xff] %vm1887, %v1858
      %1892 = vst.msk [vmem:[%s143 + $0x20] sm:$0xff] %vm1887, %v1859
      %1893 = vst.msk [vmem:[%s143 + $0x28] sm:$0xff] %vm1887, %v1860
      %1894 = vst.msk [vmem:[%s143 + $0x30] sm:$0xff] %vm1887, %v1861
      %1895 = vst.msk [vmem:[%s143 + $0x38] sm:$0xff] %vm1887, %v1862
      %1896 = vst.msk [vmem:[%s143 + $0x40] sm:$0xff] %vm1887, %v1863
      %1897 = vst.msk [vmem:[%s143 + $0x48] sm:$0xff] %vm1887, %v1864
      %1898 = vst.msk [vmem:[%s143 + $0x50] sm:$0xff] %vm1887, %v1865
      %1899 = vst.msk [vmem:[%s143 + $0x58] sm:$0xff] %vm1887, %v1866
      %1900 = vst.msk [vmem:[%s143 + $0x60] sm:$0xff] %vm1887, %v1867
      %1901 = vst.msk [vmem:[%s143 + $0x68] sm:$0xff] %vm1887, %v1868
      %1902 = vst.msk [vmem:[%s143 + $0x70] sm:$0xff] %vm1887, %v1869
      %1903 = vst.msk [vmem:[%s143 + $0x78] sm:$0xff] %vm1887, %v1870
      %1904 = vst.msk [vmem:[%s143 + $0x80] sm:$0xff] %vm1887, %v1871
      %1905 = vst.msk [vmem:[%s143 + $0x88] sm:$0xff] %vm1887, %v1872
      %1906 = vst.msk [vmem:[%s143 + $0x90] sm:$0xff] %vm1887, %v1873
      %1907 = vst.msk [vmem:[%s143 + $0x98] sm:$0xff] %vm1887, %v1874
      %1908 = vst.msk [vmem:[%s143 + $0xa0] sm:$0xff] %vm1887, %v1875
      %1909 = vst.msk [vmem:[%s143 + $0xa8] sm:$0xff] %vm1887, %v1876
      %1910 = vst.msk [vmem:[%s143 + $0xb0] sm:$0xff] %vm1887, %v1877
      %1911 = vst.msk [vmem:[%s143 + $0xb8] sm:$0xff] %vm1887, %v1878
      %1912 = vst.msk [vmem:[%s143 + $0xc0] sm:$0xff] %vm1887, %v1879
      %1913 = vst.msk [vmem:[%s143 + $0xc8] sm:$0xff] %vm1887, %v1880
      %1914 = vst.msk [vmem:[%s143 + $0xd0] sm:$0xff] %vm1887, %v1881
      %1915 = vst.msk [vmem:[%s143 + $0xd8] sm:$0xff] %vm1887, %v1882
      %1916 = vst.msk [vmem:[%s143 + $0xe0] sm:$0xff] %vm1887, %v1883
      %1917 = vst.msk [vmem:[%s143 + $0xe8] sm:$0xff] %vm1887, %v1884
      %1918 = vst.msk [vmem:[%s143 + $0xf0] sm:$0xff] %vm1887, %v1885
      %1919 = vst.msk [vmem:[%s143 + $0xf8] sm:$0xff] %vm1887, %v1886
      %p1920 = scmp.lt.s32.totalorder %s13, 1
      %s1921 = scalar_select %p1920, %s13, 1
      %s1922 = smul.addr %s1921, 32
      %s1923 = smul.addr %s1922, 8
      %s1924 = scalar_lea.vmem %s2, %s1923
      // Predicated region
      $region29: #{feed_forward.4} parent=27 // pred_check
        %p1925 = pneg %p78
      $region30: #{feed_forward.4} parent=27 // pred_check_branch
        %1927 = sbr.rel (%p1925) target = $region32
      $region31: #{feed_forward.4} parent=27 // pred_region
        _
      $region32: #{feed_forward.4} parent=27 // pred_fallthru
        _
    $region28: #{feed_forward.4} parent=5 // pred_fallthru
      _
    %p1928 = scmp.le.s32.totalorder 2, %s8
    // Predicated region
    $region33: #{feed_forward.4} parent=5 // pred_check
      %p1929 = pneg %p1928
    $region34: #{feed_forward.4} parent=5 // pred_check_branch
      %1931 = sbr.rel (%p1929) target = $region36
    $region35: #{feed_forward.4} parent=5 // pred_region
      %s1932 = ssub.s32 %s8, 2
      // Predicated region
      $region37: #{feed_forward.4} parent=35 // pred_check
        %p1933 = pneg %p84
      $region38: #{feed_forward.4} parent=35 // pred_check_branch
        %1935 = sbr.rel (%p1933) target = $region40
      $region39: #{feed_forward.4} parent=35 // pred_region
        %p1936 = scmp.lt.s32.totalorder %s14, 1
        %s1937 = scalar_select %p1936, %s14, 1
        %s1938 = smul.addr %s1937, 32
        %s1939 = smul.addr %s1938, 8
        %s1940 = scalar_lea.vmem %s2, %s1939
      $region40: #{feed_forward.4} parent=35 // pred_fallthru
        _
    $region36: #{feed_forward.4} parent=5 // pred_fallthru
      _
  $region6: #{feed_forward.4} parent=0 // loop_footer
    %s12 = sadd.s32 1, %s8
  $region7: #{feed_forward.4} parent=0 // loop_footer_branch
    %7 = sbr.rel target = $region3
  $region8: #{feed_forward.4} parent=0 // loop_exit
    _

</llo_original>
